<compile_context>
chip_gen: v5e
topology: v5e:2x2
jax: 0.10.0
libtpu: 0.0.40
codegen_flags: <defaults>
</compile_context>

<pallas_src>
import functools

import jax
import jax.numpy as jnp
from jax import lax
from jax.experimental import pallas as pl
from jax.experimental.pallas import tpu as pltpu


# --------------------------------------------------------------------------- #
# Kernel
# --------------------------------------------------------------------------- #
def mlp_softmax_kernel(x_ref, w1t_ref, b1_ref, w2_ref, b2_ref, w3_ref, b3_ref,
                       o_ref):
    # ---- Linear(10000 -> 32) + Tanh ---------------------------------------
    # x arrives as f32 (no extra HBM pass outside the kernel); cast to bf16 on
    # the VPU right before the MXU matmul.  f32 accumulation on the MXU.
    xb = x_ref[...].astype(jnp.bfloat16)                   # (TB, K)
    w1t = w1t_ref[...].astype(jnp.bfloat16)                # (32, K) lane-dense
    h1 = lax.dot_general(
        xb, w1t,
        dimension_numbers=(((1,), (1,)), ((), ())),        # contract on K
        preferred_element_type=jnp.float32,
    ) + b1_ref[...]                                        # (TB, 32) f32
    h1 = jnp.tanh(h1)

    # ---- Linear(32 -> 4) + LeakyReLU (default negative_slope = 0.01) ------
    h2 = jnp.dot(h1, w2_ref[...],
                 preferred_element_type=jnp.float32) + b2_ref[...]
    h2 = jnp.where(h2 > 0, h2, 0.01 * h2)                  # (TB, 4)

    # ---- Linear(4 -> n_classes) + Softmax over dim=1 -----------------------
    logits = jnp.dot(h2, w3_ref[...],
                     preferred_element_type=jnp.float32) + b3_ref[...]
    m = jnp.max(logits, axis=-1, keepdims=True)
    e = jnp.exp(logits - m)
    s = jnp.sum(e, axis=-1, keepdims=True)
    o_ref[...] = (e / s).astype(o_ref.dtype)               # (TB, n_classes)


# --------------------------------------------------------------------------- #
# Host-side tiling / budgeting helpers
# --------------------------------------------------------------------------- #
def _round_up(x, m):
    return ((x + m - 1) // m) * m


def _cdiv(a, b):
    return (a + b - 1) // b


def _tpu_vmem_bytes(default=64 * 1024 * 1024):
    """Physical VMEM per TensorCore; conservative 64 MiB (v7x) if unknown."""
    try:
        return int(getattr(pltpu.get_tpu_info(), "vmem_capacity_bytes", default))
    except Exception:
        return default


def _vmem_budget():
    """Return (max_tb, vmem_limit_bytes) sized per TPU generation."""
    vmem = _tpu_vmem_bytes()
    if vmem >= 100 * 1024 * 1024:
        # v5e / v6e: 128 MiB VMEM.  tb=512 of f32 x ~= 41 MiB double-buffered.
        return 512, 64 * 1024 * 1024
    # v7x (64 MiB) or unknown: keep the x double-buffer ~20 MiB and leave
    # >= 16 MiB headroom for Mosaic internal scratch.
    return 256, max(vmem - 16 * 1024 * 1024, 32 * 1024 * 1024)


def _choose_tiling(batch, max_tb):
    """Balanced batch tiles: pick n_tiles first, then tb, so the last tile is
    never mostly padding (worst-case padding < 8 * n_tiles rows)."""
    b8 = _round_up(batch, 8)
    if b8 >= 16:
        # >= 2 grid steps when possible so both v7x TensorCores get work.
        max_tb = min(max_tb, _round_up(b8 // 2, 8))
    n_tiles = _cdiv(b8, max_tb)
    tb = _round_up(_cdiv(b8, n_tiles), 8)
    return tb, n_tiles, n_tiles * tb


def _const_index(i):
    # Weights: same block every grid step -> resident in VMEM.
    return (0, 0)


@functools.lru_cache(maxsize=None)
def _build_forward(tb, n_tiles, K, n_classes, vmem_limit, single_buffer_weights):
    b_pad = tb * n_tiles

    if single_buffer_weights:
        # Constant-index weights never change block; drop the 2nd pipeline
        # buffer to save VMEM.
        def wspec(shape):
            return pl.BlockSpec(shape, _const_index,
                                pipeline_mode=pl.Buffered(1))
    else:
        def wspec(shape):
            return pl.BlockSpec(shape, _const_index)

    cost = pl.CostEstimate(
        flops=2 * b_pad * (K * 32 + 32 * 4 + 4 * n_classes),
        transcendentals=b_pad * (32 + n_classes),
        bytes_accessed=(b_pad * K * 4           # x, streamed as f32
                        + 32 * K * 4            # W1T (DMA'd once, resident)
                        + b_pad * n_classes * 4),
    )

    return pl.pallas_call(
        mlp_softmax_kernel,
        out_shape=jax.ShapeDtypeStruct((b_pad, n_classes), jnp.float32),
        grid=(n_tiles,),
        in_specs=[
            pl.BlockSpec((tb, K), lambda i: (i, 0)),        # x tile (streamed)
            wspec((32, K)),                                 # W1T
            wspec((1, 32)),                                 # b1
            wspec((32, 4)),                                 # W2
            wspec((1, 4)),                                  # b2
            wspec((4, n_classes)),                          # W3
            wspec((1, n_classes)),                          # b3
        ],
        out_specs=pl.BlockSpec((tb, n_classes), lambda i: (i, 0)),
        compiler_params=pltpu.CompilerParams(
            dimension_semantics=("parallel",),
            vmem_limit_bytes=int(vmem_limit),
        ),
        cost_estimate=cost,
    )


def multiclassificator_forward(x, params):
    """x: (B, 10000) float32.  params (all f32): W1T (32,10000), b1 (1,32),
    W2 (32,4), b2 (1,4), W3 (4,n_classes), b3 (1,n_classes)."""
    B, K = x.shape
    n_classes = params["W3"].shape[1]

    max_tb, vmem_limit = _vmem_budget()
    tb, n_tiles, b_pad = _choose_tiling(B, max_tb)

    # Padded rows see bias-only logits -> finite softmax; sliced off below.
    x_p = x if b_pad == B else jnp.pad(x, ((0, b_pad - B), (0, 0)))

    args = (x_p, params["W1T"], params["b1"], params["W2"], params["b2"],
            params["W3"], params["b3"])
    try:
        out = _build_forward(tb, n_tiles, K, n_classes, vmem_limit, True)(*args)
    except Exception:
        # pipeline_mode=pl.Buffered(1) unsupported on this JAX/TPU combo;
        # fall back to default (double-buffered) weight specs.
        out = _build_forward(tb, n_tiles, K, n_classes, vmem_limit, False)(*args)
    return out if b_pad == B else out[:B]


# --------------------------------------------------------------------------- #
# Params + pure-JAX reference
# --------------------------------------------------------------------------- #
def init_params(key, n_classes=46):
    """Deterministic init mimicking torch.nn.Linear default U(-1/sqrt(fan_in), +)."""
    def linear(key, fan_in, fan_out, transpose=False):
        kw, kb = jax.random.split(key)
        bound = 1.0 / jnp.sqrt(fan_in)
        shape = (fan_out, fan_in) if transpose else (fan_in, fan_out)
        W = jax.random.uniform(kw, shape, jnp.float32, -bound, bound)
        b = jax.random.uniform(kb, (1, fan_out), jnp.float32, -bound, bound)
        return W, b

    k1, k2, k3 = jax.random.split(key, 3)
    # W1 stored transposed / lane-dense: (32, 10000)
    W1T, b1 = linear(k1, 10000, 32, transpose=True)
    W2, b2 = linear(k2, 32, 4)
    W3, b3 = linear(k3, 4, n_classes)
    return {"W1T": W1T, "b1": b1, "W2": W2, "b2": b2, "W3": W3, "b3": b3}


def ref_forward(x, p):
    """Plain-JAX f32 reference of the same math."""
    h1 = jnp.tanh(x @ p["W1T"].T + p["b1"])
    h2 = h1 @ p["W2"] + p["b2"]
    h2 = jnp.where(h2 > 0, h2, 0.01 * h2)
    logits = h2 @ p["W3"] + p["b3"]
    return jax.nn.softmax(logits, axis=1)


# --------------------------------------------------------------------------- #
# Self-test
# --------------------------------------------------------------------------- #
if __name__ == "__main__":
    key = jax.random.PRNGKey(0)
    k_params, k_x1, k_x2, k_x3 = jax.random.split(key, 4)

    n_classes = 46
    params = init_params(k_params, n_classes=n_classes)

    def check(x):
        out = jax.block_until_ready(multiclassificator_forward(x, params))
        assert out.shape == (x.shape[0], n_classes)
        assert bool(jnp.all(jnp.abs(jnp.sum(out, axis=1) - 1.0) < 1e-4))
        expected = ref_forward(x, params)
        # bf16 x/W1 on the 10000-wide contraction -> looser tolerance vs f32.
        assert bool(jnp.all(jnp.abs(out - expected) < 2e-2))

    # Single-tile case (B=8 -> grid=(1,), tb=8).
    check(jax.random.normal(k_x1, (8, 10000), dtype=jnp.float32))

    # Multi-tile case (B=48 -> two balanced tiles of 24, no padding).
    check(jax.random.normal(k_x2, (48, 10000), dtype=jnp.float32))

    # Odd batch (B=30 -> two tiles of 16, exercises the padding path).
    check(jax.random.normal(k_x3, (30, 10000), dtype=jnp.float32))

    print("KERNEL_OK")
</pallas_src>

<mosaic_0001>
module attributes {stable_mosaic.version = 11 : i64} {
  func.func @mlp_softmax_kernel(%arg0: i32, %arg1: memref<8x10000xf32, #tpu.memory_space<vmem>>, %arg2: memref<32x10000xf32, #tpu.memory_space<vmem>>, %arg3: memref<1x32xf32, #tpu.memory_space<vmem>>, %arg4: memref<32x4xf32, #tpu.memory_space<vmem>>, %arg5: memref<1x4xf32, #tpu.memory_space<vmem>>, %arg6: memref<4x46xf32, #tpu.memory_space<vmem>>, %arg7: memref<1x46xf32, #tpu.memory_space<vmem>>, %arg8: memref<8x46xf32, #tpu.memory_space<vmem>>) attributes {dimension_semantics = [#tpu.dimension_semantics<parallel>], iteration_bounds = array<i64: 1>, scalar_prefetch = 0 : i64, scratch_operands = 0 : i64, tpu.core_type = #tpu.core_type<tc>, window_params = [{transform_indices = @transform_0, window_bounds = array<i64: 8, 10000>}, {pipeline_mode = #tpu.pipeline_mode<synchronous>, transform_indices = @transform_1, window_bounds = array<i64: 32, 10000>}, {pipeline_mode = #tpu.pipeline_mode<synchronous>, transform_indices = @transform_2, window_bounds = array<i64: 1, 32>}, {pipeline_mode = #tpu.pipeline_mode<synchronous>, transform_indices = @transform_3, window_bounds = array<i64: 32, 4>}, {pipeline_mode = #tpu.pipeline_mode<synchronous>, transform_indices = @transform_4, window_bounds = array<i64: 1, 4>}, {pipeline_mode = #tpu.pipeline_mode<synchronous>, transform_indices = @transform_5, window_bounds = array<i64: 4, 46>}, {pipeline_mode = #tpu.pipeline_mode<synchronous>, transform_indices = @transform_6, window_bounds = array<i64: 1, 46>}, {transform_indices = @transform_7, window_bounds = array<i64: 8, 46>}]} {
    %c0 = arith.constant 0 : index
    %c0_0 = arith.constant 0 : index
    %0 = vector.load %arg1[%c0, %c0_0] : memref<8x10000xf32, #tpu.memory_space<vmem>>, vector<8x10000xf32>
    %1 = arith.truncf %0 : vector<8x10000xf32> to vector<8x10000xbf16>
    %c0_1 = arith.constant 0 : index
    %c0_2 = arith.constant 0 : index
    %2 = vector.load %arg2[%c0_1, %c0_2] : memref<32x10000xf32, #tpu.memory_space<vmem>>, vector<32x10000xf32>
    %3 = arith.truncf %2 : vector<32x10000xf32> to vector<32x10000xbf16>
    %cst = arith.constant dense<0.000000e+00> : vector<8x32xf32>
    %4 = tpu.matmul %1, %3, %cst {dimension_numbers = #tpu.dot_dimension_numbers<[1], [1], [0], [0], [0, 0, 1, 0], [], []>} : vector<8x10000xbf16>, vector<32x10000xbf16>, vector<8x32xf32> -> vector<8x32xf32>
    %c0_3 = arith.constant 0 : index
    %c0_4 = arith.constant 0 : index
    %5 = vector.load %arg3[%c0_3, %c0_4] : memref<1x32xf32, #tpu.memory_space<vmem>>, vector<1x32xf32>
    %6 = vector.broadcast %5 : vector<1x32xf32> to vector<8x32xf32>
    %7 = arith.addf %4, %6 : vector<8x32xf32>
    %8 = math.tanh %7 : vector<8x32xf32>
    %c0_5 = arith.constant 0 : index
    %c0_6 = arith.constant 0 : index
    %9 = vector.load %arg4[%c0_5, %c0_6] : memref<32x4xf32, #tpu.memory_space<vmem>>, vector<32x4xf32>
    %cst_7 = arith.constant dense<0.000000e+00> : vector<8x4xf32>
    %10 = tpu.matmul %8, %9, %cst_7 {dimension_numbers = #tpu.dot_dimension_numbers<[1], [0], [0], [1], [0, 0, 1, 1], [], []>} : vector<8x32xf32>, vector<32x4xf32>, vector<8x4xf32> -> vector<8x4xf32>
    %c0_8 = arith.constant 0 : index
    %c0_9 = arith.constant 0 : index
    %11 = vector.load %arg5[%c0_8, %c0_9] : memref<1x4xf32, #tpu.memory_space<vmem>>, vector<1x4xf32>
    %12 = vector.broadcast %11 : vector<1x4xf32> to vector<8x4xf32>
    %13 = arith.addf %10, %12 : vector<8x4xf32>
    %cst_10 = arith.constant 0.000000e+00 : f32
    %14 = vector.broadcast %cst_10 : f32 to vector<8x4xf32>
    %15 = arith.cmpf ogt, %13, %14 : vector<8x4xf32>
    %cst_11 = arith.constant 0.00999999977 : f32
    %16 = vector.broadcast %cst_11 : f32 to vector<8x4xf32>
    %17 = arith.mulf %16, %13 : vector<8x4xf32>
    %18 = arith.select %15, %13, %17 : vector<8x4xi1>, vector<8x4xf32>
    %c0_12 = arith.constant 0 : index
    %c0_13 = arith.constant 0 : index
    %19 = vector.load %arg6[%c0_12, %c0_13] : memref<4x46xf32, #tpu.memory_space<vmem>>, vector<4x46xf32>
    %cst_14 = arith.constant dense<0.000000e+00> : vector<8x46xf32>
    %20 = tpu.matmul %18, %19, %cst_14 {dimension_numbers = #tpu.dot_dimension_numbers<[1], [0], [0], [1], [0, 0, 1, 1], [], []>} : vector<8x4xf32>, vector<4x46xf32>, vector<8x46xf32> -> vector<8x46xf32>
    %c0_15 = arith.constant 0 : index
    %c0_16 = arith.constant 0 : index
    %21 = vector.load %arg7[%c0_15, %c0_16] : memref<1x46xf32, #tpu.memory_space<vmem>>, vector<1x46xf32>
    %22 = vector.broadcast %21 : vector<1x46xf32> to vector<8x46xf32>
    %23 = arith.addf %20, %22 : vector<8x46xf32>
    %cst_17 = arith.constant dense<0xFF800000> : vector<8xf32>
    %24 = vector.multi_reduction <maximumf>, %23, %cst_17 [1] : vector<8x46xf32> to vector<8xf32>
    %25 = vector.shape_cast %24 : vector<8xf32> to vector<8x1xf32>
    %26 = vector.broadcast %25 : vector<8x1xf32> to vector<8x46xf32>
    %27 = arith.subf %23, %26 : vector<8x46xf32>
    %28 = math.exp %27 : vector<8x46xf32>
    %cst_18 = arith.constant dense<0.000000e+00> : vector<8xf32>
    %29 = vector.multi_reduction <add>, %28, %cst_18 [1] : vector<8x46xf32> to vector<8xf32>
    %30 = vector.shape_cast %29 : vector<8xf32> to vector<8x1xf32>
    %31 = vector.broadcast %30 : vector<8x1xf32> to vector<8x46xf32>
    %32 = arith.divf %28, %31 : vector<8x46xf32>
    %c0_19 = arith.constant 0 : index
    %c0_20 = arith.constant 0 : index
    %33 = vector.load %arg8[%c0_19, %c0_20] : memref<8x46xf32, #tpu.memory_space<vmem>>, vector<8x46xf32>
    tpu.vector_store %arg8[%c0_19, %c0_20], %32 {strides = array<i32>} : memref<8x46xf32, #tpu.memory_space<vmem>>, vector<8x46xf32>,
    return
  }
  func.func @transform_0(%arg0: i32) -> (i32, i32) {
    %c0_i32 = arith.constant 0 : i32
    %c0_i32_0 = arith.constant 0 : i32
    return %arg0, %c0_i32 : i32, i32
  }
  func.func @transform_1(%arg0: i32) -> (i32, i32) {
    %c0_i32 = arith.constant 0 : i32
    %c0_i32_0 = arith.constant 0 : i32
    %c0_i32_1 = arith.constant 0 : i32
    return %c0_i32, %c0_i32_0 : i32, i32
  }
  func.func @transform_2(%arg0: i32) -> (i32, i32) {
    %c0_i32 = arith.constant 0 : i32
    %c0_i32_0 = arith.constant 0 : i32
    %c0_i32_1 = arith.constant 0 : i32
    return %c0_i32, %c0_i32_0 : i32, i32
  }
  func.func @transform_3(%arg0: i32) -> (i32, i32) {
    %c0_i32 = arith.constant 0 : i32
    %c0_i32_0 = arith.constant 0 : i32
    %c0_i32_1 = arith.constant 0 : i32
    return %c0_i32, %c0_i32_0 : i32, i32
  }
  func.func @transform_4(%arg0: i32) -> (i32, i32) {
    %c0_i32 = arith.constant 0 : i32
    %c0_i32_0 = arith.constant 0 : i32
    %c0_i32_1 = arith.constant 0 : i32
    return %c0_i32, %c0_i32_0 : i32, i32
  }
  func.func @transform_5(%arg0: i32) -> (i32, i32) {
    %c0_i32 = arith.constant 0 : i32
    %c0_i32_0 = arith.constant 0 : i32
    %c0_i32_1 = arith.constant 0 : i32
    return %c0_i32, %c0_i32_0 : i32, i32
  }
  func.func @transform_6(%arg0: i32) -> (i32, i32) {
    %c0_i32 = arith.constant 0 : i32
    %c0_i32_0 = arith.constant 0 : i32
    %c0_i32_1 = arith.constant 0 : i32
    return %c0_i32, %c0_i32_0 : i32, i32
  }
  func.func @transform_7(%arg0: i32) -> (i32, i32) {
    %c0_i32 = arith.constant 0 : i32
    %c0_i32_0 = arith.constant 0 : i32
    return %arg0, %c0_i32 : i32, i32
  }
}

module attributes {stable_mosaic.version = 11 : i64} {
  func.func @mlp_softmax_kernel(%arg0: i32, %arg1: memref<8x10000xf32, #tpu.memory_space<vmem>>, %arg2: memref<32x10000xf32, #tpu.memory_space<vmem>>, %arg3: memref<1x32xf32, #tpu.memory_space<vmem>>, %arg4: memref<32x4xf32, #tpu.memory_space<vmem>>, %arg5: memref<1x4xf32, #tpu.memory_space<vmem>>, %arg6: memref<4x46xf32, #tpu.memory_space<vmem>>, %arg7: memref<1x46xf32, #tpu.memory_space<vmem>>, %arg8: memref<8x46xf32, #tpu.memory_space<vmem>>) attributes {dimension_semantics = [#tpu.dimension_semantics<parallel>], iteration_bounds = array<i64: 1>, scalar_prefetch = 0 : i64, scratch_operands = 0 : i64, tpu.core_type = #tpu.core_type<tc>, window_params = [{transform_indices = @transform_0, window_bounds = array<i64: 8, 10000>}, {pipeline_mode = #tpu.pipeline_mode<synchronous>, transform_indices = @transform_1, window_bounds = array<i64: 32, 10000>}, {pipeline_mode = #tpu.pipeline_mode<synchronous>, transform_indices = @transform_2, window_bounds = array<i64: 1, 32>}, {pipeline_mode = #tpu.pipeline_mode<synchronous>, transform_indices = @transform_3, window_bounds = array<i64: 32, 4>}, {pipeline_mode = #tpu.pipeline_mode<synchronous>, transform_indices = @transform_4, window_bounds = array<i64: 1, 4>}, {pipeline_mode = #tpu.pipeline_mode<synchronous>, transform_indices = @transform_5, window_bounds = array<i64: 4, 46>}, {pipeline_mode = #tpu.pipeline_mode<synchronous>, transform_indices = @transform_6, window_bounds = array<i64: 1, 46>}, {transform_indices = @transform_7, window_bounds = array<i64: 8, 46>}]} {
    %c0 = arith.constant 0 : index
    %c0_0 = arith.constant 0 : index
    %0 = vector.load %arg1[%c0, %c0_0] : memref<8x10000xf32, #tpu.memory_space<vmem>>, vector<8x10000xf32>
    %1 = arith.truncf %0 : vector<8x10000xf32> to vector<8x10000xbf16>
    %c0_1 = arith.constant 0 : index
    %c0_2 = arith.constant 0 : index
    %2 = vector.load %arg2[%c0_1, %c0_2] : memref<32x10000xf32, #tpu.memory_space<vmem>>, vector<32x10000xf32>
    %3 = arith.truncf %2 : vector<32x10000xf32> to vector<32x10000xbf16>
    %cst = arith.constant dense<0.000000e+00> : vector<8x32xf32>
    %4 = tpu.matmul %1, %3, %cst {dimension_numbers = #tpu.dot_dimension_numbers<[1], [1], [0], [0], [0, 0, 1, 0], [], []>} : vector<8x10000xbf16>, vector<32x10000xbf16>, vector<8x32xf32> -> vector<8x32xf32>
    %c0_3 = arith.constant 0 : index
    %c0_4 = arith.constant 0 : index
    %5 = vector.load %arg3[%c0_3, %c0_4] : memref<1x32xf32, #tpu.memory_space<vmem>>, vector<1x32xf32>
    %6 = vector.broadcast %5 : vector<1x32xf32> to vector<8x32xf32>
    %7 = arith.addf %4, %6 : vector<8x32xf32>
    %8 = math.tanh %7 : vector<8x32xf32>
    %c0_5 = arith.constant 0 : index
    %c0_6 = arith.constant 0 : index
    %9 = vector.load %arg4[%c0_5, %c0_6] : memref<32x4xf32, #tpu.memory_space<vmem>>, vector<32x4xf32>
    %cst_7 = arith.constant dense<0.000000e+00> : vector<8x4xf32>
    %10 = tpu.matmul %8, %9, %cst_7 {dimension_numbers = #tpu.dot_dimension_numbers<[1], [0], [0], [1], [0, 0, 1, 1], [], []>} : vector<8x32xf32>, vector<32x4xf32>, vector<8x4xf32> -> vector<8x4xf32>
    %c0_8 = arith.constant 0 : index
    %c0_9 = arith.constant 0 : index
    %11 = vector.load %arg5[%c0_8, %c0_9] : memref<1x4xf32, #tpu.memory_space<vmem>>, vector<1x4xf32>
    %12 = vector.broadcast %11 : vector<1x4xf32> to vector<8x4xf32>
    %13 = arith.addf %10, %12 : vector<8x4xf32>
    %cst_10 = arith.constant 0.000000e+00 : f32
    %14 = vector.broadcast %cst_10 : f32 to vector<8x4xf32>
    %15 = arith.cmpf ogt, %13, %14 : vector<8x4xf32>
    %cst_11 = arith.constant 0.00999999977 : f32
    %16 = vector.broadcast %cst_11 : f32 to vector<8x4xf32>
    %17 = arith.mulf %16, %13 : vector<8x4xf32>
    %18 = arith.select %15, %13, %17 : vector<8x4xi1>, vector<8x4xf32>
    %c0_12 = arith.constant 0 : index
    %c0_13 = arith.constant 0 : index
    %19 = vector.load %arg6[%c0_12, %c0_13] : memref<4x46xf32, #tpu.memory_space<vmem>>, vector<4x46xf32>
    %cst_14 = arith.constant dense<0.000000e+00> : vector<8x46xf32>
    %20 = tpu.matmul %18, %19, %cst_14 {dimension_numbers = #tpu.dot_dimension_numbers<[1], [0], [0], [1], [0, 0, 1, 1], [], []>} : vector<8x4xf32>, vector<4x46xf32>, vector<8x46xf32> -> vector<8x46xf32>
    %c0_15 = arith.constant 0 : index
    %c0_16 = arith.constant 0 : index
    %21 = vector.load %arg7[%c0_15, %c0_16] : memref<1x46xf32, #tpu.memory_space<vmem>>, vector<1x46xf32>
    %22 = vector.broadcast %21 : vector<1x46xf32> to vector<8x46xf32>
    %23 = arith.addf %20, %22 : vector<8x46xf32>
    %cst_17 = arith.constant dense<0xFF800000> : vector<8xf32>
    %24 = vector.multi_reduction <maximumf>, %23, %cst_17 [1] : vector<8x46xf32> to vector<8xf32>
    %25 = vector.shape_cast %24 : vector<8xf32> to vector<8x1xf32>
    %26 = vector.broadcast %25 : vector<8x1xf32> to vector<8x46xf32>
    %27 = arith.subf %23, %26 : vector<8x46xf32>
    %28 = math.exp %27 : vector<8x46xf32>
    %cst_18 = arith.constant dense<0.000000e+00> : vector<8xf32>
    %29 = vector.multi_reduction <add>, %28, %cst_18 [1] : vector<8x46xf32> to vector<8xf32>
    %30 = vector.shape_cast %29 : vector<8xf32> to vector<8x1xf32>
    %31 = vector.broadcast %30 : vector<8x1xf32> to vector<8x46xf32>
    %32 = arith.divf %28, %31 : vector<8x46xf32>
    %c0_19 = arith.constant 0 : index
    %c0_20 = arith.constant 0 : index
    %33 = vector.load %arg8[%c0_19, %c0_20] : memref<8x46xf32, #tpu.memory_space<vmem>>, vector<8x46xf32>
    tpu.vector_store %arg8[%c0_19, %c0_20], %32 {strides = array<i32>} : memref<8x46xf32, #tpu.memory_space<vmem>>, vector<8x46xf32>,
    return
  }
  func.func @transform_0(%arg0: i32) -> (i32, i32) {
    %c0_i32 = arith.constant 0 : i32
    %c0_i32_0 = arith.constant 0 : i32
    return %arg0, %c0_i32 : i32, i32
  }
  func.func @transform_1(%arg0: i32) -> (i32, i32) {
    %c0_i32 = arith.constant 0 : i32
    %c0_i32_0 = arith.constant 0 : i32
    %c0_i32_1 = arith.constant 0 : i32
    return %c0_i32, %c0_i32_0 : i32, i32
  }
  func.func @transform_2(%arg0: i32) -> (i32, i32) {
    %c0_i32 = arith.constant 0 : i32
    %c0_i32_0 = arith.constant 0 : i32
    %c0_i32_1 = arith.constant 0 : i32
    return %c0_i32, %c0_i32_0 : i32, i32
  }
  func.func @transform_3(%arg0: i32) -> (i32, i32) {
    %c0_i32 = arith.constant 0 : i32
    %c0_i32_0 = arith.constant 0 : i32
    %c0_i32_1 = arith.constant 0 : i32
    return %c0_i32, %c0_i32_0 : i32, i32
  }
  func.func @transform_4(%arg0: i32) -> (i32, i32) {
    %c0_i32 = arith.constant 0 : i32
    %c0_i32_0 = arith.constant 0 : i32
    %c0_i32_1 = arith.constant 0 : i32
    return %c0_i32, %c0_i32_0 : i32, i32
  }
  func.func @transform_5(%arg0: i32) -> (i32, i32) {
    %c0_i32 = arith.constant 0 : i32
    %c0_i32_0 = arith.constant 0 : i32
    %c0_i32_1 = arith.constant 0 : i32
    return %c0_i32, %c0_i32_0 : i32, i32
  }
  func.func @transform_6(%arg0: i32) -> (i32, i32) {
    %c0_i32 = arith.constant 0 : i32
    %c0_i32_0 = arith.constant 0 : i32
    %c0_i32_1 = arith.constant 0 : i32
    return %c0_i32, %c0_i32_0 : i32, i32
  }
  func.func @transform_7(%arg0: i32) -> (i32, i32) {
    %c0_i32 = arith.constant 0 : i32
    %c0_i32_0 = arith.constant 0 : i32
    return %arg0, %c0_i32 : i32, i32
  }
}

</mosaic_0001>

<llo_original>
// kernel: tpu_custom_call.1
$region0: #{tpu_custom_call.1}
  #allocation0 [shape = 'u32[]', space=smem, size = 0x4, offset = 0x4, fixed_abs, tag = 'smem constant byte address 0x4 - core index']
  #allocation1 [shape = 'u32[72,128]{1,0:T(1,128)}', space=vmem, size = 0x9000, scoped, tag = 'internal scratch']
  %s0 = inlined_call_operand.hbm [shape: f32[8,10000], index: 0, kind: input, shape index: {}]
  %s1 = inlined_call_operand.hbm [shape: f32[32,10000], index: 1, kind: input, shape index: {}]
  %s2 = inlined_call_operand.hbm [shape: f32[1,32], index: 2, kind: input, shape index: {}]
  %s3 = inlined_call_operand.vmem [shape: f32[32,4], index: 3, kind: input, shape index: {}]
  %s4 = inlined_call_operand.hbm [shape: f32[1,4], index: 4, kind: input, shape index: {}]
  %s5 = inlined_call_operand.hbm [shape: f32[4,46], index: 5, kind: input, shape index: {}]
  %s6 = inlined_call_operand.hbm [shape: f32[1,46], index: 6, kind: input, shape index: {}]
  %s7 = inlined_call_operand.hbm [shape: f32[8,46], index: 7, kind: output, shape index: {}]
  %s8 = sld [smem:[#allocation0]]
  $region62: #{tpu_custom_call.1} parent=0
    _
  %s10 = ssub.s32 1, %s8
  %s11 = scalar_select 0, %s10, %s8
  $region1: #{tpu_custom_call.1} parent=0
    #allocation2 [shape = 'u8[323584]{0}', space=vmem, size = 0x4f000, scoped, tag = 'input window, operand 0, single buffered']
    #allocation3 [shape = 's32[1]{0}', space=sflag, size = 0x4, scoped, tag = 'scoped memory for tpu_custom_call.1']
    #allocation4 [shape = 's32[1]{0}', space=sflag, size = 0x4, scoped, tag = 'scoped memory for tpu_custom_call.1']
    #allocation5 [shape = 'u8[1294336]{0}', space=vmem, size = 0x13c000, scoped, tag = 'input window, operand 1, single buffered']
    #allocation6 [shape = 's32[1]{0}', space=sflag, size = 0x4, scoped, tag = 'scoped memory for tpu_custom_call.1']
    #allocation7 [shape = 'u8[512]{0}', space=vmem, size = 0x400, scoped, tag = 'input window, operand 2, single buffered']
    #allocation8 [shape = 'u8[512]{0}', space=vmem, size = 0x400, scoped, tag = 'input window, operand 4, single buffered']
    #allocation9 [shape = 's32[1]{0}', space=sflag, size = 0x4, scoped, tag = 'scoped memory for tpu_custom_call.1']
    #allocation10 [shape = 'u8[2048]{0}', space=vmem, size = 0x800, scoped, tag = 'input window, operand 5, single buffered']
    #allocation11 [shape = 'u8[512]{0}', space=vmem, size = 0x400, scoped, tag = 'input window, operand 6, single buffered']
    #allocation12 [shape = 's32[1]{0}', space=sflag, size = 0x4, scoped, tag = 'scoped memory for tpu_custom_call.1']
    #allocation13 [shape = 'u8[4096]{0}', space=vmem, size = 0x1000, scoped, tag = 'output window, operand 0, single buffered']
    %12 = vsyncpa [#allocation3], 0
    %13 = vsyncpa [#allocation6], 0
    %14 = vsyncpa [#allocation9], 0
    %15 = vsyncpa [#allocation12], 0
    %16 = vsyncpa [#allocation4], 0
    // Predicated region
    $region2: #{tpu_custom_call.1} parent=1 // pred_check
      _
    $region3: #{tpu_custom_call.1} parent=1 // pred_check_branch
      %18 = sbr.rel (0) target = $region5
    $region4: #{tpu_custom_call.1} parent=1 // pred_region
      %20 = vsyncadd [#allocation3], 0
      %s22 = sshll.u32 %s0, 4
      %s23 = int_to_ptr.hbm [resolvable:$true] %s22
      %s24 = sshll.u32 [#allocation2], 4
      %s25 = int_to_ptr.vmem [resolvable:$true] %s24
      %27 = dma.hbm_to_vmem [thread:$0]  %s23, 10112, %s25, [#allocation3]
    $region5: #{tpu_custom_call.1} parent=1 // pred_fallthru
      _
    // Predicated region
    $region6: #{tpu_custom_call.1} parent=1 // pred_check
      _
    $region7: #{tpu_custom_call.1} parent=1 // pred_check_branch
      %29 = sbr.rel (0) target = $region9
    $region8: #{tpu_custom_call.1} parent=1 // pred_region
      %31 = vsyncadd [#allocation6], 0
      %s32 = sshll.u32 %s1, 4
      %s33 = int_to_ptr.hbm [resolvable:$true] %s32
      %s34 = sshll.u32 [#allocation5], 4
      %s35 = int_to_ptr.vmem [resolvable:$true] %s34
      %40 = dma.hbm_to_vmem [thread:$0]  %s33, 40448, %s35, [#allocation6], 10112, 10112, 632
    $region9: #{tpu_custom_call.1} parent=1 // pred_fallthru
      _
    // Predicated region
    $region10: #{tpu_custom_call.1} parent=1 // pred_check
      _
    $region11: #{tpu_custom_call.1} parent=1 // pred_check_branch
      %42 = sbr.rel (0) target = $region13
    $region12: #{tpu_custom_call.1} parent=1 // pred_region
      %44 = vsyncadd [#allocation6], 0
      %s46 = sshll.u32 %s2, 4
      %s47 = int_to_ptr.hbm [resolvable:$true] %s46
      %s48 = sshll.u32 [#allocation7], 4
      %s49 = int_to_ptr.vmem [resolvable:$true] %s48
      %51 = dma.hbm_to_vmem [thread:$0]  %s47, 16, %s49, [#allocation6]
    $region13: #{tpu_custom_call.1} parent=1 // pred_fallthru
      _
    // Predicated region
    $region14: #{tpu_custom_call.1} parent=1 // pred_check
      _
    $region15: #{tpu_custom_call.1} parent=1 // pred_check_branch
      %53 = sbr.rel (0) target = $region17
    $region16: #{tpu_custom_call.1} parent=1 // pred_region
      _
    $region17: #{tpu_custom_call.1} parent=1 // pred_fallthru
      _
    // Predicated region
    $region18: #{tpu_custom_call.1} parent=1 // pred_check
      _
    $region19: #{tpu_custom_call.1} parent=1 // pred_check_branch
      %55 = sbr.rel (0) target = $region21
    $region20: #{tpu_custom_call.1} parent=1 // pred_region
      %57 = vsyncadd [#allocation9], 0
      %s59 = sshll.u32 %s4, 4
      %s60 = int_to_ptr.hbm [resolvable:$true] %s59
      %s61 = sshll.u32 [#allocation8], 4
      %s62 = int_to_ptr.vmem [resolvable:$true] %s61
      %64 = dma.hbm_to_vmem [thread:$0]  %s60, 16, %s62, [#allocation9]
    $region21: #{tpu_custom_call.1} parent=1 // pred_fallthru
      _
    // Predicated region
    $region22: #{tpu_custom_call.1} parent=1 // pred_check
      _
    $region23: #{tpu_custom_call.1} parent=1 // pred_check_branch
      %66 = sbr.rel (0) target = $region25
    $region24: #{tpu_custom_call.1} parent=1 // pred_region
      %68 = vsyncadd [#allocation9], 0
      %s70 = sshll.u32 %s5, 4
      %s71 = int_to_ptr.hbm [resolvable:$true] %s70
      %s72 = sshll.u32 [#allocation10], 4
      %s73 = int_to_ptr.vmem [resolvable:$true] %s72
      %75 = dma.hbm_to_vmem [thread:$0]  %s71, 64, %s73, [#allocation9]
    $region25: #{tpu_custom_call.1} parent=1 // pred_fallthru
      _
    // Predicated region
    $region26: #{tpu_custom_call.1} parent=1 // pred_check
      _
    $region27: #{tpu_custom_call.1} parent=1 // pred_check_branch
      %77 = sbr.rel (0) target = $region29
    $region28: #{tpu_custom_call.1} parent=1 // pred_region
      %79 = vsyncadd [#allocation12], 0
      %s81 = sshll.u32 %s6, 4
      %s82 = int_to_ptr.hbm [resolvable:$true] %s81
      %s83 = sshll.u32 [#allocation11], 4
      %s84 = int_to_ptr.vmem [resolvable:$true] %s83
      %86 = dma.hbm_to_vmem [thread:$0]  %s82, 16, %s84, [#allocation12]
    $region29: #{tpu_custom_call.1} parent=1 // pred_fallthru
      _
    // Predicated region
    $region30: #{tpu_custom_call.1} parent=1 // pred_check
      _
    $region31: #{tpu_custom_call.1} parent=1 // pred_check_branch
      %88 = sbr.rel (0) target = $region33
    $region32: #{tpu_custom_call.1} parent=1 // pred_region
      %90 = dma.done [#allocation3], 10112
    $region33: #{tpu_custom_call.1} parent=1 // pred_fallthru
      _
    // Predicated region
    $region34: #{tpu_custom_call.1} parent=1 // pred_check
      _
    $region35: #{tpu_custom_call.1} parent=1 // pred_check_branch
      %92 = sbr.rel (0) target = $region37
    $region36: #{tpu_custom_call.1} parent=1 // pred_region
      %94 = dma.done [#allocation6], 40448
    $region37: #{tpu_custom_call.1} parent=1 // pred_fallthru
      _
    // Predicated region
    $region38: #{tpu_custom_call.1} parent=1 // pred_check
      _
    $region39: #{tpu_custom_call.1} parent=1 // pred_check_branch
      %96 = sbr.rel (0) target = $region41
    $region40: #{tpu_custom_call.1} parent=1 // pred_region
      %98 = dma.done [#allocation6], 16
    $region41: #{tpu_custom_call.1} parent=1 // pred_fallthru
      _
    // Predicated region
    $region42: #{tpu_custom_call.1} parent=1 // pred_check
      _
    $region43: #{tpu_custom_call.1} parent=1 // pred_check_branch
      %100 = sbr.rel (0) target = $region45
    $region44: #{tpu_custom_call.1} parent=1 // pred_region
      %102 = dma.done [#allocation9], 16
    $region45: #{tpu_custom_call.1} parent=1 // pred_fallthru
      _
    // Predicated region
    $region46: #{tpu_custom_call.1} parent=1 // pred_check
      _
    $region47: #{tpu_custom_call.1} parent=1 // pred_check_branch
      %104 = sbr.rel (0) target = $region49
    $region48: #{tpu_custom_call.1} parent=1 // pred_region
      %106 = dma.done [#allocation9], 64
    $region49: #{tpu_custom_call.1} parent=1 // pred_fallthru
      _
    // Predicated region
    $region50: #{tpu_custom_call.1} parent=1 // pred_check
      _
    $region51: #{tpu_custom_call.1} parent=1 // pred_check_branch
      %108 = sbr.rel (0) target = $region53
    $region52: #{tpu_custom_call.1} parent=1 // pred_region
      %110 = dma.done [#allocation12], 16
    $region53: #{tpu_custom_call.1} parent=1 // pred_fallthru
      _
    %v112 = vld [vmem:[#allocation2] sm:$0xff]
    %v113 = vld [vmem:[#allocation2 + $0x8] sm:$0xff]
    %v114 = vld [vmem:[#allocation2 + $0x10] sm:$0xff]
    %v115 = vld [vmem:[#allocation2 + $0x18] sm:$0xff]
    %v116 = vld [vmem:[#allocation2 + $0x20] sm:$0xff]
    %v117 = vld [vmem:[#allocation2 + $0x28] sm:$0xff]
    %v118 = vld [vmem:[#allocation2 + $0x30] sm:$0xff]
    %v119 = vld [vmem:[#allocation2 + $0x38] sm:$0xff]
    %v120 = vld [vmem:[#allocation2 + $0x40] sm:$0xff]
    %v121 = vld [vmem:[#allocation2 + $0x48] sm:$0xff]
    %v122 = vld [vmem:[#allocation2 + $0x50] sm:$0xff]
    %v123 = vld [vmem:[#allocation2 + $0x58] sm:$0xff]
    %v124 = vld [vmem:[#allocation2 + $0x60] sm:$0xff]
    %v125 = vld [vmem:[#allocation2 + $0x68] sm:$0xff]
    %v126 = vld [vmem:[#allocation2 + $0x70] sm:$0xff]
    %v127 = vld [vmem:[#allocation2 + $0x78] sm:$0xff]
    %v128 = vld [vmem:[#allocation2 + $0x80] sm:$0xff]
    %v129 = vld [vmem:[#allocation2 + $0x88] sm:$0xff]
    %v130 = vld [vmem:[#allocation2 + $0x90] sm:$0xff]
    %v131 = vld [vmem:[#allocation2 + $0x98] sm:$0xff]
    %v132 = vld [vmem:[#allocation2 + $0xa0] sm:$0xff]
    %v133 = vld [vmem:[#allocation2 + $0xa8] sm:$0xff]
    %v134 = vld [vmem:[#allocation2 + $0xb0] sm:$0xff]
    %v135 = vld [vmem:[#allocation2 + $0xb8] sm:$0xff]
    %v136 = vld [vmem:[#allocation2 + $0xc0] sm:$0xff]
    %v137 = vld [vmem:[#allocation2 + $0xc8] sm:$0xff]
    %v138 = vld [vmem:[#allocation2 + $0xd0] sm:$0xff]
    %v139 = vld [vmem:[#allocation2 + $0xd8] sm:$0xff]
    %v140 = vld [vmem:[#allocation2 + $0xe0] sm:$0xff]
    %v141 = vld [vmem:[#allocation2 + $0xe8] sm:$0xff]
    %v142 = vld [vmem:[#allocation2 + $0xf0] sm:$0xff]
    %v143 = vld [vmem:[#allocation2 + $0xf8] sm:$0xff]
    %v144 = vld [vmem:[#allocation2 + $0x100] sm:$0xff]
    %v145 = vld [vmem:[#allocation2 + $0x108] sm:$0xff]
    %v146 = vld [vmem:[#allocation2 + $0x110] sm:$0xff]
    %v147 = vld [vmem:[#allocation2 + $0x118] sm:$0xff]
    %v148 = vld [vmem:[#allocation2 + $0x120] sm:$0xff]
    %v149 = vld [vmem:[#allocation2 + $0x128] sm:$0xff]
    %v150 = vld [vmem:[#allocation2 + $0x130] sm:$0xff]
    %v151 = vld [vmem:[#allocation2 + $0x138] sm:$0xff]
    %v152 = vld [vmem:[#allocation2 + $0x140] sm:$0xff]
    %v153 = vld [vmem:[#allocation2 + $0x148] sm:$0xff]
    %v154 = vld [vmem:[#allocation2 + $0x150] sm:$0xff]
    %v155 = vld [vmem:[#allocation2 + $0x158] sm:$0xff]
    %v156 = vld [vmem:[#allocation2 + $0x160] sm:$0xff]
    %v157 = vld [vmem:[#allocation2 + $0x168] sm:$0xff]
    %v158 = vld [vmem:[#allocation2 + $0x170] sm:$0xff]
    %v159 = vld [vmem:[#allocation2 + $0x178] sm:$0xff]
    %v160 = vld [vmem:[#allocation2 + $0x180] sm:$0xff]
    %v161 = vld [vmem:[#allocation2 + $0x188] sm:$0xff]
    %v162 = vld [vmem:[#allocation2 + $0x190] sm:$0xff]
    %v163 = vld [vmem:[#allocation2 + $0x198] sm:$0xff]
    %v164 = vld [vmem:[#allocation2 + $0x1a0] sm:$0xff]
    %v165 = vld [vmem:[#allocation2 + $0x1a8] sm:$0xff]
    %v166 = vld [vmem:[#allocation2 + $0x1b0] sm:$0xff]
    %v167 = vld [vmem:[#allocation2 + $0x1b8] sm:$0xff]
    %v168 = vld [vmem:[#allocation2 + $0x1c0] sm:$0xff]
    %v169 = vld [vmem:[#allocation2 + $0x1c8] sm:$0xff]
    %v170 = vld [vmem:[#allocation2 + $0x1d0] sm:$0xff]
    %v171 = vld [vmem:[#allocation2 + $0x1d8] sm:$0xff]
    %v172 = vld [vmem:[#allocation2 + $0x1e0] sm:$0xff]
    %v173 = vld [vmem:[#allocation2 + $0x1e8] sm:$0xff]
    %v174 = vld [vmem:[#allocation2 + $0x1f0] sm:$0xff]
    %v175 = vld [vmem:[#allocation2 + $0x1f8] sm:$0xff]
    %v176 = vld [vmem:[#allocation2 + $0x200] sm:$0xff]
    %v177 = vld [vmem:[#allocation2 + $0x208] sm:$0xff]
    %v178 = vld [vmem:[#allocation2 + $0x210] sm:$0xff]
    %v179 = vld [vmem:[#allocation2 + $0x218] sm:$0xff]
    %v180 = vld [vmem:[#allocation2 + $0x220] sm:$0xff]
    %v181 = vld [vmem:[#allocation2 + $0x228] sm:$0xff]
    %v182 = vld [vmem:[#allocation2 + $0x230] sm:$0xff]
    %v183 = vld [vmem:[#allocation2 + $0x238] sm:$0xff]
    %v184 = vld [vmem:[#allocation2 + $0x240] sm:$0xff]
    %v185 = vld [vmem:[#allocation2 + $0x248] sm:$0xff]
    %v186 = vld [vmem:[#allocation2 + $0x250] sm:$0xff]
    %v187 = vld [vmem:[#allocation2 + $0x258] sm:$0xff]
    %v188 = vld [vmem:[#allocation2 + $0x260] sm:$0xff]
    %v189 = vld [vmem:[#allocation2 + $0x268] sm:$0xff]
    %v190 = vld [vmem:[#allocation2 + $0x270] sm:$0xff]
    %v191 = vpack.c.bf16 %v112, %v112
    %v192 = vpack.c.bf16 %v113, %v113
    %v193 = vpack.c.bf16 %v114, %v114
    %v194 = vpack.c.bf16 %v115, %v115
    %v195 = vpack.c.bf16 %v116, %v116
    %v196 = vpack.c.bf16 %v117, %v117
    %v197 = vpack.c.bf16 %v118, %v118
    %v198 = vpack.c.bf16 %v119, %v119
    %v199 = vpack.c.bf16 %v120, %v120
    %v200 = vpack.c.bf16 %v121, %v121
    %v201 = vpack.c.bf16 %v122, %v122
    %v202 = vpack.c.bf16 %v123, %v123
    %v203 = vpack.c.bf16 %v124, %v124
    %v204 = vpack.c.bf16 %v125, %v125
    %v205 = vpack.c.bf16 %v126, %v126
    %v206 = vpack.c.bf16 %v127, %v127
    %v207 = vpack.c.bf16 %v128, %v128
    %v208 = vpack.c.bf16 %v129, %v129
    %v209 = vpack.c.bf16 %v130, %v130
    %v210 = vpack.c.bf16 %v131, %v131
    %v211 = vpack.c.bf16 %v132, %v132
    %v212 = vpack.c.bf16 %v133, %v133
    %v213 = vpack.c.bf16 %v134, %v134
    %v214 = vpack.c.bf16 %v135, %v135
    %v215 = vpack.c.bf16 %v136, %v136
    %v216 = vpack.c.bf16 %v137, %v137
    %v217 = vpack.c.bf16 %v138, %v138
    %v218 = vpack.c.bf16 %v139, %v139
    %v219 = vpack.c.bf16 %v140, %v140
    %v220 = vpack.c.bf16 %v141, %v141
    %v221 = vpack.c.bf16 %v142, %v142
    %v222 = vpack.c.bf16 %v143, %v143
    %v223 = vpack.c.bf16 %v144, %v144
    %v224 = vpack.c.bf16 %v145, %v145
    %v225 = vpack.c.bf16 %v146, %v146
    %v226 = vpack.c.bf16 %v147, %v147
    %v227 = vpack.c.bf16 %v148, %v148
    %v228 = vpack.c.bf16 %v149, %v149
    %v229 = vpack.c.bf16 %v150, %v150
    %v230 = vpack.c.bf16 %v151, %v151
    %v231 = vpack.c.bf16 %v152, %v152
    %v232 = vpack.c.bf16 %v153, %v153
    %v233 = vpack.c.bf16 %v154, %v154
    %v234 = vpack.c.bf16 %v155, %v155
    %v235 = vpack.c.bf16 %v156, %v156
    %v236 = vpack.c.bf16 %v157, %v157
    %v237 = vpack.c.bf16 %v158, %v158
    %v238 = vpack.c.bf16 %v159, %v159
    %v239 = vpack.c.bf16 %v160, %v160
    %v240 = vpack.c.bf16 %v161, %v161
    %v241 = vpack.c.bf16 %v162, %v162
    %v242 = vpack.c.bf16 %v163, %v163
    %v243 = vpack.c.bf16 %v164, %v164
    %v244 = vpack.c.bf16 %v165, %v165
    %v245 = vpack.c.bf16 %v166, %v166
    %v246 = vpack.c.bf16 %v167, %v167
    %v247 = vpack.c.bf16 %v168, %v168
    %v248 = vpack.c.bf16 %v169, %v169
    %v249 = vpack.c.bf16 %v170, %v170
    %v250 = vpack.c.bf16 %v171, %v171
    %v251 = vpack.c.bf16 %v172, %v172
    %v252 = vpack.c.bf16 %v173, %v173
    %v253 = vpack.c.bf16 %v174, %v174
    %v254 = vpack.c.bf16 %v175, %v175
    %v255 = vpack.c.bf16 %v176, %v176
    %v256 = vpack.c.bf16 %v177, %v177
    %v257 = vpack.c.bf16 %v178, %v178
    %v258 = vpack.c.bf16 %v179, %v179
    %v259 = vpack.c.bf16 %v180, %v180
    %v260 = vpack.c.bf16 %v181, %v181
    %v261 = vpack.c.bf16 %v182, %v182
    %v262 = vpack.c.bf16 %v183, %v183
    %v263 = vpack.c.bf16 %v184, %v184
    %v264 = vpack.c.bf16 %v185, %v185
    %v265 = vpack.c.bf16 %v186, %v186
    %v266 = vpack.c.bf16 %v187, %v187
    %v267 = vpack.c.bf16 %v188, %v188
    %v268 = vpack.c.bf16 %v189, %v189
    %v269 = vpack.c.bf16 %v190, %v190
    %v270 = vld [vmem:[#allocation5] sm:$0xff]
    %v271 = vld [vmem:[#allocation5 + $0x8] sm:$0xff]
    %v272 = vld [vmem:[#allocation5 + $0x10] sm:$0xff]
    %v273 = vld [vmem:[#allocation5 + $0x18] sm:$0xff]
    %v274 = vld [vmem:[#allocation5 + $0x20] sm:$0xff]
    %v275 = vld [vmem:[#allocation5 + $0x28] sm:$0xff]
    %v276 = vld [vmem:[#allocation5 + $0x30] sm:$0xff]
    %v277 = vld [vmem:[#allocation5 + $0x38] sm:$0xff]
    %v278 = vld [vmem:[#allocation5 + $0x40] sm:$0xff]
    %v279 = vld [vmem:[#allocation5 + $0x48] sm:$0xff]
    %v280 = vld [vmem:[#allocation5 + $0x50] sm:$0xff]
    %v281 = vld [vmem:[#allocation5 + $0x58] sm:$0xff]
    %v282 = vld [vmem:[#allocation5 + $0x60] sm:$0xff]
    %v283 = vld [vmem:[#allocation5 + $0x68] sm:$0xff]
    %v284 = vld [vmem:[#allocation5 + $0x70] sm:$0xff]
    %v285 = vld [vmem:[#allocation5 + $0x78] sm:$0xff]
    %v286 = vld [vmem:[#allocation5 + $0x80] sm:$0xff]
    %v287 = vld [vmem:[#allocation5 + $0x88] sm:$0xff]
    %v288 = vld [vmem:[#allocation5 + $0x90] sm:$0xff]
    %v289 = vld [vmem:[#allocation5 + $0x98] sm:$0xff]
    %v290 = vld [vmem:[#allocation5 + $0xa0] sm:$0xff]
    %v291 = vld [vmem:[#allocation5 + $0xa8] sm:$0xff]
    %v292 = vld [vmem:[#allocation5 + $0xb0] sm:$0xff]
    %v293 = vld [vmem:[#allocation5 + $0xb8] sm:$0xff]
    %v294 = vld [vmem:[#allocation5 + $0xc0] sm:$0xff]
    %v295 = vld [vmem:[#allocation5 + $0xc8] sm:$0xff]
    %v296 = vld [vmem:[#allocation5 + $0xd0] sm:$0xff]
    %v297 = vld [vmem:[#allocation5 + $0xd8] sm:$0xff]
    %v298 = vld [vmem:[#allocation5 + $0xe0] sm:$0xff]
    %v299 = vld [vmem:[#allocation5 + $0xe8] sm:$0xff]
    %v300 = vld [vmem:[#allocation5 + $0xf0] sm:$0xff]
    %v301 = vld [vmem:[#allocation5 + $0xf8] sm:$0xff]
    %v302 = vld [vmem:[#allocation5 + $0x100] sm:$0xff]
    %v303 = vld [vmem:[#allocation5 + $0x108] sm:$0xff]
    %v304 = vld [vmem:[#allocation5 + $0x110] sm:$0xff]
    %v305 = vld [vmem:[#allocation5 + $0x118] sm:$0xff]
    %v306 = vld [vmem:[#allocation5 + $0x120] sm:$0xff]
    %v307 = vld [vmem:[#allocation5 + $0x128] sm:$0xff]
    %v308 = vld [vmem:[#allocation5 + $0x130] sm:$0xff]
    %v309 = vld [vmem:[#allocation5 + $0x138] sm:$0xff]
    %v310 = vld [vmem:[#allocation5 + $0x140] sm:$0xff]
    %v311 = vld [vmem:[#allocation5 + $0x148] sm:$0xff]
    %v312 = vld [vmem:[#allocation5 + $0x150] sm:$0xff]
    %v313 = vld [vmem:[#allocation5 + $0x158] sm:$0xff]
    %v314 = vld [vmem:[#allocation5 + $0x160] sm:$0xff]
    %v315 = vld [vmem:[#allocation5 + $0x168] sm:$0xff]
    %v316 = vld [vmem:[#allocation5 + $0x170] sm:$0xff]
    %v317 = vld [vmem:[#allocation5 + $0x178] sm:$0xff]
    %v318 = vld [vmem:[#allocation5 + $0x180] sm:$0xff]
    %v319 = vld [vmem:[#allocation5 + $0x188] sm:$0xff]
    %v320 = vld [vmem:[#allocation5 + $0x190] sm:$0xff]
    %v321 = vld [vmem:[#allocation5 + $0x198] sm:$0xff]
    %v322 = vld [vmem:[#allocation5 + $0x1a0] sm:$0xff]
    %v323 = vld [vmem:[#allocation5 + $0x1a8] sm:$0xff]
    %v324 = vld [vmem:[#allocation5 + $0x1b0] sm:$0xff]
    %v325 = vld [vmem:[#allocation5 + $0x1b8] sm:$0xff]
    %v326 = vld [vmem:[#allocation5 + $0x1c0] sm:$0xff]
    %v327 = vld [vmem:[#allocation5 + $0x1c8] sm:$0xff]
    %v328 = vld [vmem:[#allocation5 + $0x1d0] sm:$0xff]
    %v329 = vld [vmem:[#allocation5 + $0x1d8] sm:$0xff]
    %v330 = vld [vmem:[#allocation5 + $0x1e0] sm:$0xff]
    %v331 = vld [vmem:[#allocation5 + $0x1e8] sm:$0xff]
    %v332 = vld [vmem:[#allocation5 + $0x1f0] sm:$0xff]
    %v333 = vld [vmem:[#allocation5 + $0x1f8] sm:$0xff]
    %v334 = vld [vmem:[#allocation5 + $0x200] sm:$0xff]
    %v335 = vld [vmem:[#allocation5 + $0x208] sm:$0xff]
    %v336 = vld [vmem:[#allocation5 + $0x210] sm:$0xff]
    %v337 = vld [vmem:[#allocation5 + $0x218] sm:$0xff]
    %v338 = vld [vmem:[#allocation5 + $0x220] sm:$0xff]
    %v339 = vld [vmem:[#allocation5 + $0x228] sm:$0xff]
    %v340 = vld [vmem:[#allocation5 + $0x230] sm:$0xff]
    %v341 = vld [vmem:[#allocation5 + $0x238] sm:$0xff]
    %v342 = vld [vmem:[#allocation5 + $0x240] sm:$0xff]
    %v343 = vld [vmem:[#allocation5 + $0x248] sm:$0xff]
    %v344 = vld [vmem:[#allocation5 + $0x250] sm:$0xff]
    %v345 = vld [vmem:[#allocation5 + $0x258] sm:$0xff]
    %v346 = vld [vmem:[#allocation5 + $0x260] sm:$0xff]
    %v347 = vld [vmem:[#allocation5 + $0x268] sm:$0xff]
    %v348 = vld [vmem:[#allocation5 + $0x270] sm:$0xff]
    %v349 = vld [vmem:[#allocation5 + $0x278] sm:$0xff]
    %v350 = vld [vmem:[#allocation5 + $0x280] sm:$0xff]
    %v351 = vld [vmem:[#allocation5 + $0x288] sm:$0xff]
    %v352 = vld [vmem:[#allocation5 + $0x290] sm:$0xff]
    %v353 = vld [vmem:[#allocation5 + $0x298] sm:$0xff]
    %v354 = vld [vmem:[#allocation5 + $0x2a0] sm:$0xff]
    %v355 = vld [vmem:[#allocation5 + $0x2a8] sm:$0xff]
    %v356 = vld [vmem:[#allocation5 + $0x2b0] sm:$0xff]
    %v357 = vld [vmem:[#allocation5 + $0x2b8] sm:$0xff]
    %v358 = vld [vmem:[#allocation5 + $0x2c0] sm:$0xff]
    %v359 = vld [vmem:[#allocation5 + $0x2c8] sm:$0xff]
    %v360 = vld [vmem:[#allocation5 + $0x2d0] sm:$0xff]
    %v361 = vld [vmem:[#allocation5 + $0x2d8] sm:$0xff]
    %v362 = vld [vmem:[#allocation5 + $0x2e0] sm:$0xff]
    %v363 = vld [vmem:[#allocation5 + $0x2e8] sm:$0xff]
    %v364 = vld [vmem:[#allocation5 + $0x2f0] sm:$0xff]
    %v365 = vld [vmem:[#allocation5 + $0x2f8] sm:$0xff]
    %v366 = vld [vmem:[#allocation5 + $0x300] sm:$0xff]
    %v367 = vld [vmem:[#allocation5 + $0x308] sm:$0xff]
    %v368 = vld [vmem:[#allocation5 + $0x310] sm:$0xff]
    %v369 = vld [vmem:[#allocation5 + $0x318] sm:$0xff]
    %v370 = vld [vmem:[#allocation5 + $0x320] sm:$0xff]
    %v371 = vld [vmem:[#allocation5 + $0x328] sm:$0xff]
    %v372 = vld [vmem:[#allocation5 + $0x330] sm:$0xff]
    %v373 = vld [vmem:[#allocation5 + $0x338] sm:$0xff]
    %v374 = vld [vmem:[#allocation5 + $0x340] sm:$0xff]
    %v375 = vld [vmem:[#allocation5 + $0x348] sm:$0xff]
    %v376 = vld [vmem:[#allocation5 + $0x350] sm:$0xff]
    %v377 = vld [vmem:[#allocation5 + $0x358] sm:$0xff]
    %v378 = vld [vmem:[#allocation5 + $0x360] sm:$0xff]
    %v379 = vld [vmem:[#allocation5 + $0x368] sm:$0xff]
    %v380 = vld [vmem:[#allocation5 + $0x370] sm:$0xff]
    %v381 = vld [vmem:[#allocation5 + $0x378] sm:$0xff]
    %v382 = vld [vmem:[#allocation5 + $0x380] sm:$0xff]
    %v383 = vld [vmem:[#allocation5 + $0x388] sm:$0xff]
    %v384 = vld [vmem:[#allocation5 + $0x390] sm:$0xff]
    %v385 = vld [vmem:[#allocation5 + $0x398] sm:$0xff]
    %v386 = vld [vmem:[#allocation5 + $0x3a0] sm:$0xff]
    %v387 = vld [vmem:[#allocation5 + $0x3a8] sm:$0xff]
    %v388 = vld [vmem:[#allocation5 + $0x3b0] sm:$0xff]
    %v389 = vld [vmem:[#allocation5 + $0x3b8] sm:$0xff]
    %v390 = vld [vmem:[#allocation5 + $0x3c0] sm:$0xff]
    %v391 = vld [vmem:[#allocation5 + $0x3c8] sm:$0xff]
    %v392 = vld [vmem:[#allocation5 + $0x3d0] sm:$0xff]
    %v393 = vld [vmem:[#allocation5 + $0x3d8] sm:$0xff]
    %v394 = vld [vmem:[#allocation5 + $0x3e0] sm:$0xff]
    %v395 = vld [vmem:[#allocation5 + $0x3e8] sm:$0xff]
    %v396 = vld [vmem:[#allocation5 + $0x3f0] sm:$0xff]
    %v397 = vld [vmem:[#allocation5 + $0x3f8] sm:$0xff]
    %v398 = vld [vmem:[#allocation5 + $0x400] sm:$0xff]
    %v399 = vld [vmem:[#allocation5 + $0x408] sm:$0xff]
    %v400 = vld [vmem:[#allocation5 + $0x410] sm:$0xff]
    %v401 = vld [vmem:[#allocation5 + $0x418] sm:$0xff]
    %v402 = vld [vmem:[#allocation5 + $0x420] sm:$0xff]
    %v403 = vld [vmem:[#allocation5 + $0x428] sm:$0xff]
    %v404 = vld [vmem:[#allocation5 + $0x430] sm:$0xff]
    %v405 = vld [vmem:[#allocation5 + $0x438] sm:$0xff]
    %v406 = vld [vmem:[#allocation5 + $0x440] sm:$0xff]
    %v407 = vld [vmem:[#allocation5 + $0x448] sm:$0xff]
    %v408 = vld [vmem:[#allocation5 + $0x450] sm:$0xff]
    %v409 = vld [vmem:[#allocation5 + $0x458] sm:$0xff]
    %v410 = vld [vmem:[#allocation5 + $0x460] sm:$0xff]
    %v411 = vld [vmem:[#allocation5 + $0x468] sm:$0xff]
    %v412 = vld [vmem:[#allocation5 + $0x470] sm:$0xff]
    %v413 = vld [vmem:[#allocation5 + $0x478] sm:$0xff]
    %v414 = vld [vmem:[#allocation5 + $0x480] sm:$0xff]
    %v415 = vld [vmem:[#allocation5 + $0x488] sm:$0xff]
    %v416 = vld [vmem:[#allocation5 + $0x490] sm:$0xff]
    %v417 = vld [vmem:[#allocation5 + $0x498] sm:$0xff]
    %v418 = vld [vmem:[#allocation5 + $0x4a0] sm:$0xff]
    %v419 = vld [vmem:[#allocation5 + $0x4a8] sm:$0xff]
    %v420 = vld [vmem:[#allocation5 + $0x4b0] sm:$0xff]
    %v421 = vld [vmem:[#allocation5 + $0x4b8] sm:$0xff]
    %v422 = vld [vmem:[#allocation5 + $0x4c0] sm:$0xff]
    %v423 = vld [vmem:[#allocation5 + $0x4c8] sm:$0xff]
    %v424 = vld [vmem:[#allocation5 + $0x4d0] sm:$0xff]
    %v425 = vld [vmem:[#allocation5 + $0x4d8] sm:$0xff]
    %v426 = vld [vmem:[#allocation5 + $0x4e0] sm:$0xff]
    %v427 = vld [vmem:[#allocation5 + $0x4e8] sm:$0xff]
    %v428 = vld [vmem:[#allocation5 + $0x4f0] sm:$0xff]
    %v429 = vld [vmem:[#allocation5 + $0x4f8] sm:$0xff]
    %v430 = vld [vmem:[#allocation5 + $0x500] sm:$0xff]
    %v431 = vld [vmem:[#allocation5 + $0x508] sm:$0xff]
    %v432 = vld [vmem:[#allocation5 + $0x510] sm:$0xff]
    %v433 = vld [vmem:[#allocation5 + $0x518] sm:$0xff]
    %v434 = vld [vmem:[#allocation5 + $0x520] sm:$0xff]
    %v435 = vld [vmem:[#allocation5 + $0x528] sm:$0xff]
    %v436 = vld [vmem:[#allocation5 + $0x530] sm:$0xff]
    %v437 = vld [vmem:[#allocation5 + $0x538] sm:$0xff]
    %v438 = vld [vmem:[#allocation5 + $0x540] sm:$0xff]
    %v439 = vld [vmem:[#allocation5 + $0x548] sm:$0xff]
    %v440 = vld [vmem:[#allocation5 + $0x550] sm:$0xff]
    %v441 = vld [vmem:[#allocation5 + $0x558] sm:$0xff]
    %v442 = vld [vmem:[#allocation5 + $0x560] sm:$0xff]
    %v443 = vld [vmem:[#allocation5 + $0x568] sm:$0xff]
    %v444 = vld [vmem:[#allocation5 + $0x570] sm:$0xff]
    %v445 = vld [vmem:[#allocation5 + $0x578] sm:$0xff]
    %v446 = vld [vmem:[#allocation5 + $0x580] sm:$0xff]
    %v447 = vld [vmem:[#allocation5 + $0x588] sm:$0xff]
    %v448 = vld [vmem:[#allocation5 + $0x590] sm:$0xff]
    %v449 = vld [vmem:[#allocation5 + $0x598] sm:$0xff]
    %v450 = vld [vmem:[#allocation5 + $0x5a0] sm:$0xff]
    %v451 = vld [vmem:[#allocation5 + $0x5a8] sm:$0xff]
    %v452 = vld [vmem:[#allocation5 + $0x5b0] sm:$0xff]
    %v453 = vld [vmem:[#allocation5 + $0x5b8] sm:$0xff]
    %v454 = vld [vmem:[#allocation5 + $0x5c0] sm:$0xff]
    %v455 = vld [vmem:[#allocation5 + $0x5c8] sm:$0xff]
    %v456 = vld [vmem:[#allocation5 + $0x5d0] sm:$0xff]
    %v457 = vld [vmem:[#allocation5 + $0x5d8] sm:$0xff]
    %v458 = vld [vmem:[#allocation5 + $0x5e0] sm:$0xff]
    %v459 = vld [vmem:[#allocation5 + $0x5e8] sm:$0xff]
    %v460 = vld [vmem:[#allocation5 + $0x5f0] sm:$0xff]
    %v461 = vld [vmem:[#allocation5 + $0x5f8] sm:$0xff]
    %v462 = vld [vmem:[#allocation5 + $0x600] sm:$0xff]
    %v463 = vld [vmem:[#allocation5 + $0x608] sm:$0xff]
    %v464 = vld [vmem:[#allocation5 + $0x610] sm:$0xff]
    %v465 = vld [vmem:[#allocation5 + $0x618] sm:$0xff]
    %v466 = vld [vmem:[#allocation5 + $0x620] sm:$0xff]
    %v467 = vld [vmem:[#allocation5 + $0x628] sm:$0xff]
    %v468 = vld [vmem:[#allocation5 + $0x630] sm:$0xff]
    %v469 = vld [vmem:[#allocation5 + $0x638] sm:$0xff]
    %v470 = vld [vmem:[#allocation5 + $0x640] sm:$0xff]
    %v471 = vld [vmem:[#allocation5 + $0x648] sm:$0xff]
    %v472 = vld [vmem:[#allocation5 + $0x650] sm:$0xff]
    %v473 = vld [vmem:[#allocation5 + $0x658] sm:$0xff]
    %v474 = vld [vmem:[#allocation5 + $0x660] sm:$0xff]
    %v475 = vld [vmem:[#allocation5 + $0x668] sm:$0xff]
    %v476 = vld [vmem:[#allocation5 + $0x670] sm:$0xff]
    %v477 = vld [vmem:[#allocation5 + $0x678] sm:$0xff]
    %v478 = vld [vmem:[#allocation5 + $0x680] sm:$0xff]
    %v479 = vld [vmem:[#allocation5 + $0x688] sm:$0xff]
    %v480 = vld [vmem:[#allocation5 + $0x690] sm:$0xff]
    %v481 = vld [vmem:[#allocation5 + $0x698] sm:$0xff]
    %v482 = vld [vmem:[#allocation5 + $0x6a0] sm:$0xff]
    %v483 = vld [vmem:[#allocation5 + $0x6a8] sm:$0xff]
    %v484 = vld [vmem:[#allocation5 + $0x6b0] sm:$0xff]
    %v485 = vld [vmem:[#allocation5 + $0x6b8] sm:$0xff]
    %v486 = vld [vmem:[#allocation5 + $0x6c0] sm:$0xff]
    %v487 = vld [vmem:[#allocation5 + $0x6c8] sm:$0xff]
    %v488 = vld [vmem:[#allocation5 + $0x6d0] sm:$0xff]
    %v489 = vld [vmem:[#allocation5 + $0x6d8] sm:$0xff]
    %v490 = vld [vmem:[#allocation5 + $0x6e0] sm:$0xff]
    %v491 = vld [vmem:[#allocation5 + $0x6e8] sm:$0xff]
    %v492 = vld [vmem:[#allocation5 + $0x6f0] sm:$0xff]
    %v493 = vld [vmem:[#allocation5 + $0x6f8] sm:$0xff]
    %v494 = vld [vmem:[#allocation5 + $0x700] sm:$0xff]
    %v495 = vld [vmem:[#allocation5 + $0x708] sm:$0xff]
    %v496 = vld [vmem:[#allocation5 + $0x710] sm:$0xff]
    %v497 = vld [vmem:[#allocation5 + $0x718] sm:$0xff]
    %v498 = vld [vmem:[#allocation5 + $0x720] sm:$0xff]
    %v499 = vld [vmem:[#allocation5 + $0x728] sm:$0xff]
    %v500 = vld [vmem:[#allocation5 + $0x730] sm:$0xff]
    %v501 = vld [vmem:[#allocation5 + $0x738] sm:$0xff]
    %v502 = vld [vmem:[#allocation5 + $0x740] sm:$0xff]
    %v503 = vld [vmem:[#allocation5 + $0x748] sm:$0xff]
    %v504 = vld [vmem:[#allocation5 + $0x750] sm:$0xff]
    %v505 = vld [vmem:[#allocation5 + $0x758] sm:$0xff]
    %v506 = vld [vmem:[#allocation5 + $0x760] sm:$0xff]
    %v507 = vld [vmem:[#allocation5 + $0x768] sm:$0xff]
    %v508 = vld [vmem:[#allocation5 + $0x770] sm:$0xff]
    %v509 = vld [vmem:[#allocation5 + $0x778] sm:$0xff]
    %v510 = vld [vmem:[#allocation5 + $0x780] sm:$0xff]
    %v511 = vld [vmem:[#allocation5 + $0x788] sm:$0xff]
    %v512 = vld [vmem:[#allocation5 + $0x790] sm:$0xff]
    %v513 = vld [vmem:[#allocation5 + $0x798] sm:$0xff]
    %v514 = vld [vmem:[#allocation5 + $0x7a0] sm:$0xff]
    %v515 = vld [vmem:[#allocation5 + $0x7a8] sm:$0xff]
    %v516 = vld [vmem:[#allocation5 + $0x7b0] sm:$0xff]
    %v517 = vld [vmem:[#allocation5 + $0x7b8] sm:$0xff]
    %v518 = vld [vmem:[#allocation5 + $0x7c0] sm:$0xff]
    %v519 = vld [vmem:[#allocation5 + $0x7c8] sm:$0xff]
    %v520 = vld [vmem:[#allocation5 + $0x7d0] sm:$0xff]
    %v521 = vld [vmem:[#allocation5 + $0x7d8] sm:$0xff]
    %v522 = vld [vmem:[#allocation5 + $0x7e0] sm:$0xff]
    %v523 = vld [vmem:[#allocation5 + $0x7e8] sm:$0xff]
    %v524 = vld [vmem:[#allocation5 + $0x7f0] sm:$0xff]
    %v525 = vld [vmem:[#allocation5 + $0x7f8] sm:$0xff]
    %v526 = vld [vmem:[#allocation5 + $0x800] sm:$0xff]
    %v527 = vld [vmem:[#allocation5 + $0x808] sm:$0xff]
    %v528 = vld [vmem:[#allocation5 + $0x810] sm:$0xff]
    %v529 = vld [vmem:[#allocation5 + $0x818] sm:$0xff]
    %v530 = vld [vmem:[#allocation5 + $0x820] sm:$0xff]
    %v531 = vld [vmem:[#allocation5 + $0x828] sm:$0xff]
    %v532 = vld [vmem:[#allocation5 + $0x830] sm:$0xff]
    %v533 = vld [vmem:[#allocation5 + $0x838] sm:$0xff]
    %v534 = vld [vmem:[#allocation5 + $0x840] sm:$0xff]
    %v535 = vld [vmem:[#allocation5 + $0x848] sm:$0xff]
    %v536 = vld [vmem:[#allocation5 + $0x850] sm:$0xff]
    %v537 = vld [vmem:[#allocation5 + $0x858] sm:$0xff]
    %v538 = vld [vmem:[#allocation5 + $0x860] sm:$0xff]
    %v539 = vld [vmem:[#allocation5 + $0x868] sm:$0xff]
    %v540 = vld [vmem:[#allocation5 + $0x870] sm:$0xff]
    %v541 = vld [vmem:[#allocation5 + $0x878] sm:$0xff]
    %v542 = vld [vmem:[#allocation5 + $0x880] sm:$0xff]
    %v543 = vld [vmem:[#allocation5 + $0x888] sm:$0xff]
    %v544 = vld [vmem:[#allocation5 + $0x890] sm:$0xff]
    %v545 = vld [vmem:[#allocation5 + $0x898] sm:$0xff]
    %v546 = vld [vmem:[#allocation5 + $0x8a0] sm:$0xff]
    %v547 = vld [vmem:[#allocation5 + $0x8a8] sm:$0xff]
    %v548 = vld [vmem:[#allocation5 + $0x8b0] sm:$0xff]
    %v549 = vld [vmem:[#allocation5 + $0x8b8] sm:$0xff]
    %v550 = vld [vmem:[#allocation5 + $0x8c0] sm:$0xff]
    %v551 = vld [vmem:[#allocation5 + $0x8c8] sm:$0xff]
    %v552 = vld [vmem:[#allocation5 + $0x8d0] sm:$0xff]
    %v553 = vld [vmem:[#allocation5 + $0x8d8] sm:$0xff]
    %v554 = vld [vmem:[#allocation5 + $0x8e0] sm:$0xff]
    %v555 = vld [vmem:[#allocation5 + $0x8e8] sm:$0xff]
    %v556 = vld [vmem:[#allocation5 + $0x8f0] sm:$0xff]
    %v557 = vld [vmem:[#allocation5 + $0x8f8] sm:$0xff]
    %v558 = vld [vmem:[#allocation5 + $0x900] sm:$0xff]
    %v559 = vld [vmem:[#allocation5 + $0x908] sm:$0xff]
    %v560 = vld [vmem:[#allocation5 + $0x910] sm:$0xff]
    %v561 = vld [vmem:[#allocation5 + $0x918] sm:$0xff]
    %v562 = vld [vmem:[#allocation5 + $0x920] sm:$0xff]
    %v563 = vld [vmem:[#allocation5 + $0x928] sm:$0xff]
    %v564 = vld [vmem:[#allocation5 + $0x930] sm:$0xff]
    %v565 = vld [vmem:[#allocation5 + $0x938] sm:$0xff]
    %v566 = vld [vmem:[#allocation5 + $0x940] sm:$0xff]
    %v567 = vld [vmem:[#allocation5 + $0x948] sm:$0xff]
    %v568 = vld [vmem:[#allocation5 + $0x950] sm:$0xff]
    %v569 = vld [vmem:[#allocation5 + $0x958] sm:$0xff]
    %v570 = vld [vmem:[#allocation5 + $0x960] sm:$0xff]
    %v571 = vld [vmem:[#allocation5 + $0x968] sm:$0xff]
    %v572 = vld [vmem:[#allocation5 + $0x970] sm:$0xff]
    %v573 = vld [vmem:[#allocation5 + $0x978] sm:$0xff]
    %v574 = vld [vmem:[#allocation5 + $0x980] sm:$0xff]
    %v575 = vld [vmem:[#allocation5 + $0x988] sm:$0xff]
    %v576 = vld [vmem:[#allocation5 + $0x990] sm:$0xff]
    %v577 = vld [vmem:[#allocation5 + $0x998] sm:$0xff]
    %v578 = vld [vmem:[#allocation5 + $0x9a0] sm:$0xff]
    %v579 = vld [vmem:[#allocation5 + $0x9a8] sm:$0xff]
    %v580 = vld [vmem:[#allocation5 + $0x9b0] sm:$0xff]
    %v581 = vld [vmem:[#allocation5 + $0x9b8] sm:$0xff]
    %v582 = vld [vmem:[#allocation5 + $0x9c0] sm:$0xff]
    %v583 = vld [vmem:[#allocation5 + $0x9c8] sm:$0xff]
    %v584 = vld [vmem:[#allocation5 + $0x9d0] sm:$0xff]
    %v585 = vld [vmem:[#allocation5 + $0x9d8] sm:$0xff]
    %v586 = vpack.c.bf16 %v349, %v270
    %v587 = vpack.c.bf16 %v350, %v271
    %v588 = vpack.c.bf16 %v351, %v272
    %v589 = vpack.c.bf16 %v352, %v273
    %v590 = vpack.c.bf16 %v353, %v274
    %v591 = vpack.c.bf16 %v354, %v275
    %v592 = vpack.c.bf16 %v355, %v276
    %v593 = vpack.c.bf16 %v356, %v277
    %v594 = vpack.c.bf16 %v357, %v278
    %v595 = vpack.c.bf16 %v358, %v279
    %v596 = vpack.c.bf16 %v359, %v280
    %v597 = vpack.c.bf16 %v360, %v281
    %v598 = vpack.c.bf16 %v361, %v282
    %v599 = vpack.c.bf16 %v362, %v283
    %v600 = vpack.c.bf16 %v363, %v284
    %v601 = vpack.c.bf16 %v364, %v285
    %v602 = vpack.c.bf16 %v365, %v286
    %v603 = vpack.c.bf16 %v366, %v287
    %v604 = vpack.c.bf16 %v367, %v288
    %v605 = vpack.c.bf16 %v368, %v289
    %v606 = vpack.c.bf16 %v369, %v290
    %v607 = vpack.c.bf16 %v370, %v291
    %v608 = vpack.c.bf16 %v371, %v292
    %v609 = vpack.c.bf16 %v372, %v293
    %v610 = vpack.c.bf16 %v373, %v294
    %v611 = vpack.c.bf16 %v374, %v295
    %v612 = vpack.c.bf16 %v375, %v296
    %v613 = vpack.c.bf16 %v376, %v297
    %v614 = vpack.c.bf16 %v377, %v298
    %v615 = vpack.c.bf16 %v378, %v299
    %v616 = vpack.c.bf16 %v379, %v300
    %v617 = vpack.c.bf16 %v380, %v301
    %v618 = vpack.c.bf16 %v381, %v302
    %v619 = vpack.c.bf16 %v382, %v303
    %v620 = vpack.c.bf16 %v383, %v304
    %v621 = vpack.c.bf16 %v384, %v305
    %v622 = vpack.c.bf16 %v385, %v306
    %v623 = vpack.c.bf16 %v386, %v307
    %v624 = vpack.c.bf16 %v387, %v308
    %v625 = vpack.c.bf16 %v388, %v309
    %v626 = vpack.c.bf16 %v389, %v310
    %v627 = vpack.c.bf16 %v390, %v311
    %v628 = vpack.c.bf16 %v391, %v312
    %v629 = vpack.c.bf16 %v392, %v313
    %v630 = vpack.c.bf16 %v393, %v314
    %v631 = vpack.c.bf16 %v394, %v315
    %v632 = vpack.c.bf16 %v395, %v316
    %v633 = vpack.c.bf16 %v396, %v317
    %v634 = vpack.c.bf16 %v397, %v318
    %v635 = vpack.c.bf16 %v398, %v319
    %v636 = vpack.c.bf16 %v399, %v320
    %v637 = vpack.c.bf16 %v400, %v321
    %v638 = vpack.c.bf16 %v401, %v322
    %v639 = vpack.c.bf16 %v402, %v323
    %v640 = vpack.c.bf16 %v403, %v324
    %v641 = vpack.c.bf16 %v404, %v325
    %v642 = vpack.c.bf16 %v405, %v326
    %v643 = vpack.c.bf16 %v406, %v327
    %v644 = vpack.c.bf16 %v407, %v328
    %v645 = vpack.c.bf16 %v408, %v329
    %v646 = vpack.c.bf16 %v409, %v330
    %v647 = vpack.c.bf16 %v410, %v331
    %v648 = vpack.c.bf16 %v411, %v332
    %v649 = vpack.c.bf16 %v412, %v333
    %v650 = vpack.c.bf16 %v413, %v334
    %v651 = vpack.c.bf16 %v414, %v335
    %v652 = vpack.c.bf16 %v415, %v336
    %v653 = vpack.c.bf16 %v416, %v337
    %v654 = vpack.c.bf16 %v417, %v338
    %v655 = vpack.c.bf16 %v418, %v339
    %v656 = vpack.c.bf16 %v419, %v340
    %v657 = vpack.c.bf16 %v420, %v341
    %v658 = vpack.c.bf16 %v421, %v342
    %v659 = vpack.c.bf16 %v422, %v343
    %v660 = vpack.c.bf16 %v423, %v344
    %v661 = vpack.c.bf16 %v424, %v345
    %v662 = vpack.c.bf16 %v425, %v346
    %v663 = vpack.c.bf16 %v426, %v347
    %v664 = vpack.c.bf16 %v427, %v348
    %v665 = vpack.c.bf16 %v507, %v428
    %v666 = vpack.c.bf16 %v508, %v429
    %v667 = vpack.c.bf16 %v509, %v430
    %v668 = vpack.c.bf16 %v510, %v431
    %v669 = vpack.c.bf16 %v511, %v432
    %v670 = vpack.c.bf16 %v512, %v433
    %v671 = vpack.c.bf16 %v513, %v434
    %v672 = vpack.c.bf16 %v514, %v435
    %v673 = vpack.c.bf16 %v515, %v436
    %v674 = vpack.c.bf16 %v516, %v437
    %v675 = vpack.c.bf16 %v517, %v438
    %v676 = vpack.c.bf16 %v518, %v439
    %v677 = vpack.c.bf16 %v519, %v440
    %v678 = vpack.c.bf16 %v520, %v441
    %v679 = vpack.c.bf16 %v521, %v442
    %v680 = vpack.c.bf16 %v522, %v443
    %v681 = vpack.c.bf16 %v523, %v444
    %v682 = vpack.c.bf16 %v524, %v445
    %v683 = vpack.c.bf16 %v525, %v446
    %v684 = vpack.c.bf16 %v526, %v447
    %v685 = vpack.c.bf16 %v527, %v448
    %v686 = vpack.c.bf16 %v528, %v449
    %v687 = vpack.c.bf16 %v529, %v450
    %v688 = vpack.c.bf16 %v530, %v451
    %v689 = vpack.c.bf16 %v531, %v452
    %v690 = vpack.c.bf16 %v532, %v453
    %v691 = vpack.c.bf16 %v533, %v454
    %v692 = vpack.c.bf16 %v534, %v455
    %v693 = vpack.c.bf16 %v535, %v456
    %v694 = vpack.c.bf16 %v536, %v457
    %v695 = vpack.c.bf16 %v537, %v458
    %v696 = vpack.c.bf16 %v538, %v459
    %v697 = vpack.c.bf16 %v539, %v460
    %v698 = vpack.c.bf16 %v540, %v461
    %v699 = vpack.c.bf16 %v541, %v462
    %v700 = vpack.c.bf16 %v542, %v463
    %v701 = vpack.c.bf16 %v543, %v464
    %v702 = vpack.c.bf16 %v544, %v465
    %v703 = vpack.c.bf16 %v545, %v466
    %v704 = vpack.c.bf16 %v546, %v467
    %v705 = vpack.c.bf16 %v547, %v468
    %v706 = vpack.c.bf16 %v548, %v469
    %v707 = vpack.c.bf16 %v549, %v470
    %v708 = vpack.c.bf16 %v550, %v471
    %v709 = vpack.c.bf16 %v551, %v472
    %v710 = vpack.c.bf16 %v552, %v473
    %v711 = vpack.c.bf16 %v553, %v474
    %v712 = vpack.c.bf16 %v554, %v475
    %v713 = vpack.c.bf16 %v555, %v476
    %v714 = vpack.c.bf16 %v556, %v477
    %v715 = vpack.c.bf16 %v557, %v478
    %v716 = vpack.c.bf16 %v558, %v479
    %v717 = vpack.c.bf16 %v559, %v480
    %v718 = vpack.c.bf16 %v560, %v481
    %v719 = vpack.c.bf16 %v561, %v482
    %v720 = vpack.c.bf16 %v562, %v483
    %v721 = vpack.c.bf16 %v563, %v484
    %v722 = vpack.c.bf16 %v564, %v485
    %v723 = vpack.c.bf16 %v565, %v486
    %v724 = vpack.c.bf16 %v566, %v487
    %v725 = vpack.c.bf16 %v567, %v488
    %v726 = vpack.c.bf16 %v568, %v489
    %v727 = vpack.c.bf16 %v569, %v490
    %v728 = vpack.c.bf16 %v570, %v491
    %v729 = vpack.c.bf16 %v571, %v492
    %v730 = vpack.c.bf16 %v572, %v493
    %v731 = vpack.c.bf16 %v573, %v494
    %v732 = vpack.c.bf16 %v574, %v495
    %v733 = vpack.c.bf16 %v575, %v496
    %v734 = vpack.c.bf16 %v576, %v497
    %v735 = vpack.c.bf16 %v577, %v498
    %v736 = vpack.c.bf16 %v578, %v499
    %v737 = vpack.c.bf16 %v579, %v500
    %v738 = vpack.c.bf16 %v580, %v501
    %v739 = vpack.c.bf16 %v581, %v502
    %v740 = vpack.c.bf16 %v582, %v503
    %v741 = vpack.c.bf16 %v583, %v504
    %v742 = vpack.c.bf16 %v584, %v505
    %v743 = vpack.c.bf16 %v585, %v506
    %v744 = vld [vmem:[#allocation7] sm:$0x1]
    %v746 = vperm.slane %v744, 0
    %vm748 = vcmask 130048
    %v750 = vsel %vm748, %v269, 0
    %v753 = vsel %vm748, %v664, 0
    %v756 = vsel %vm748, %v743, 0
    %758 = vmatpush.bf16.xpose.msra.mxu0 0
    %759 = vmatpush.bf16.xpose.msra.mxu0 0
    %760 = vmatpush.bf16.xpose.msra.mxu0 0
    %761 = vmatpush.bf16.xpose.msra.mxu0 0
    %762 = vmatpush.bf16.xpose.msra.mxu0 0
    %763 = vmatpush.bf16.xpose.msra.mxu0 0
    %764 = vmatpush.bf16.xpose.msra.mxu0 %v665
    %765 = vmatpush.bf16.xpose.msra.mxu0 %v586
    %766 = vmatmul.bf16.gmra.mxu0 %v191
    %v767 = vpop.f32.mrf.mxu0
    %v768 = vadd.f32 %v746, %v767
    %v769 = vpop.f32.mrf.mxu0
    %770 = vdwg.mxu0
    %771 = vmatpush.bf16.xpose.msra.mxu0 0
    %772 = vmatpush.bf16.xpose.msra.mxu0 0
    %773 = vmatpush.bf16.xpose.msra.mxu0 0
    %774 = vmatpush.bf16.xpose.msra.mxu0 0
    %775 = vmatpush.bf16.xpose.msra.mxu0 0
    %776 = vmatpush.bf16.xpose.msra.mxu0 0
    %777 = vmatpush.bf16.xpose.msra.mxu0 %v666
    %778 = vmatpush.bf16.xpose.msra.mxu0 %v587
    %779 = vmatmul.bf16.gmra.mxu0 %v192
    %v780 = vpop.f32.mrf.mxu0
    %v781 = vadd.f32 %v768, %v780
    %v782 = vpop.f32.mrf.mxu0
    %783 = vdwg.mxu0
    %784 = vmatpush.bf16.xpose.msra.mxu0 0
    %785 = vmatpush.bf16.xpose.msra.mxu0 0
    %786 = vmatpush.bf16.xpose.msra.mxu0 0
    %787 = vmatpush.bf16.xpose.msra.mxu0 0
    %788 = vmatpush.bf16.xpose.msra.mxu0 0
    %789 = vmatpush.bf16.xpose.msra.mxu0 0
    %790 = vmatpush.bf16.xpose.msra.mxu0 %v667
    %791 = vmatpush.bf16.xpose.msra.mxu0 %v588
    %792 = vmatmul.bf16.gmra.mxu0 %v193
    %v793 = vpop.f32.mrf.mxu0
    %v794 = vadd.f32 %v781, %v793
    %v795 = vpop.f32.mrf.mxu0
    %796 = vdwg.mxu0
    %797 = vmatpush.bf16.xpose.msra.mxu0 0
    %798 = vmatpush.bf16.xpose.msra.mxu0 0
    %799 = vmatpush.bf16.xpose.msra.mxu0 0
    %800 = vmatpush.bf16.xpose.msra.mxu0 0
    %801 = vmatpush.bf16.xpose.msra.mxu0 0
    %802 = vmatpush.bf16.xpose.msra.mxu0 0
    %803 = vmatpush.bf16.xpose.msra.mxu0 %v668
    %804 = vmatpush.bf16.xpose.msra.mxu0 %v589
    %805 = vmatmul.bf16.gmra.mxu0 %v194
    %v806 = vpop.f32.mrf.mxu0
    %v807 = vadd.f32 %v794, %v806
    %v808 = vpop.f32.mrf.mxu0
    %809 = vdwg.mxu0
    %810 = vmatpush.bf16.xpose.msra.mxu0 0
    %811 = vmatpush.bf16.xpose.msra.mxu0 0
    %812 = vmatpush.bf16.xpose.msra.mxu0 0
    %813 = vmatpush.bf16.xpose.msra.mxu0 0
    %814 = vmatpush.bf16.xpose.msra.mxu0 0
    %815 = vmatpush.bf16.xpose.msra.mxu0 0
    %816 = vmatpush.bf16.xpose.msra.mxu0 %v669
    %817 = vmatpush.bf16.xpose.msra.mxu0 %v590
    %818 = vmatmul.bf16.gmra.mxu0 %v195
    %v819 = vpop.f32.mrf.mxu0
    %v820 = vadd.f32 %v807, %v819
    %v821 = vpop.f32.mrf.mxu0
    %822 = vdwg.mxu0
    %823 = vmatpush.bf16.xpose.msra.mxu0 0
    %824 = vmatpush.bf16.xpose.msra.mxu0 0
    %825 = vmatpush.bf16.xpose.msra.mxu0 0
    %826 = vmatpush.bf16.xpose.msra.mxu0 0
    %827 = vmatpush.bf16.xpose.msra.mxu0 0
    %828 = vmatpush.bf16.xpose.msra.mxu0 0
    %829 = vmatpush.bf16.xpose.msra.mxu0 %v670
    %830 = vmatpush.bf16.xpose.msra.mxu0 %v591
    %831 = vmatmul.bf16.gmra.mxu0 %v196
    %v832 = vpop.f32.mrf.mxu0
    %v833 = vadd.f32 %v820, %v832
    %v834 = vpop.f32.mrf.mxu0
    %835 = vdwg.mxu0
    %836 = vmatpush.bf16.xpose.msra.mxu0 0
    %837 = vmatpush.bf16.xpose.msra.mxu0 0
    %838 = vmatpush.bf16.xpose.msra.mxu0 0
    %839 = vmatpush.bf16.xpose.msra.mxu0 0
    %840 = vmatpush.bf16.xpose.msra.mxu0 0
    %841 = vmatpush.bf16.xpose.msra.mxu0 0
    %842 = vmatpush.bf16.xpose.msra.mxu0 %v671
    %843 = vmatpush.bf16.xpose.msra.mxu0 %v592
    %844 = vmatmul.bf16.gmra.mxu0 %v197
    %v845 = vpop.f32.mrf.mxu0
    %v846 = vadd.f32 %v833, %v845
    %v847 = vpop.f32.mrf.mxu0
    %848 = vdwg.mxu0
    %849 = vmatpush.bf16.xpose.msra.mxu0 0
    %850 = vmatpush.bf16.xpose.msra.mxu0 0
    %851 = vmatpush.bf16.xpose.msra.mxu0 0
    %852 = vmatpush.bf16.xpose.msra.mxu0 0
    %853 = vmatpush.bf16.xpose.msra.mxu0 0
    %854 = vmatpush.bf16.xpose.msra.mxu0 0
    %855 = vmatpush.bf16.xpose.msra.mxu0 %v672
    %856 = vmatpush.bf16.xpose.msra.mxu0 %v593
    %857 = vmatmul.bf16.gmra.mxu0 %v198
    %v858 = vpop.f32.mrf.mxu0
    %v859 = vadd.f32 %v846, %v858
    %v860 = vpop.f32.mrf.mxu0
    %861 = vdwg.mxu0
    %862 = vmatpush.bf16.xpose.msra.mxu0 0
    %863 = vmatpush.bf16.xpose.msra.mxu0 0
    %864 = vmatpush.bf16.xpose.msra.mxu0 0
    %865 = vmatpush.bf16.xpose.msra.mxu0 0
    %866 = vmatpush.bf16.xpose.msra.mxu0 0
    %867 = vmatpush.bf16.xpose.msra.mxu0 0
    %868 = vmatpush.bf16.xpose.msra.mxu0 %v673
    %869 = vmatpush.bf16.xpose.msra.mxu0 %v594
    %870 = vmatmul.bf16.gmra.mxu0 %v199
    %v871 = vpop.f32.mrf.mxu0
    %v872 = vadd.f32 %v859, %v871
    %v873 = vpop.f32.mrf.mxu0
    %874 = vdwg.mxu0
    %875 = vmatpush.bf16.xpose.msra.mxu0 0
    %876 = vmatpush.bf16.xpose.msra.mxu0 0
    %877 = vmatpush.bf16.xpose.msra.mxu0 0
    %878 = vmatpush.bf16.xpose.msra.mxu0 0
    %879 = vmatpush.bf16.xpose.msra.mxu0 0
    %880 = vmatpush.bf16.xpose.msra.mxu0 0
    %881 = vmatpush.bf16.xpose.msra.mxu0 %v674
    %882 = vmatpush.bf16.xpose.msra.mxu0 %v595
    %883 = vmatmul.bf16.gmra.mxu0 %v200
    %v884 = vpop.f32.mrf.mxu0
    %v885 = vadd.f32 %v872, %v884
    %v886 = vpop.f32.mrf.mxu0
    %887 = vdwg.mxu0
    %888 = vmatpush.bf16.xpose.msra.mxu0 0
    %889 = vmatpush.bf16.xpose.msra.mxu0 0
    %890 = vmatpush.bf16.xpose.msra.mxu0 0
    %891 = vmatpush.bf16.xpose.msra.mxu0 0
    %892 = vmatpush.bf16.xpose.msra.mxu0 0
    %893 = vmatpush.bf16.xpose.msra.mxu0 0
    %894 = vmatpush.bf16.xpose.msra.mxu0 %v675
    %895 = vmatpush.bf16.xpose.msra.mxu0 %v596
    %896 = vmatmul.bf16.gmra.mxu0 %v201
    %v897 = vpop.f32.mrf.mxu0
    %v898 = vadd.f32 %v885, %v897
    %v899 = vpop.f32.mrf.mxu0
    %900 = vdwg.mxu0
    %901 = vmatpush.bf16.xpose.msra.mxu0 0
    %902 = vmatpush.bf16.xpose.msra.mxu0 0
    %903 = vmatpush.bf16.xpose.msra.mxu0 0
    %904 = vmatpush.bf16.xpose.msra.mxu0 0
    %905 = vmatpush.bf16.xpose.msra.mxu0 0
    %906 = vmatpush.bf16.xpose.msra.mxu0 0
    %907 = vmatpush.bf16.xpose.msra.mxu0 %v676
    %908 = vmatpush.bf16.xpose.msra.mxu0 %v597
    %909 = vmatmul.bf16.gmra.mxu0 %v202
    %v910 = vpop.f32.mrf.mxu0
    %v911 = vadd.f32 %v898, %v910
    %v912 = vpop.f32.mrf.mxu0
    %913 = vdwg.mxu0
    %914 = vmatpush.bf16.xpose.msra.mxu0 0
    %915 = vmatpush.bf16.xpose.msra.mxu0 0
    %916 = vmatpush.bf16.xpose.msra.mxu0 0
    %917 = vmatpush.bf16.xpose.msra.mxu0 0
    %918 = vmatpush.bf16.xpose.msra.mxu0 0
    %919 = vmatpush.bf16.xpose.msra.mxu0 0
    %920 = vmatpush.bf16.xpose.msra.mxu0 %v677
    %921 = vmatpush.bf16.xpose.msra.mxu0 %v598
    %922 = vmatmul.bf16.gmra.mxu0 %v203
    %v923 = vpop.f32.mrf.mxu0
    %v924 = vadd.f32 %v911, %v923
    %v925 = vpop.f32.mrf.mxu0
    %926 = vdwg.mxu0
    %927 = vmatpush.bf16.xpose.msra.mxu0 0
    %928 = vmatpush.bf16.xpose.msra.mxu0 0
    %929 = vmatpush.bf16.xpose.msra.mxu0 0
    %930 = vmatpush.bf16.xpose.msra.mxu0 0
    %931 = vmatpush.bf16.xpose.msra.mxu0 0
    %932 = vmatpush.bf16.xpose.msra.mxu0 0
    %933 = vmatpush.bf16.xpose.msra.mxu0 %v678
    %934 = vmatpush.bf16.xpose.msra.mxu0 %v599
    %935 = vmatmul.bf16.gmra.mxu0 %v204
    %v936 = vpop.f32.mrf.mxu0
    %v937 = vadd.f32 %v924, %v936
    %v938 = vpop.f32.mrf.mxu0
    %939 = vdwg.mxu0
    %940 = vmatpush.bf16.xpose.msra.mxu0 0
    %941 = vmatpush.bf16.xpose.msra.mxu0 0
    %942 = vmatpush.bf16.xpose.msra.mxu0 0
    %943 = vmatpush.bf16.xpose.msra.mxu0 0
    %944 = vmatpush.bf16.xpose.msra.mxu0 0
    %945 = vmatpush.bf16.xpose.msra.mxu0 0
    %946 = vmatpush.bf16.xpose.msra.mxu0 %v679
    %947 = vmatpush.bf16.xpose.msra.mxu0 %v600
    %948 = vmatmul.bf16.gmra.mxu0 %v205
    %v949 = vpop.f32.mrf.mxu0
    %v950 = vadd.f32 %v937, %v949
    %v951 = vpop.f32.mrf.mxu0
    %952 = vdwg.mxu0
    %953 = vmatpush.bf16.xpose.msra.mxu0 0
    %954 = vmatpush.bf16.xpose.msra.mxu0 0
    %955 = vmatpush.bf16.xpose.msra.mxu0 0
    %956 = vmatpush.bf16.xpose.msra.mxu0 0
    %957 = vmatpush.bf16.xpose.msra.mxu0 0
    %958 = vmatpush.bf16.xpose.msra.mxu0 0
    %959 = vmatpush.bf16.xpose.msra.mxu0 %v680
    %960 = vmatpush.bf16.xpose.msra.mxu0 %v601
    %961 = vmatmul.bf16.gmra.mxu0 %v206
    %v962 = vpop.f32.mrf.mxu0
    %v963 = vadd.f32 %v950, %v962
    %v964 = vpop.f32.mrf.mxu0
    %965 = vdwg.mxu0
    %966 = vmatpush.bf16.xpose.msra.mxu0 0
    %967 = vmatpush.bf16.xpose.msra.mxu0 0
    %968 = vmatpush.bf16.xpose.msra.mxu0 0
    %969 = vmatpush.bf16.xpose.msra.mxu0 0
    %970 = vmatpush.bf16.xpose.msra.mxu0 0
    %971 = vmatpush.bf16.xpose.msra.mxu0 0
    %972 = vmatpush.bf16.xpose.msra.mxu0 %v681
    %973 = vmatpush.bf16.xpose.msra.mxu0 %v602
    %974 = vmatmul.bf16.gmra.mxu0 %v207
    %v975 = vpop.f32.mrf.mxu0
    %v976 = vadd.f32 %v963, %v975
    %v977 = vpop.f32.mrf.mxu0
    %978 = vdwg.mxu0
    %979 = vmatpush.bf16.xpose.msra.mxu0 0
    %980 = vmatpush.bf16.xpose.msra.mxu0 0
    %981 = vmatpush.bf16.xpose.msra.mxu0 0
    %982 = vmatpush.bf16.xpose.msra.mxu0 0
    %983 = vmatpush.bf16.xpose.msra.mxu0 0
    %984 = vmatpush.bf16.xpose.msra.mxu0 0
    %985 = vmatpush.bf16.xpose.msra.mxu0 %v682
    %986 = vmatpush.bf16.xpose.msra.mxu0 %v603
    %987 = vmatmul.bf16.gmra.mxu0 %v208
    %v988 = vpop.f32.mrf.mxu0
    %v989 = vadd.f32 %v976, %v988
    %v990 = vpop.f32.mrf.mxu0
    %991 = vdwg.mxu0
    %992 = vmatpush.bf16.xpose.msra.mxu0 0
    %993 = vmatpush.bf16.xpose.msra.mxu0 0
    %994 = vmatpush.bf16.xpose.msra.mxu0 0
    %995 = vmatpush.bf16.xpose.msra.mxu0 0
    %996 = vmatpush.bf16.xpose.msra.mxu0 0
    %997 = vmatpush.bf16.xpose.msra.mxu0 0
    %998 = vmatpush.bf16.xpose.msra.mxu0 %v683
    %999 = vmatpush.bf16.xpose.msra.mxu0 %v604
    %1000 = vmatmul.bf16.gmra.mxu0 %v209
    %v1001 = vpop.f32.mrf.mxu0
    %v1002 = vadd.f32 %v989, %v1001
    %v1003 = vpop.f32.mrf.mxu0
    %1004 = vdwg.mxu0
    %1005 = vmatpush.bf16.xpose.msra.mxu0 0
    %1006 = vmatpush.bf16.xpose.msra.mxu0 0
    %1007 = vmatpush.bf16.xpose.msra.mxu0 0
    %1008 = vmatpush.bf16.xpose.msra.mxu0 0
    %1009 = vmatpush.bf16.xpose.msra.mxu0 0
    %1010 = vmatpush.bf16.xpose.msra.mxu0 0
    %1011 = vmatpush.bf16.xpose.msra.mxu0 %v684
    %1012 = vmatpush.bf16.xpose.msra.mxu0 %v605
    %1013 = vmatmul.bf16.gmra.mxu0 %v210
    %v1014 = vpop.f32.mrf.mxu0
    %v1015 = vadd.f32 %v1002, %v1014
    %v1016 = vpop.f32.mrf.mxu0
    %1017 = vdwg.mxu0
    %1018 = vmatpush.bf16.xpose.msra.mxu0 0
    %1019 = vmatpush.bf16.xpose.msra.mxu0 0
    %1020 = vmatpush.bf16.xpose.msra.mxu0 0
    %1021 = vmatpush.bf16.xpose.msra.mxu0 0
    %1022 = vmatpush.bf16.xpose.msra.mxu0 0
    %1023 = vmatpush.bf16.xpose.msra.mxu0 0
    %1024 = vmatpush.bf16.xpose.msra.mxu0 %v685
    %1025 = vmatpush.bf16.xpose.msra.mxu0 %v606
    %1026 = vmatmul.bf16.gmra.mxu0 %v211
    %v1027 = vpop.f32.mrf.mxu0
    %v1028 = vadd.f32 %v1015, %v1027
    %v1029 = vpop.f32.mrf.mxu0
    %1030 = vdwg.mxu0
    %1031 = vmatpush.bf16.xpose.msra.mxu0 0
    %1032 = vmatpush.bf16.xpose.msra.mxu0 0
    %1033 = vmatpush.bf16.xpose.msra.mxu0 0
    %1034 = vmatpush.bf16.xpose.msra.mxu0 0
    %1035 = vmatpush.bf16.xpose.msra.mxu0 0
    %1036 = vmatpush.bf16.xpose.msra.mxu0 0
    %1037 = vmatpush.bf16.xpose.msra.mxu0 %v686
    %1038 = vmatpush.bf16.xpose.msra.mxu0 %v607
    %1039 = vmatmul.bf16.gmra.mxu0 %v212
    %v1040 = vpop.f32.mrf.mxu0
    %v1041 = vadd.f32 %v1028, %v1040
    %v1042 = vpop.f32.mrf.mxu0
    %1043 = vdwg.mxu0
    %1044 = vmatpush.bf16.xpose.msra.mxu0 0
    %1045 = vmatpush.bf16.xpose.msra.mxu0 0
    %1046 = vmatpush.bf16.xpose.msra.mxu0 0
    %1047 = vmatpush.bf16.xpose.msra.mxu0 0
    %1048 = vmatpush.bf16.xpose.msra.mxu0 0
    %1049 = vmatpush.bf16.xpose.msra.mxu0 0
    %1050 = vmatpush.bf16.xpose.msra.mxu0 %v687
    %1051 = vmatpush.bf16.xpose.msra.mxu0 %v608
    %1052 = vmatmul.bf16.gmra.mxu0 %v213
    %v1053 = vpop.f32.mrf.mxu0
    %v1054 = vadd.f32 %v1041, %v1053
    %v1055 = vpop.f32.mrf.mxu0
    %1056 = vdwg.mxu0
    %1057 = vmatpush.bf16.xpose.msra.mxu0 0
    %1058 = vmatpush.bf16.xpose.msra.mxu0 0
    %1059 = vmatpush.bf16.xpose.msra.mxu0 0
    %1060 = vmatpush.bf16.xpose.msra.mxu0 0
    %1061 = vmatpush.bf16.xpose.msra.mxu0 0
    %1062 = vmatpush.bf16.xpose.msra.mxu0 0
    %1063 = vmatpush.bf16.xpose.msra.mxu0 %v688
    %1064 = vmatpush.bf16.xpose.msra.mxu0 %v609
    %1065 = vmatmul.bf16.gmra.mxu0 %v214
    %v1066 = vpop.f32.mrf.mxu0
    %v1067 = vadd.f32 %v1054, %v1066
    %v1068 = vpop.f32.mrf.mxu0
    %1069 = vdwg.mxu0
    %1070 = vmatpush.bf16.xpose.msra.mxu0 0
    %1071 = vmatpush.bf16.xpose.msra.mxu0 0
    %1072 = vmatpush.bf16.xpose.msra.mxu0 0
    %1073 = vmatpush.bf16.xpose.msra.mxu0 0
    %1074 = vmatpush.bf16.xpose.msra.mxu0 0
    %1075 = vmatpush.bf16.xpose.msra.mxu0 0
    %1076 = vmatpush.bf16.xpose.msra.mxu0 %v689
    %1077 = vmatpush.bf16.xpose.msra.mxu0 %v610
    %1078 = vmatmul.bf16.gmra.mxu0 %v215
    %v1079 = vpop.f32.mrf.mxu0
    %v1080 = vadd.f32 %v1067, %v1079
    %v1081 = vpop.f32.mrf.mxu0
    %1082 = vdwg.mxu0
    %1083 = vmatpush.bf16.xpose.msra.mxu0 0
    %1084 = vmatpush.bf16.xpose.msra.mxu0 0
    %1085 = vmatpush.bf16.xpose.msra.mxu0 0
    %1086 = vmatpush.bf16.xpose.msra.mxu0 0
    %1087 = vmatpush.bf16.xpose.msra.mxu0 0
    %1088 = vmatpush.bf16.xpose.msra.mxu0 0
    %1089 = vmatpush.bf16.xpose.msra.mxu0 %v690
    %1090 = vmatpush.bf16.xpose.msra.mxu0 %v611
    %1091 = vmatmul.bf16.gmra.mxu0 %v216
    %v1092 = vpop.f32.mrf.mxu0
    %v1093 = vadd.f32 %v1080, %v1092
    %v1094 = vpop.f32.mrf.mxu0
    %1095 = vdwg.mxu0
    %1096 = vmatpush.bf16.xpose.msra.mxu0 0
    %1097 = vmatpush.bf16.xpose.msra.mxu0 0
    %1098 = vmatpush.bf16.xpose.msra.mxu0 0
    %1099 = vmatpush.bf16.xpose.msra.mxu0 0
    %1100 = vmatpush.bf16.xpose.msra.mxu0 0
    %1101 = vmatpush.bf16.xpose.msra.mxu0 0
    %1102 = vmatpush.bf16.xpose.msra.mxu0 %v691
    %1103 = vmatpush.bf16.xpose.msra.mxu0 %v612
    %1104 = vmatmul.bf16.gmra.mxu0 %v217
    %v1105 = vpop.f32.mrf.mxu0
    %v1106 = vadd.f32 %v1093, %v1105
    %v1107 = vpop.f32.mrf.mxu0
    %1108 = vdwg.mxu0
    %1109 = vmatpush.bf16.xpose.msra.mxu0 0
    %1110 = vmatpush.bf16.xpose.msra.mxu0 0
    %1111 = vmatpush.bf16.xpose.msra.mxu0 0
    %1112 = vmatpush.bf16.xpose.msra.mxu0 0
    %1113 = vmatpush.bf16.xpose.msra.mxu0 0
    %1114 = vmatpush.bf16.xpose.msra.mxu0 0
    %1115 = vmatpush.bf16.xpose.msra.mxu0 %v692
    %1116 = vmatpush.bf16.xpose.msra.mxu0 %v613
    %1117 = vmatmul.bf16.gmra.mxu0 %v218
    %v1118 = vpop.f32.mrf.mxu0
    %v1119 = vadd.f32 %v1106, %v1118
    %v1120 = vpop.f32.mrf.mxu0
    %1121 = vdwg.mxu0
    %1122 = vmatpush.bf16.xpose.msra.mxu0 0
    %1123 = vmatpush.bf16.xpose.msra.mxu0 0
    %1124 = vmatpush.bf16.xpose.msra.mxu0 0
    %1125 = vmatpush.bf16.xpose.msra.mxu0 0
    %1126 = vmatpush.bf16.xpose.msra.mxu0 0
    %1127 = vmatpush.bf16.xpose.msra.mxu0 0
    %1128 = vmatpush.bf16.xpose.msra.mxu0 %v693
    %1129 = vmatpush.bf16.xpose.msra.mxu0 %v614
    %1130 = vmatmul.bf16.gmra.mxu0 %v219
    %v1131 = vpop.f32.mrf.mxu0
    %v1132 = vadd.f32 %v1119, %v1131
    %v1133 = vpop.f32.mrf.mxu0
    %1134 = vdwg.mxu0
    %1135 = vmatpush.bf16.xpose.msra.mxu0 0
    %1136 = vmatpush.bf16.xpose.msra.mxu0 0
    %1137 = vmatpush.bf16.xpose.msra.mxu0 0
    %1138 = vmatpush.bf16.xpose.msra.mxu0 0
    %1139 = vmatpush.bf16.xpose.msra.mxu0 0
    %1140 = vmatpush.bf16.xpose.msra.mxu0 0
    %1141 = vmatpush.bf16.xpose.msra.mxu0 %v694
    %1142 = vmatpush.bf16.xpose.msra.mxu0 %v615
    %1143 = vmatmul.bf16.gmra.mxu0 %v220
    %v1144 = vpop.f32.mrf.mxu0
    %v1145 = vadd.f32 %v1132, %v1144
    %v1146 = vpop.f32.mrf.mxu0
    %1147 = vdwg.mxu0
    %1148 = vmatpush.bf16.xpose.msra.mxu0 0
    %1149 = vmatpush.bf16.xpose.msra.mxu0 0
    %1150 = vmatpush.bf16.xpose.msra.mxu0 0
    %1151 = vmatpush.bf16.xpose.msra.mxu0 0
    %1152 = vmatpush.bf16.xpose.msra.mxu0 0
    %1153 = vmatpush.bf16.xpose.msra.mxu0 0
    %1154 = vmatpush.bf16.xpose.msra.mxu0 %v695
    %1155 = vmatpush.bf16.xpose.msra.mxu0 %v616
    %1156 = vmatmul.bf16.gmra.mxu0 %v221
    %v1157 = vpop.f32.mrf.mxu0
    %v1158 = vadd.f32 %v1145, %v1157
    %v1159 = vpop.f32.mrf.mxu0
    %1160 = vdwg.mxu0
    %1161 = vmatpush.bf16.xpose.msra.mxu0 0
    %1162 = vmatpush.bf16.xpose.msra.mxu0 0
    %1163 = vmatpush.bf16.xpose.msra.mxu0 0
    %1164 = vmatpush.bf16.xpose.msra.mxu0 0
    %1165 = vmatpush.bf16.xpose.msra.mxu0 0
    %1166 = vmatpush.bf16.xpose.msra.mxu0 0
    %1167 = vmatpush.bf16.xpose.msra.mxu0 %v696
    %1168 = vmatpush.bf16.xpose.msra.mxu0 %v617
    %1169 = vmatmul.bf16.gmra.mxu0 %v222
    %v1170 = vpop.f32.mrf.mxu0
    %v1171 = vadd.f32 %v1158, %v1170
    %v1172 = vpop.f32.mrf.mxu0
    %1173 = vdwg.mxu0
    %1174 = vmatpush.bf16.xpose.msra.mxu0 0
    %1175 = vmatpush.bf16.xpose.msra.mxu0 0
    %1176 = vmatpush.bf16.xpose.msra.mxu0 0
    %1177 = vmatpush.bf16.xpose.msra.mxu0 0
    %1178 = vmatpush.bf16.xpose.msra.mxu0 0
    %1179 = vmatpush.bf16.xpose.msra.mxu0 0
    %1180 = vmatpush.bf16.xpose.msra.mxu0 %v697
    %1181 = vmatpush.bf16.xpose.msra.mxu0 %v618
    %1182 = vmatmul.bf16.gmra.mxu0 %v223
    %v1183 = vpop.f32.mrf.mxu0
    %v1184 = vadd.f32 %v1171, %v1183
    %v1185 = vpop.f32.mrf.mxu0
    %1186 = vdwg.mxu0
    %1187 = vmatpush.bf16.xpose.msra.mxu0 0
    %1188 = vmatpush.bf16.xpose.msra.mxu0 0
    %1189 = vmatpush.bf16.xpose.msra.mxu0 0
    %1190 = vmatpush.bf16.xpose.msra.mxu0 0
    %1191 = vmatpush.bf16.xpose.msra.mxu0 0
    %1192 = vmatpush.bf16.xpose.msra.mxu0 0
    %1193 = vmatpush.bf16.xpose.msra.mxu0 %v698
    %1194 = vmatpush.bf16.xpose.msra.mxu0 %v619
    %1195 = vmatmul.bf16.gmra.mxu0 %v224
    %v1196 = vpop.f32.mrf.mxu0
    %v1197 = vadd.f32 %v1184, %v1196
    %v1198 = vpop.f32.mrf.mxu0
    %1199 = vdwg.mxu0
    %1200 = vmatpush.bf16.xpose.msra.mxu0 0
    %1201 = vmatpush.bf16.xpose.msra.mxu0 0
    %1202 = vmatpush.bf16.xpose.msra.mxu0 0
    %1203 = vmatpush.bf16.xpose.msra.mxu0 0
    %1204 = vmatpush.bf16.xpose.msra.mxu0 0
    %1205 = vmatpush.bf16.xpose.msra.mxu0 0
    %1206 = vmatpush.bf16.xpose.msra.mxu0 %v699
    %1207 = vmatpush.bf16.xpose.msra.mxu0 %v620
    %1208 = vmatmul.bf16.gmra.mxu0 %v225
    %v1209 = vpop.f32.mrf.mxu0
    %v1210 = vadd.f32 %v1197, %v1209
    %v1211 = vpop.f32.mrf.mxu0
    %1212 = vdwg.mxu0
    %1213 = vmatpush.bf16.xpose.msra.mxu0 0
    %1214 = vmatpush.bf16.xpose.msra.mxu0 0
    %1215 = vmatpush.bf16.xpose.msra.mxu0 0
    %1216 = vmatpush.bf16.xpose.msra.mxu0 0
    %1217 = vmatpush.bf16.xpose.msra.mxu0 0
    %1218 = vmatpush.bf16.xpose.msra.mxu0 0
    %1219 = vmatpush.bf16.xpose.msra.mxu0 %v700
    %1220 = vmatpush.bf16.xpose.msra.mxu0 %v621
    %1221 = vmatmul.bf16.gmra.mxu0 %v226
    %v1222 = vpop.f32.mrf.mxu0
    %v1223 = vadd.f32 %v1210, %v1222
    %v1224 = vpop.f32.mrf.mxu0
    %1225 = vdwg.mxu0
    %1226 = vmatpush.bf16.xpose.msra.mxu0 0
    %1227 = vmatpush.bf16.xpose.msra.mxu0 0
    %1228 = vmatpush.bf16.xpose.msra.mxu0 0
    %1229 = vmatpush.bf16.xpose.msra.mxu0 0
    %1230 = vmatpush.bf16.xpose.msra.mxu0 0
    %1231 = vmatpush.bf16.xpose.msra.mxu0 0
    %1232 = vmatpush.bf16.xpose.msra.mxu0 %v701
    %1233 = vmatpush.bf16.xpose.msra.mxu0 %v622
    %1234 = vmatmul.bf16.gmra.mxu0 %v227
    %v1235 = vpop.f32.mrf.mxu0
    %v1236 = vadd.f32 %v1223, %v1235
    %v1237 = vpop.f32.mrf.mxu0
    %1238 = vdwg.mxu0
    %1239 = vmatpush.bf16.xpose.msra.mxu0 0
    %1240 = vmatpush.bf16.xpose.msra.mxu0 0
    %1241 = vmatpush.bf16.xpose.msra.mxu0 0
    %1242 = vmatpush.bf16.xpose.msra.mxu0 0
    %1243 = vmatpush.bf16.xpose.msra.mxu0 0
    %1244 = vmatpush.bf16.xpose.msra.mxu0 0
    %1245 = vmatpush.bf16.xpose.msra.mxu0 %v702
    %1246 = vmatpush.bf16.xpose.msra.mxu0 %v623
    %1247 = vmatmul.bf16.gmra.mxu0 %v228
    %v1248 = vpop.f32.mrf.mxu0
    %v1249 = vadd.f32 %v1236, %v1248
    %v1250 = vpop.f32.mrf.mxu0
    %1251 = vdwg.mxu0
    %1252 = vmatpush.bf16.xpose.msra.mxu0 0
    %1253 = vmatpush.bf16.xpose.msra.mxu0 0
    %1254 = vmatpush.bf16.xpose.msra.mxu0 0
    %1255 = vmatpush.bf16.xpose.msra.mxu0 0
    %1256 = vmatpush.bf16.xpose.msra.mxu0 0
    %1257 = vmatpush.bf16.xpose.msra.mxu0 0
    %1258 = vmatpush.bf16.xpose.msra.mxu0 %v703
    %1259 = vmatpush.bf16.xpose.msra.mxu0 %v624
    %1260 = vmatmul.bf16.gmra.mxu0 %v229
    %v1261 = vpop.f32.mrf.mxu0
    %v1262 = vadd.f32 %v1249, %v1261
    %v1263 = vpop.f32.mrf.mxu0
    %1264 = vdwg.mxu0
    %1265 = vmatpush.bf16.xpose.msra.mxu0 0
    %1266 = vmatpush.bf16.xpose.msra.mxu0 0
    %1267 = vmatpush.bf16.xpose.msra.mxu0 0
    %1268 = vmatpush.bf16.xpose.msra.mxu0 0
    %1269 = vmatpush.bf16.xpose.msra.mxu0 0
    %1270 = vmatpush.bf16.xpose.msra.mxu0 0
    %1271 = vmatpush.bf16.xpose.msra.mxu0 %v704
    %1272 = vmatpush.bf16.xpose.msra.mxu0 %v625
    %1273 = vmatmul.bf16.gmra.mxu0 %v230
    %v1274 = vpop.f32.mrf.mxu0
    %v1275 = vadd.f32 %v1262, %v1274
    %v1276 = vpop.f32.mrf.mxu0
    %1277 = vdwg.mxu0
    %1278 = vmatpush.bf16.xpose.msra.mxu0 0
    %1279 = vmatpush.bf16.xpose.msra.mxu0 0
    %1280 = vmatpush.bf16.xpose.msra.mxu0 0
    %1281 = vmatpush.bf16.xpose.msra.mxu0 0
    %1282 = vmatpush.bf16.xpose.msra.mxu0 0
    %1283 = vmatpush.bf16.xpose.msra.mxu0 0
    %1284 = vmatpush.bf16.xpose.msra.mxu0 %v705
    %1285 = vmatpush.bf16.xpose.msra.mxu0 %v626
    %1286 = vmatmul.bf16.gmra.mxu0 %v231
    %v1287 = vpop.f32.mrf.mxu0
    %v1288 = vadd.f32 %v1275, %v1287
    %v1289 = vpop.f32.mrf.mxu0
    %1290 = vdwg.mxu0
    %1291 = vmatpush.bf16.xpose.msra.mxu0 0
    %1292 = vmatpush.bf16.xpose.msra.mxu0 0
    %1293 = vmatpush.bf16.xpose.msra.mxu0 0
    %1294 = vmatpush.bf16.xpose.msra.mxu0 0
    %1295 = vmatpush.bf16.xpose.msra.mxu0 0
    %1296 = vmatpush.bf16.xpose.msra.mxu0 0
    %1297 = vmatpush.bf16.xpose.msra.mxu0 %v706
    %1298 = vmatpush.bf16.xpose.msra.mxu0 %v627
    %1299 = vmatmul.bf16.gmra.mxu0 %v232
    %v1300 = vpop.f32.mrf.mxu0
    %v1301 = vadd.f32 %v1288, %v1300
    %v1302 = vpop.f32.mrf.mxu0
    %1303 = vdwg.mxu0
    %1304 = vmatpush.bf16.xpose.msra.mxu0 0
    %1305 = vmatpush.bf16.xpose.msra.mxu0 0
    %1306 = vmatpush.bf16.xpose.msra.mxu0 0
    %1307 = vmatpush.bf16.xpose.msra.mxu0 0
    %1308 = vmatpush.bf16.xpose.msra.mxu0 0
    %1309 = vmatpush.bf16.xpose.msra.mxu0 0
    %1310 = vmatpush.bf16.xpose.msra.mxu0 %v707
    %1311 = vmatpush.bf16.xpose.msra.mxu0 %v628
    %1312 = vmatmul.bf16.gmra.mxu0 %v233
    %v1313 = vpop.f32.mrf.mxu0
    %v1314 = vadd.f32 %v1301, %v1313
    %v1315 = vpop.f32.mrf.mxu0
    %1316 = vdwg.mxu0
    %1317 = vmatpush.bf16.xpose.msra.mxu0 0
    %1318 = vmatpush.bf16.xpose.msra.mxu0 0
    %1319 = vmatpush.bf16.xpose.msra.mxu0 0
    %1320 = vmatpush.bf16.xpose.msra.mxu0 0
    %1321 = vmatpush.bf16.xpose.msra.mxu0 0
    %1322 = vmatpush.bf16.xpose.msra.mxu0 0
    %1323 = vmatpush.bf16.xpose.msra.mxu0 %v708
    %1324 = vmatpush.bf16.xpose.msra.mxu0 %v629
    %1325 = vmatmul.bf16.gmra.mxu0 %v234
    %v1326 = vpop.f32.mrf.mxu0
    %v1327 = vadd.f32 %v1314, %v1326
    %v1328 = vpop.f32.mrf.mxu0
    %1329 = vdwg.mxu0
    %1330 = vmatpush.bf16.xpose.msra.mxu0 0
    %1331 = vmatpush.bf16.xpose.msra.mxu0 0
    %1332 = vmatpush.bf16.xpose.msra.mxu0 0
    %1333 = vmatpush.bf16.xpose.msra.mxu0 0
    %1334 = vmatpush.bf16.xpose.msra.mxu0 0
    %1335 = vmatpush.bf16.xpose.msra.mxu0 0
    %1336 = vmatpush.bf16.xpose.msra.mxu0 %v709
    %1337 = vmatpush.bf16.xpose.msra.mxu0 %v630
    %1338 = vmatmul.bf16.gmra.mxu0 %v235
    %v1339 = vpop.f32.mrf.mxu0
    %v1340 = vadd.f32 %v1327, %v1339
    %v1341 = vpop.f32.mrf.mxu0
    %1342 = vdwg.mxu0
    %1343 = vmatpush.bf16.xpose.msra.mxu0 0
    %1344 = vmatpush.bf16.xpose.msra.mxu0 0
    %1345 = vmatpush.bf16.xpose.msra.mxu0 0
    %1346 = vmatpush.bf16.xpose.msra.mxu0 0
    %1347 = vmatpush.bf16.xpose.msra.mxu0 0
    %1348 = vmatpush.bf16.xpose.msra.mxu0 0
    %1349 = vmatpush.bf16.xpose.msra.mxu0 %v710
    %1350 = vmatpush.bf16.xpose.msra.mxu0 %v631
    %1351 = vmatmul.bf16.gmra.mxu0 %v236
    %v1352 = vpop.f32.mrf.mxu0
    %v1353 = vadd.f32 %v1340, %v1352
    %v1354 = vpop.f32.mrf.mxu0
    %1355 = vdwg.mxu0
    %1356 = vmatpush.bf16.xpose.msra.mxu0 0
    %1357 = vmatpush.bf16.xpose.msra.mxu0 0
    %1358 = vmatpush.bf16.xpose.msra.mxu0 0
    %1359 = vmatpush.bf16.xpose.msra.mxu0 0
    %1360 = vmatpush.bf16.xpose.msra.mxu0 0
    %1361 = vmatpush.bf16.xpose.msra.mxu0 0
    %1362 = vmatpush.bf16.xpose.msra.mxu0 %v711
    %1363 = vmatpush.bf16.xpose.msra.mxu0 %v632
    %1364 = vmatmul.bf16.gmra.mxu0 %v237
    %v1365 = vpop.f32.mrf.mxu0
    %v1366 = vadd.f32 %v1353, %v1365
    %v1367 = vpop.f32.mrf.mxu0
    %1368 = vdwg.mxu0
    %1369 = vmatpush.bf16.xpose.msra.mxu0 0
    %1370 = vmatpush.bf16.xpose.msra.mxu0 0
    %1371 = vmatpush.bf16.xpose.msra.mxu0 0
    %1372 = vmatpush.bf16.xpose.msra.mxu0 0
    %1373 = vmatpush.bf16.xpose.msra.mxu0 0
    %1374 = vmatpush.bf16.xpose.msra.mxu0 0
    %1375 = vmatpush.bf16.xpose.msra.mxu0 %v712
    %1376 = vmatpush.bf16.xpose.msra.mxu0 %v633
    %1377 = vmatmul.bf16.gmra.mxu0 %v238
    %v1378 = vpop.f32.mrf.mxu0
    %v1379 = vadd.f32 %v1366, %v1378
    %v1380 = vpop.f32.mrf.mxu0
    %1381 = vdwg.mxu0
    %1382 = vmatpush.bf16.xpose.msra.mxu0 0
    %1383 = vmatpush.bf16.xpose.msra.mxu0 0
    %1384 = vmatpush.bf16.xpose.msra.mxu0 0
    %1385 = vmatpush.bf16.xpose.msra.mxu0 0
    %1386 = vmatpush.bf16.xpose.msra.mxu0 0
    %1387 = vmatpush.bf16.xpose.msra.mxu0 0
    %1388 = vmatpush.bf16.xpose.msra.mxu0 %v713
    %1389 = vmatpush.bf16.xpose.msra.mxu0 %v634
    %1390 = vmatmul.bf16.gmra.mxu0 %v239
    %v1391 = vpop.f32.mrf.mxu0
    %v1392 = vadd.f32 %v1379, %v1391
    %v1393 = vpop.f32.mrf.mxu0
    %1394 = vdwg.mxu0
    %1395 = vmatpush.bf16.xpose.msra.mxu0 0
    %1396 = vmatpush.bf16.xpose.msra.mxu0 0
    %1397 = vmatpush.bf16.xpose.msra.mxu0 0
    %1398 = vmatpush.bf16.xpose.msra.mxu0 0
    %1399 = vmatpush.bf16.xpose.msra.mxu0 0
    %1400 = vmatpush.bf16.xpose.msra.mxu0 0
    %1401 = vmatpush.bf16.xpose.msra.mxu0 %v714
    %1402 = vmatpush.bf16.xpose.msra.mxu0 %v635
    %1403 = vmatmul.bf16.gmra.mxu0 %v240
    %v1404 = vpop.f32.mrf.mxu0
    %v1405 = vadd.f32 %v1392, %v1404
    %v1406 = vpop.f32.mrf.mxu0
    %1407 = vdwg.mxu0
    %1408 = vmatpush.bf16.xpose.msra.mxu0 0
    %1409 = vmatpush.bf16.xpose.msra.mxu0 0
    %1410 = vmatpush.bf16.xpose.msra.mxu0 0
    %1411 = vmatpush.bf16.xpose.msra.mxu0 0
    %1412 = vmatpush.bf16.xpose.msra.mxu0 0
    %1413 = vmatpush.bf16.xpose.msra.mxu0 0
    %1414 = vmatpush.bf16.xpose.msra.mxu0 %v715
    %1415 = vmatpush.bf16.xpose.msra.mxu0 %v636
    %1416 = vmatmul.bf16.gmra.mxu0 %v241
    %v1417 = vpop.f32.mrf.mxu0
    %v1418 = vadd.f32 %v1405, %v1417
    %v1419 = vpop.f32.mrf.mxu0
    %1420 = vdwg.mxu0
    %1421 = vmatpush.bf16.xpose.msra.mxu0 0
    %1422 = vmatpush.bf16.xpose.msra.mxu0 0
    %1423 = vmatpush.bf16.xpose.msra.mxu0 0
    %1424 = vmatpush.bf16.xpose.msra.mxu0 0
    %1425 = vmatpush.bf16.xpose.msra.mxu0 0
    %1426 = vmatpush.bf16.xpose.msra.mxu0 0
    %1427 = vmatpush.bf16.xpose.msra.mxu0 %v716
    %1428 = vmatpush.bf16.xpose.msra.mxu0 %v637
    %1429 = vmatmul.bf16.gmra.mxu0 %v242
    %v1430 = vpop.f32.mrf.mxu0
    %v1431 = vadd.f32 %v1418, %v1430
    %v1432 = vpop.f32.mrf.mxu0
    %1433 = vdwg.mxu0
    %1434 = vmatpush.bf16.xpose.msra.mxu0 0
    %1435 = vmatpush.bf16.xpose.msra.mxu0 0
    %1436 = vmatpush.bf16.xpose.msra.mxu0 0
    %1437 = vmatpush.bf16.xpose.msra.mxu0 0
    %1438 = vmatpush.bf16.xpose.msra.mxu0 0
    %1439 = vmatpush.bf16.xpose.msra.mxu0 0
    %1440 = vmatpush.bf16.xpose.msra.mxu0 %v717
    %1441 = vmatpush.bf16.xpose.msra.mxu0 %v638
    %1442 = vmatmul.bf16.gmra.mxu0 %v243
    %v1443 = vpop.f32.mrf.mxu0
    %v1444 = vadd.f32 %v1431, %v1443
    %v1445 = vpop.f32.mrf.mxu0
    %1446 = vdwg.mxu0
    %1447 = vmatpush.bf16.xpose.msra.mxu0 0
    %1448 = vmatpush.bf16.xpose.msra.mxu0 0
    %1449 = vmatpush.bf16.xpose.msra.mxu0 0
    %1450 = vmatpush.bf16.xpose.msra.mxu0 0
    %1451 = vmatpush.bf16.xpose.msra.mxu0 0
    %1452 = vmatpush.bf16.xpose.msra.mxu0 0
    %1453 = vmatpush.bf16.xpose.msra.mxu0 %v718
    %1454 = vmatpush.bf16.xpose.msra.mxu0 %v639
    %1455 = vmatmul.bf16.gmra.mxu0 %v244
    %v1456 = vpop.f32.mrf.mxu0
    %v1457 = vadd.f32 %v1444, %v1456
    %v1458 = vpop.f32.mrf.mxu0
    %1459 = vdwg.mxu0
    %1460 = vmatpush.bf16.xpose.msra.mxu0 0
    %1461 = vmatpush.bf16.xpose.msra.mxu0 0
    %1462 = vmatpush.bf16.xpose.msra.mxu0 0
    %1463 = vmatpush.bf16.xpose.msra.mxu0 0
    %1464 = vmatpush.bf16.xpose.msra.mxu0 0
    %1465 = vmatpush.bf16.xpose.msra.mxu0 0
    %1466 = vmatpush.bf16.xpose.msra.mxu0 %v719
    %1467 = vmatpush.bf16.xpose.msra.mxu0 %v640
    %1468 = vmatmul.bf16.gmra.mxu0 %v245
    %v1469 = vpop.f32.mrf.mxu0
    %v1470 = vadd.f32 %v1457, %v1469
    %v1471 = vpop.f32.mrf.mxu0
    %1472 = vdwg.mxu0
    %1473 = vmatpush.bf16.xpose.msra.mxu0 0
    %1474 = vmatpush.bf16.xpose.msra.mxu0 0
    %1475 = vmatpush.bf16.xpose.msra.mxu0 0
    %1476 = vmatpush.bf16.xpose.msra.mxu0 0
    %1477 = vmatpush.bf16.xpose.msra.mxu0 0
    %1478 = vmatpush.bf16.xpose.msra.mxu0 0
    %1479 = vmatpush.bf16.xpose.msra.mxu0 %v720
    %1480 = vmatpush.bf16.xpose.msra.mxu0 %v641
    %1481 = vmatmul.bf16.gmra.mxu0 %v246
    %v1482 = vpop.f32.mrf.mxu0
    %v1483 = vadd.f32 %v1470, %v1482
    %v1484 = vpop.f32.mrf.mxu0
    %1485 = vdwg.mxu0
    %1486 = vmatpush.bf16.xpose.msra.mxu0 0
    %1487 = vmatpush.bf16.xpose.msra.mxu0 0
    %1488 = vmatpush.bf16.xpose.msra.mxu0 0
    %1489 = vmatpush.bf16.xpose.msra.mxu0 0
    %1490 = vmatpush.bf16.xpose.msra.mxu0 0
    %1491 = vmatpush.bf16.xpose.msra.mxu0 0
    %1492 = vmatpush.bf16.xpose.msra.mxu0 %v721
    %1493 = vmatpush.bf16.xpose.msra.mxu0 %v642
    %1494 = vmatmul.bf16.gmra.mxu0 %v247
    %v1495 = vpop.f32.mrf.mxu0
    %v1496 = vadd.f32 %v1483, %v1495
    %v1497 = vpop.f32.mrf.mxu0
    %1498 = vdwg.mxu0
    %1499 = vmatpush.bf16.xpose.msra.mxu0 0
    %1500 = vmatpush.bf16.xpose.msra.mxu0 0
    %1501 = vmatpush.bf16.xpose.msra.mxu0 0
    %1502 = vmatpush.bf16.xpose.msra.mxu0 0
    %1503 = vmatpush.bf16.xpose.msra.mxu0 0
    %1504 = vmatpush.bf16.xpose.msra.mxu0 0
    %1505 = vmatpush.bf16.xpose.msra.mxu0 %v722
    %1506 = vmatpush.bf16.xpose.msra.mxu0 %v643
    %1507 = vmatmul.bf16.gmra.mxu0 %v248
    %v1508 = vpop.f32.mrf.mxu0
    %v1509 = vadd.f32 %v1496, %v1508
    %v1510 = vpop.f32.mrf.mxu0
    %1511 = vdwg.mxu0
    %1512 = vmatpush.bf16.xpose.msra.mxu0 0
    %1513 = vmatpush.bf16.xpose.msra.mxu0 0
    %1514 = vmatpush.bf16.xpose.msra.mxu0 0
    %1515 = vmatpush.bf16.xpose.msra.mxu0 0
    %1516 = vmatpush.bf16.xpose.msra.mxu0 0
    %1517 = vmatpush.bf16.xpose.msra.mxu0 0
    %1518 = vmatpush.bf16.xpose.msra.mxu0 %v723
    %1519 = vmatpush.bf16.xpose.msra.mxu0 %v644
    %1520 = vmatmul.bf16.gmra.mxu0 %v249
    %v1521 = vpop.f32.mrf.mxu0
    %v1522 = vadd.f32 %v1509, %v1521
    %v1523 = vpop.f32.mrf.mxu0
    %1524 = vdwg.mxu0
    %1525 = vmatpush.bf16.xpose.msra.mxu0 0
    %1526 = vmatpush.bf16.xpose.msra.mxu0 0
    %1527 = vmatpush.bf16.xpose.msra.mxu0 0
    %1528 = vmatpush.bf16.xpose.msra.mxu0 0
    %1529 = vmatpush.bf16.xpose.msra.mxu0 0
    %1530 = vmatpush.bf16.xpose.msra.mxu0 0
    %1531 = vmatpush.bf16.xpose.msra.mxu0 %v724
    %1532 = vmatpush.bf16.xpose.msra.mxu0 %v645
    %1533 = vmatmul.bf16.gmra.mxu0 %v250
    %v1534 = vpop.f32.mrf.mxu0
    %v1535 = vadd.f32 %v1522, %v1534
    %v1536 = vpop.f32.mrf.mxu0
    %1537 = vdwg.mxu0
    %1538 = vmatpush.bf16.xpose.msra.mxu0 0
    %1539 = vmatpush.bf16.xpose.msra.mxu0 0
    %1540 = vmatpush.bf16.xpose.msra.mxu0 0
    %1541 = vmatpush.bf16.xpose.msra.mxu0 0
    %1542 = vmatpush.bf16.xpose.msra.mxu0 0
    %1543 = vmatpush.bf16.xpose.msra.mxu0 0
    %1544 = vmatpush.bf16.xpose.msra.mxu0 %v725
    %1545 = vmatpush.bf16.xpose.msra.mxu0 %v646
    %1546 = vmatmul.bf16.gmra.mxu0 %v251
    %v1547 = vpop.f32.mrf.mxu0
    %v1548 = vadd.f32 %v1535, %v1547
    %v1549 = vpop.f32.mrf.mxu0
    %1550 = vdwg.mxu0
    %1551 = vmatpush.bf16.xpose.msra.mxu0 0
    %1552 = vmatpush.bf16.xpose.msra.mxu0 0
    %1553 = vmatpush.bf16.xpose.msra.mxu0 0
    %1554 = vmatpush.bf16.xpose.msra.mxu0 0
    %1555 = vmatpush.bf16.xpose.msra.mxu0 0
    %1556 = vmatpush.bf16.xpose.msra.mxu0 0
    %1557 = vmatpush.bf16.xpose.msra.mxu0 %v726
    %1558 = vmatpush.bf16.xpose.msra.mxu0 %v647
    %1559 = vmatmul.bf16.gmra.mxu0 %v252
    %v1560 = vpop.f32.mrf.mxu0
    %v1561 = vadd.f32 %v1548, %v1560
    %v1562 = vpop.f32.mrf.mxu0
    %1563 = vdwg.mxu0
    %1564 = vmatpush.bf16.xpose.msra.mxu0 0
    %1565 = vmatpush.bf16.xpose.msra.mxu0 0
    %1566 = vmatpush.bf16.xpose.msra.mxu0 0
    %1567 = vmatpush.bf16.xpose.msra.mxu0 0
    %1568 = vmatpush.bf16.xpose.msra.mxu0 0
    %1569 = vmatpush.bf16.xpose.msra.mxu0 0
    %1570 = vmatpush.bf16.xpose.msra.mxu0 %v727
    %1571 = vmatpush.bf16.xpose.msra.mxu0 %v648
    %1572 = vmatmul.bf16.gmra.mxu0 %v253
    %v1573 = vpop.f32.mrf.mxu0
    %v1574 = vadd.f32 %v1561, %v1573
    %v1575 = vpop.f32.mrf.mxu0
    %1576 = vdwg.mxu0
    %1577 = vmatpush.bf16.xpose.msra.mxu0 0
    %1578 = vmatpush.bf16.xpose.msra.mxu0 0
    %1579 = vmatpush.bf16.xpose.msra.mxu0 0
    %1580 = vmatpush.bf16.xpose.msra.mxu0 0
    %1581 = vmatpush.bf16.xpose.msra.mxu0 0
    %1582 = vmatpush.bf16.xpose.msra.mxu0 0
    %1583 = vmatpush.bf16.xpose.msra.mxu0 %v728
    %1584 = vmatpush.bf16.xpose.msra.mxu0 %v649
    %1585 = vmatmul.bf16.gmra.mxu0 %v254
    %v1586 = vpop.f32.mrf.mxu0
    %v1587 = vadd.f32 %v1574, %v1586
    %v1588 = vpop.f32.mrf.mxu0
    %1589 = vdwg.mxu0
    %1590 = vmatpush.bf16.xpose.msra.mxu0 0
    %1591 = vmatpush.bf16.xpose.msra.mxu0 0
    %1592 = vmatpush.bf16.xpose.msra.mxu0 0
    %1593 = vmatpush.bf16.xpose.msra.mxu0 0
    %1594 = vmatpush.bf16.xpose.msra.mxu0 0
    %1595 = vmatpush.bf16.xpose.msra.mxu0 0
    %1596 = vmatpush.bf16.xpose.msra.mxu0 %v729
    %1597 = vmatpush.bf16.xpose.msra.mxu0 %v650
    %1598 = vmatmul.bf16.gmra.mxu0 %v255
    %v1599 = vpop.f32.mrf.mxu0
    %v1600 = vadd.f32 %v1587, %v1599
    %v1601 = vpop.f32.mrf.mxu0
    %1602 = vdwg.mxu0
    %1603 = vmatpush.bf16.xpose.msra.mxu0 0
    %1604 = vmatpush.bf16.xpose.msra.mxu0 0
    %1605 = vmatpush.bf16.xpose.msra.mxu0 0
    %1606 = vmatpush.bf16.xpose.msra.mxu0 0
    %1607 = vmatpush.bf16.xpose.msra.mxu0 0
    %1608 = vmatpush.bf16.xpose.msra.mxu0 0
    %1609 = vmatpush.bf16.xpose.msra.mxu0 %v730
    %1610 = vmatpush.bf16.xpose.msra.mxu0 %v651
    %1611 = vmatmul.bf16.gmra.mxu0 %v256
    %v1612 = vpop.f32.mrf.mxu0
    %v1613 = vadd.f32 %v1600, %v1612
    %v1614 = vpop.f32.mrf.mxu0
    %1615 = vdwg.mxu0
    %1616 = vmatpush.bf16.xpose.msra.mxu0 0
    %1617 = vmatpush.bf16.xpose.msra.mxu0 0
    %1618 = vmatpush.bf16.xpose.msra.mxu0 0
    %1619 = vmatpush.bf16.xpose.msra.mxu0 0
    %1620 = vmatpush.bf16.xpose.msra.mxu0 0
    %1621 = vmatpush.bf16.xpose.msra.mxu0 0
    %1622 = vmatpush.bf16.xpose.msra.mxu0 %v731
    %1623 = vmatpush.bf16.xpose.msra.mxu0 %v652
    %1624 = vmatmul.bf16.gmra.mxu0 %v257
    %v1625 = vpop.f32.mrf.mxu0
    %v1626 = vadd.f32 %v1613, %v1625
    %v1627 = vpop.f32.mrf.mxu0
    %1628 = vdwg.mxu0
    %1629 = vmatpush.bf16.xpose.msra.mxu0 0
    %1630 = vmatpush.bf16.xpose.msra.mxu0 0
    %1631 = vmatpush.bf16.xpose.msra.mxu0 0
    %1632 = vmatpush.bf16.xpose.msra.mxu0 0
    %1633 = vmatpush.bf16.xpose.msra.mxu0 0
    %1634 = vmatpush.bf16.xpose.msra.mxu0 0
    %1635 = vmatpush.bf16.xpose.msra.mxu0 %v732
    %1636 = vmatpush.bf16.xpose.msra.mxu0 %v653
    %1637 = vmatmul.bf16.gmra.mxu0 %v258
    %v1638 = vpop.f32.mrf.mxu0
    %v1639 = vadd.f32 %v1626, %v1638
    %v1640 = vpop.f32.mrf.mxu0
    %1641 = vdwg.mxu0
    %1642 = vmatpush.bf16.xpose.msra.mxu0 0
    %1643 = vmatpush.bf16.xpose.msra.mxu0 0
    %1644 = vmatpush.bf16.xpose.msra.mxu0 0
    %1645 = vmatpush.bf16.xpose.msra.mxu0 0
    %1646 = vmatpush.bf16.xpose.msra.mxu0 0
    %1647 = vmatpush.bf16.xpose.msra.mxu0 0
    %1648 = vmatpush.bf16.xpose.msra.mxu0 %v733
    %1649 = vmatpush.bf16.xpose.msra.mxu0 %v654
    %1650 = vmatmul.bf16.gmra.mxu0 %v259
    %v1651 = vpop.f32.mrf.mxu0
    %v1652 = vadd.f32 %v1639, %v1651
    %v1653 = vpop.f32.mrf.mxu0
    %1654 = vdwg.mxu0
    %1655 = vmatpush.bf16.xpose.msra.mxu0 0
    %1656 = vmatpush.bf16.xpose.msra.mxu0 0
    %1657 = vmatpush.bf16.xpose.msra.mxu0 0
    %1658 = vmatpush.bf16.xpose.msra.mxu0 0
    %1659 = vmatpush.bf16.xpose.msra.mxu0 0
    %1660 = vmatpush.bf16.xpose.msra.mxu0 0
    %1661 = vmatpush.bf16.xpose.msra.mxu0 %v734
    %1662 = vmatpush.bf16.xpose.msra.mxu0 %v655
    %1663 = vmatmul.bf16.gmra.mxu0 %v260
    %v1664 = vpop.f32.mrf.mxu0
    %v1665 = vadd.f32 %v1652, %v1664
    %v1666 = vpop.f32.mrf.mxu0
    %1667 = vdwg.mxu0
    %1668 = vmatpush.bf16.xpose.msra.mxu0 0
    %1669 = vmatpush.bf16.xpose.msra.mxu0 0
    %1670 = vmatpush.bf16.xpose.msra.mxu0 0
    %1671 = vmatpush.bf16.xpose.msra.mxu0 0
    %1672 = vmatpush.bf16.xpose.msra.mxu0 0
    %1673 = vmatpush.bf16.xpose.msra.mxu0 0
    %1674 = vmatpush.bf16.xpose.msra.mxu0 %v735
    %1675 = vmatpush.bf16.xpose.msra.mxu0 %v656
    %1676 = vmatmul.bf16.gmra.mxu0 %v261
    %v1677 = vpop.f32.mrf.mxu0
    %v1678 = vadd.f32 %v1665, %v1677
    %v1679 = vpop.f32.mrf.mxu0
    %1680 = vdwg.mxu0
    %1681 = vmatpush.bf16.xpose.msra.mxu0 0
    %1682 = vmatpush.bf16.xpose.msra.mxu0 0
    %1683 = vmatpush.bf16.xpose.msra.mxu0 0
    %1684 = vmatpush.bf16.xpose.msra.mxu0 0
    %1685 = vmatpush.bf16.xpose.msra.mxu0 0
    %1686 = vmatpush.bf16.xpose.msra.mxu0 0
    %1687 = vmatpush.bf16.xpose.msra.mxu0 %v736
    %1688 = vmatpush.bf16.xpose.msra.mxu0 %v657
    %1689 = vmatmul.bf16.gmra.mxu0 %v262
    %v1690 = vpop.f32.mrf.mxu0
    %v1691 = vadd.f32 %v1678, %v1690
    %v1692 = vpop.f32.mrf.mxu0
    %1693 = vdwg.mxu0
    %1694 = vmatpush.bf16.xpose.msra.mxu0 0
    %1695 = vmatpush.bf16.xpose.msra.mxu0 0
    %1696 = vmatpush.bf16.xpose.msra.mxu0 0
    %1697 = vmatpush.bf16.xpose.msra.mxu0 0
    %1698 = vmatpush.bf16.xpose.msra.mxu0 0
    %1699 = vmatpush.bf16.xpose.msra.mxu0 0
    %1700 = vmatpush.bf16.xpose.msra.mxu0 %v737
    %1701 = vmatpush.bf16.xpose.msra.mxu0 %v658
    %1702 = vmatmul.bf16.gmra.mxu0 %v263
    %v1703 = vpop.f32.mrf.mxu0
    %v1704 = vadd.f32 %v1691, %v1703
    %v1705 = vpop.f32.mrf.mxu0
    %1706 = vdwg.mxu0
    %1707 = vmatpush.bf16.xpose.msra.mxu0 0
    %1708 = vmatpush.bf16.xpose.msra.mxu0 0
    %1709 = vmatpush.bf16.xpose.msra.mxu0 0
    %1710 = vmatpush.bf16.xpose.msra.mxu0 0
    %1711 = vmatpush.bf16.xpose.msra.mxu0 0
    %1712 = vmatpush.bf16.xpose.msra.mxu0 0
    %1713 = vmatpush.bf16.xpose.msra.mxu0 %v738
    %1714 = vmatpush.bf16.xpose.msra.mxu0 %v659
    %1715 = vmatmul.bf16.gmra.mxu0 %v264
    %v1716 = vpop.f32.mrf.mxu0
    %v1717 = vadd.f32 %v1704, %v1716
    %v1718 = vpop.f32.mrf.mxu0
    %1719 = vdwg.mxu0
    %1720 = vmatpush.bf16.xpose.msra.mxu0 0
    %1721 = vmatpush.bf16.xpose.msra.mxu0 0
    %1722 = vmatpush.bf16.xpose.msra.mxu0 0
    %1723 = vmatpush.bf16.xpose.msra.mxu0 0
    %1724 = vmatpush.bf16.xpose.msra.mxu0 0
    %1725 = vmatpush.bf16.xpose.msra.mxu0 0
    %1726 = vmatpush.bf16.xpose.msra.mxu0 %v739
    %1727 = vmatpush.bf16.xpose.msra.mxu0 %v660
    %1728 = vmatmul.bf16.gmra.mxu0 %v265
    %v1729 = vpop.f32.mrf.mxu0
    %v1730 = vadd.f32 %v1717, %v1729
    %v1731 = vpop.f32.mrf.mxu0
    %1732 = vdwg.mxu0
    %1733 = vmatpush.bf16.xpose.msra.mxu0 0
    %1734 = vmatpush.bf16.xpose.msra.mxu0 0
    %1735 = vmatpush.bf16.xpose.msra.mxu0 0
    %1736 = vmatpush.bf16.xpose.msra.mxu0 0
    %1737 = vmatpush.bf16.xpose.msra.mxu0 0
    %1738 = vmatpush.bf16.xpose.msra.mxu0 0
    %1739 = vmatpush.bf16.xpose.msra.mxu0 %v740
    %1740 = vmatpush.bf16.xpose.msra.mxu0 %v661
    %1741 = vmatmul.bf16.gmra.mxu0 %v266
    %v1742 = vpop.f32.mrf.mxu0
    %v1743 = vadd.f32 %v1730, %v1742
    %v1744 = vpop.f32.mrf.mxu0
    %1745 = vdwg.mxu0
    %1746 = vmatpush.bf16.xpose.msra.mxu0 0
    %1747 = vmatpush.bf16.xpose.msra.mxu0 0
    %1748 = vmatpush.bf16.xpose.msra.mxu0 0
    %1749 = vmatpush.bf16.xpose.msra.mxu0 0
    %1750 = vmatpush.bf16.xpose.msra.mxu0 0
    %1751 = vmatpush.bf16.xpose.msra.mxu0 0
    %1752 = vmatpush.bf16.xpose.msra.mxu0 %v741
    %1753 = vmatpush.bf16.xpose.msra.mxu0 %v662
    %1754 = vmatmul.bf16.gmra.mxu0 %v267
    %v1755 = vpop.f32.mrf.mxu0
    %v1756 = vadd.f32 %v1743, %v1755
    %v1757 = vpop.f32.mrf.mxu0
    %1758 = vdwg.mxu0
    %1759 = vmatpush.bf16.xpose.msra.mxu0 0
    %1760 = vmatpush.bf16.xpose.msra.mxu0 0
    %1761 = vmatpush.bf16.xpose.msra.mxu0 0
    %1762 = vmatpush.bf16.xpose.msra.mxu0 0
    %1763 = vmatpush.bf16.xpose.msra.mxu0 0
    %1764 = vmatpush.bf16.xpose.msra.mxu0 0
    %1765 = vmatpush.bf16.xpose.msra.mxu0 %v742
    %1766 = vmatpush.bf16.xpose.msra.mxu0 %v663
    %1767 = vmatmul.bf16.gmra.mxu0 %v268
    %v1768 = vpop.f32.mrf.mxu0
    %v1769 = vadd.f32 %v1756, %v1768
    %v1770 = vpop.f32.mrf.mxu0
    %1771 = vdwg.mxu0
    %1772 = vmatpush.bf16.xpose.msra.mxu0 0
    %1773 = vmatpush.bf16.xpose.msra.mxu0 0
    %1774 = vmatpush.bf16.xpose.msra.mxu0 0
    %1775 = vmatpush.bf16.xpose.msra.mxu0 0
    %1776 = vmatpush.bf16.xpose.msra.mxu0 0
    %1777 = vmatpush.bf16.xpose.msra.mxu0 0
    %1778 = vmatpush.bf16.xpose.msra.mxu0 %v756
    %1779 = vmatpush.bf16.xpose.msra.mxu0 %v753
    %1780 = vmatmul.bf16.gmra.mxu0 %v750
    %v1781 = vpop.f32.mrf.mxu0
    %v1782 = vadd.f32 %v1769, %v1781
    %v1783 = vpop.f32.mrf.mxu0
    %1784 = vdwg.mxu0
    %v1785 = vtanh.pop %v1782
    %v1786 = vld [vmem:[%s3] sm:$0xff]
    %v1787 = vld [vmem:[%s3 + $0x8] sm:$0xff]
    %v1788 = vld [vmem:[%s3 + $0x10] sm:$0xff]
    %v1789 = vld [vmem:[%s3 + $0x18] sm:$0xff]
    %v1790 = vld [vmem:[#allocation8] sm:$0x1]
    %v1792 = vperm.slane %v1790, 0
    %vm1794 = vcmask 261120
    %v1796 = vsel %vm1794, %v1785, 0
    %1798 = vmatpush.msra.mxu0 0.0
    %1799 = vmatpush.msra.mxu0 0.0
    %1800 = vmatpush.msra.mxu0 0.0
    %1801 = vmatpush.msra.mxu0 0.0
    %1802 = vmatpush.msra.mxu0 0.0
    %1803 = vmatpush.msra.mxu0 0.0
    %1804 = vmatpush.msra.mxu0 0.0
    %1805 = vmatpush.msra.mxu0 0.0
    %1806 = vmatpush.msra.mxu0 0.0
    %1807 = vmatpush.msra.mxu0 0.0
    %1808 = vmatpush.msra.mxu0 0.0
    %1809 = vmatpush.msra.mxu0 0.0
    %1810 = vmatpush.msra.mxu0 %v1789
    %1811 = vmatpush.msra.mxu0 %v1788
    %1812 = vmatpush.msra.mxu0 %v1787
    %1813 = vmatpush.msra.mxu0 %v1786
    %1814 = vmatmul.f32.gmra.mxu0 %v1796
    %v1815 = vpop.f32.mrf.mxu0
    %v1816 = vadd.f32 %v1792, %v1815
    %1817 = vdwg.mxu0
    %vm1818 = vcmp.gt.f32.partialorder %v1816, 0.0
    %v1819 = vmul.f32 %v1816, 0.01
    %v1820 = vsel %vm1818, %v1816, %v1819
    %v1821 = vld [vmem:[#allocation10] sm:$0xf]
    %v1822 = vld [vmem:[#allocation11] sm:$0x1]
    %v1824 = vperm.slane %v1822, 0
    %vm1826 = vcmask 31744
    %v1828 = vsel %vm1826, %v1820, 0
    %vm1830 = vcmask 1043456
    %v1832 = vsel %vm1830, %v1821, 0
    %1834 = vmatpush.msra.mxu0 0.0
    %1835 = vmatpush.msra.mxu0 0.0
    %1836 = vmatpush.msra.mxu0 0.0
    %1837 = vmatpush.msra.mxu0 0.0
    %1838 = vmatpush.msra.mxu0 0.0
    %1839 = vmatpush.msra.mxu0 0.0
    %1840 = vmatpush.msra.mxu0 0.0
    %1841 = vmatpush.msra.mxu0 0.0
    %1842 = vmatpush.msra.mxu0 0.0
    %1843 = vmatpush.msra.mxu0 0.0
    %1844 = vmatpush.msra.mxu0 0.0
    %1845 = vmatpush.msra.mxu0 0.0
    %1846 = vmatpush.msra.mxu0 0.0
    %1847 = vmatpush.msra.mxu0 0.0
    %1848 = vmatpush.msra.mxu0 0.0
    %1849 = vmatpush.msra.mxu0 %v1832
    %1850 = vmatmul.f32.gmra.mxu0 %v1828
    %v1851 = vpop.f32.mrf.mxu0
    %v1852 = vadd.f32 %v1824, %v1851
    %1853 = vdwg.mxu0
    %vm1854 = vcmask 375808
    %v1855 = vsel %vm1854, %v1852, -inf
    %1856 = vmax.xlane.f32.xlu0 %v1855
    %v1857 = vpop.xlane.xlu0 %1856
    %v1858 = vsub.f32 %v1852, %v1857
    %v1859 = vmul.f32 %v1858, 1.442695
    %v1860 = vpow.pop %v1859
    %v1861 = vsel %vm1854, %v1860, 0.0
    %1862 = vadd.xlane.f32.xlu0 %v1861
    %v1863 = vpop.xlane.xlu0 %1862
    %v1864 = vrcp.pop %v1863
    %v1865 = vmul.f32 %v1863, %v1864
    %v1866 = vsub.f32 1.0, %v1865
    %v1867 = vmul.f32 %v1864, %v1866
    %v1868 = vadd.f32 %v1864, %v1867
    %vm1869 = vweird.f32 %v1863
    %vm1870 = vweird.f32 %v1864
    %vm1871 = vmor %vm1869, %vm1870
    %v1872 = vsel %vm1871, %v1864, %v1868
    %v1873 = vand.u32 2147483647, %v1863
    %vm1874 = vcmp.eq.f32.partialorder %v1873, 8.507059e+37
    %v1875 = vand.u32 %v1863, 2147483648
    %v1876 = vor.u32 1.1754944e-38, %v1875
    %v1877 = vsel %vm1874, %v1876, %v1872
    %v1878 = vmul.f32 %v1860, %v1877
    %1879 = vst.msk [vmem:[#allocation13] sm:$0xff] %vm1854, %v1878
    // Predicated region
    $region54: #{tpu_custom_call.1} parent=1 // pred_check
      _
    $region55: #{tpu_custom_call.1} parent=1 // pred_check_branch
      %1881 = sbr.rel (0) target = $region57
    $region56: #{tpu_custom_call.1} parent=1 // pred_region
      %1883 = vsyncadd [#allocation4], 0
      %s1885 = sshll.u32 [#allocation13], 4
      %s1886 = int_to_ptr.vmem [resolvable:$true] %s1885
      %s1887 = sshll.u32 %s7, 4
      %s1888 = int_to_ptr.hbm [resolvable:$true] %s1887
      %1890 = dma.vmem_to_hbm [thread:$0]  %s1886, 128, %s1888, [#allocation4]
    $region57: #{tpu_custom_call.1} parent=1 // pred_fallthru
      _
    // Predicated region
    $region58: #{tpu_custom_call.1} parent=1 // pred_check
      _
    $region59: #{tpu_custom_call.1} parent=1 // pred_check_branch
      %1892 = sbr.rel (0) target = $region61
    $region60: #{tpu_custom_call.1} parent=1 // pred_region
      %1894 = dma.done [#allocation4], 128
    $region61: #{tpu_custom_call.1} parent=1 // pred_fallthru
      _
    %1895 = vsyncpa [#allocation3], 1
    %1896 = vsyncpa [#allocation6], 1
    %1897 = vsyncpa [#allocation9], 1
    %1898 = vsyncpa [#allocation12], 1
    %1899 = vsyncpa [#allocation4], 1

// kernel: tpu_custom_call.1
$region0: #{tpu_custom_call.1}
  #allocation0 [shape = 'u32[]', space=smem, size = 0x4, offset = 0x4, fixed_abs, tag = 'smem constant byte address 0x4 - core index']
  #allocation1 [shape = 'u32[72,128]{1,0:T(1,128)}', space=vmem, size = 0x9000, scoped, tag = 'internal scratch']
  %s0 = inlined_call_operand.hbm [shape: f32[8,10000], index: 0, kind: input, shape index: {}]
  %s1 = inlined_call_operand.hbm [shape: f32[32,10000], index: 1, kind: input, shape index: {}]
  %s2 = inlined_call_operand.hbm [shape: f32[1,32], index: 2, kind: input, shape index: {}]
  %s3 = inlined_call_operand.vmem [shape: f32[32,4], index: 3, kind: input, shape index: {}]
  %s4 = inlined_call_operand.hbm [shape: f32[1,4], index: 4, kind: input, shape index: {}]
  %s5 = inlined_call_operand.hbm [shape: f32[4,46], index: 5, kind: input, shape index: {}]
  %s6 = inlined_call_operand.hbm [shape: f32[1,46], index: 6, kind: input, shape index: {}]
  %s7 = inlined_call_operand.hbm [shape: f32[8,46], index: 7, kind: output, shape index: {}]
  %s8 = sld [smem:[#allocation0]]
  $region62: #{tpu_custom_call.1} parent=0
    _
  %s10 = ssub.s32 1, %s8
  %s11 = scalar_select 0, %s10, %s8
  $region1: #{tpu_custom_call.1} parent=0
    #allocation2 [shape = 'u8[323584]{0}', space=vmem, size = 0x4f000, scoped, tag = 'input window, operand 0, single buffered']
    #allocation3 [shape = 's32[1]{0}', space=sflag, size = 0x4, scoped, tag = 'scoped memory for tpu_custom_call.1']
    #allocation4 [shape = 's32[1]{0}', space=sflag, size = 0x4, scoped, tag = 'scoped memory for tpu_custom_call.1']
    #allocation5 [shape = 'u8[1294336]{0}', space=vmem, size = 0x13c000, scoped, tag = 'input window, operand 1, single buffered']
    #allocation6 [shape = 's32[1]{0}', space=sflag, size = 0x4, scoped, tag = 'scoped memory for tpu_custom_call.1']
    #allocation7 [shape = 'u8[512]{0}', space=vmem, size = 0x400, scoped, tag = 'input window, operand 2, single buffered']
    #allocation8 [shape = 'u8[512]{0}', space=vmem, size = 0x400, scoped, tag = 'input window, operand 4, single buffered']
    #allocation9 [shape = 's32[1]{0}', space=sflag, size = 0x4, scoped, tag = 'scoped memory for tpu_custom_call.1']
    #allocation10 [shape = 'u8[2048]{0}', space=vmem, size = 0x800, scoped, tag = 'input window, operand 5, single buffered']
    #allocation11 [shape = 'u8[512]{0}', space=vmem, size = 0x400, scoped, tag = 'input window, operand 6, single buffered']
    #allocation12 [shape = 's32[1]{0}', space=sflag, size = 0x4, scoped, tag = 'scoped memory for tpu_custom_call.1']
    #allocation13 [shape = 'u8[4096]{0}', space=vmem, size = 0x1000, scoped, tag = 'output window, operand 0, single buffered']
    %12 = vsyncpa [#allocation3], 0
    %13 = vsyncpa [#allocation6], 0
    %14 = vsyncpa [#allocation9], 0
    %15 = vsyncpa [#allocation12], 0
    %16 = vsyncpa [#allocation4], 0
    // Predicated region
    $region2: #{tpu_custom_call.1} parent=1 // pred_check
      _
    $region3: #{tpu_custom_call.1} parent=1 // pred_check_branch
      %18 = sbr.rel (0) target = $region5
    $region4: #{tpu_custom_call.1} parent=1 // pred_region
      %20 = vsyncadd [#allocation3], 0
      %s22 = sshll.u32 %s0, 4
      %s23 = int_to_ptr.hbm [resolvable:$true] %s22
      %s24 = sshll.u32 [#allocation2], 4
      %s25 = int_to_ptr.vmem [resolvable:$true] %s24
      %27 = dma.hbm_to_vmem [thread:$0]  %s23, 10112, %s25, [#allocation3]
    $region5: #{tpu_custom_call.1} parent=1 // pred_fallthru
      _
    // Predicated region
    $region6: #{tpu_custom_call.1} parent=1 // pred_check
      _
    $region7: #{tpu_custom_call.1} parent=1 // pred_check_branch
      %29 = sbr.rel (0) target = $region9
    $region8: #{tpu_custom_call.1} parent=1 // pred_region
      %31 = vsyncadd [#allocation6], 0
      %s32 = sshll.u32 %s1, 4
      %s33 = int_to_ptr.hbm [resolvable:$true] %s32
      %s34 = sshll.u32 [#allocation5], 4
      %s35 = int_to_ptr.vmem [resolvable:$true] %s34
      %40 = dma.hbm_to_vmem [thread:$0]  %s33, 40448, %s35, [#allocation6], 10112, 10112, 632
    $region9: #{tpu_custom_call.1} parent=1 // pred_fallthru
      _
    // Predicated region
    $region10: #{tpu_custom_call.1} parent=1 // pred_check
      _
    $region11: #{tpu_custom_call.1} parent=1 // pred_check_branch
      %42 = sbr.rel (0) target = $region13
    $region12: #{tpu_custom_call.1} parent=1 // pred_region
      %44 = vsyncadd [#allocation6], 0
      %s46 = sshll.u32 %s2, 4
      %s47 = int_to_ptr.hbm [resolvable:$true] %s46
      %s48 = sshll.u32 [#allocation7], 4
      %s49 = int_to_ptr.vmem [resolvable:$true] %s48
      %51 = dma.hbm_to_vmem [thread:$0]  %s47, 16, %s49, [#allocation6]
    $region13: #{tpu_custom_call.1} parent=1 // pred_fallthru
      _
    // Predicated region
    $region14: #{tpu_custom_call.1} parent=1 // pred_check
      _
    $region15: #{tpu_custom_call.1} parent=1 // pred_check_branch
      %53 = sbr.rel (0) target = $region17
    $region16: #{tpu_custom_call.1} parent=1 // pred_region
      _
    $region17: #{tpu_custom_call.1} parent=1 // pred_fallthru
      _
    // Predicated region
    $region18: #{tpu_custom_call.1} parent=1 // pred_check
      _
    $region19: #{tpu_custom_call.1} parent=1 // pred_check_branch
      %55 = sbr.rel (0) target = $region21
    $region20: #{tpu_custom_call.1} parent=1 // pred_region
      %57 = vsyncadd [#allocation9], 0
      %s59 = sshll.u32 %s4, 4
      %s60 = int_to_ptr.hbm [resolvable:$true] %s59
      %s61 = sshll.u32 [#allocation8], 4
      %s62 = int_to_ptr.vmem [resolvable:$true] %s61
      %64 = dma.hbm_to_vmem [thread:$0]  %s60, 16, %s62, [#allocation9]
    $region21: #{tpu_custom_call.1} parent=1 // pred_fallthru
      _
    // Predicated region
    $region22: #{tpu_custom_call.1} parent=1 // pred_check
      _
    $region23: #{tpu_custom_call.1} parent=1 // pred_check_branch
      %66 = sbr.rel (0) target = $region25
    $region24: #{tpu_custom_call.1} parent=1 // pred_region
      %68 = vsyncadd [#allocation9], 0
      %s70 = sshll.u32 %s5, 4
      %s71 = int_to_ptr.hbm [resolvable:$true] %s70
      %s72 = sshll.u32 [#allocation10], 4
      %s73 = int_to_ptr.vmem [resolvable:$true] %s72
      %75 = dma.hbm_to_vmem [thread:$0]  %s71, 64, %s73, [#allocation9]
    $region25: #{tpu_custom_call.1} parent=1 // pred_fallthru
      _
    // Predicated region
    $region26: #{tpu_custom_call.1} parent=1 // pred_check
      _
    $region27: #{tpu_custom_call.1} parent=1 // pred_check_branch
      %77 = sbr.rel (0) target = $region29
    $region28: #{tpu_custom_call.1} parent=1 // pred_region
      %79 = vsyncadd [#allocation12], 0
      %s81 = sshll.u32 %s6, 4
      %s82 = int_to_ptr.hbm [resolvable:$true] %s81
      %s83 = sshll.u32 [#allocation11], 4
      %s84 = int_to_ptr.vmem [resolvable:$true] %s83
      %86 = dma.hbm_to_vmem [thread:$0]  %s82, 16, %s84, [#allocation12]
    $region29: #{tpu_custom_call.1} parent=1 // pred_fallthru
      _
    // Predicated region
    $region30: #{tpu_custom_call.1} parent=1 // pred_check
      _
    $region31: #{tpu_custom_call.1} parent=1 // pred_check_branch
      %88 = sbr.rel (0) target = $region33
    $region32: #{tpu_custom_call.1} parent=1 // pred_region
      %90 = dma.done [#allocation3], 10112
    $region33: #{tpu_custom_call.1} parent=1 // pred_fallthru
      _
    // Predicated region
    $region34: #{tpu_custom_call.1} parent=1 // pred_check
      _
    $region35: #{tpu_custom_call.1} parent=1 // pred_check_branch
      %92 = sbr.rel (0) target = $region37
    $region36: #{tpu_custom_call.1} parent=1 // pred_region
      %94 = dma.done [#allocation6], 40448
    $region37: #{tpu_custom_call.1} parent=1 // pred_fallthru
      _
    // Predicated region
    $region38: #{tpu_custom_call.1} parent=1 // pred_check
      _
    $region39: #{tpu_custom_call.1} parent=1 // pred_check_branch
      %96 = sbr.rel (0) target = $region41
    $region40: #{tpu_custom_call.1} parent=1 // pred_region
      %98 = dma.done [#allocation6], 16
    $region41: #{tpu_custom_call.1} parent=1 // pred_fallthru
      _
    // Predicated region
    $region42: #{tpu_custom_call.1} parent=1 // pred_check
      _
    $region43: #{tpu_custom_call.1} parent=1 // pred_check_branch
      %100 = sbr.rel (0) target = $region45
    $region44: #{tpu_custom_call.1} parent=1 // pred_region
      %102 = dma.done [#allocation9], 16
    $region45: #{tpu_custom_call.1} parent=1 // pred_fallthru
      _
    // Predicated region
    $region46: #{tpu_custom_call.1} parent=1 // pred_check
      _
    $region47: #{tpu_custom_call.1} parent=1 // pred_check_branch
      %104 = sbr.rel (0) target = $region49
    $region48: #{tpu_custom_call.1} parent=1 // pred_region
      %106 = dma.done [#allocation9], 64
    $region49: #{tpu_custom_call.1} parent=1 // pred_fallthru
      _
    // Predicated region
    $region50: #{tpu_custom_call.1} parent=1 // pred_check
      _
    $region51: #{tpu_custom_call.1} parent=1 // pred_check_branch
      %108 = sbr.rel (0) target = $region53
    $region52: #{tpu_custom_call.1} parent=1 // pred_region
      %110 = dma.done [#allocation12], 16
    $region53: #{tpu_custom_call.1} parent=1 // pred_fallthru
      _
    %v112 = vld [vmem:[#allocation2] sm:$0xff]
    %v113 = vld [vmem:[#allocation2 + $0x8] sm:$0xff]
    %v114 = vld [vmem:[#allocation2 + $0x10] sm:$0xff]
    %v115 = vld [vmem:[#allocation2 + $0x18] sm:$0xff]
    %v116 = vld [vmem:[#allocation2 + $0x20] sm:$0xff]
    %v117 = vld [vmem:[#allocation2 + $0x28] sm:$0xff]
    %v118 = vld [vmem:[#allocation2 + $0x30] sm:$0xff]
    %v119 = vld [vmem:[#allocation2 + $0x38] sm:$0xff]
    %v120 = vld [vmem:[#allocation2 + $0x40] sm:$0xff]
    %v121 = vld [vmem:[#allocation2 + $0x48] sm:$0xff]
    %v122 = vld [vmem:[#allocation2 + $0x50] sm:$0xff]
    %v123 = vld [vmem:[#allocation2 + $0x58] sm:$0xff]
    %v124 = vld [vmem:[#allocation2 + $0x60] sm:$0xff]
    %v125 = vld [vmem:[#allocation2 + $0x68] sm:$0xff]
    %v126 = vld [vmem:[#allocation2 + $0x70] sm:$0xff]
    %v127 = vld [vmem:[#allocation2 + $0x78] sm:$0xff]
    %v128 = vld [vmem:[#allocation2 + $0x80] sm:$0xff]
    %v129 = vld [vmem:[#allocation2 + $0x88] sm:$0xff]
    %v130 = vld [vmem:[#allocation2 + $0x90] sm:$0xff]
    %v131 = vld [vmem:[#allocation2 + $0x98] sm:$0xff]
    %v132 = vld [vmem:[#allocation2 + $0xa0] sm:$0xff]
    %v133 = vld [vmem:[#allocation2 + $0xa8] sm:$0xff]
    %v134 = vld [vmem:[#allocation2 + $0xb0] sm:$0xff]
    %v135 = vld [vmem:[#allocation2 + $0xb8] sm:$0xff]
    %v136 = vld [vmem:[#allocation2 + $0xc0] sm:$0xff]
    %v137 = vld [vmem:[#allocation2 + $0xc8] sm:$0xff]
    %v138 = vld [vmem:[#allocation2 + $0xd0] sm:$0xff]
    %v139 = vld [vmem:[#allocation2 + $0xd8] sm:$0xff]
    %v140 = vld [vmem:[#allocation2 + $0xe0] sm:$0xff]
    %v141 = vld [vmem:[#allocation2 + $0xe8] sm:$0xff]
    %v142 = vld [vmem:[#allocation2 + $0xf0] sm:$0xff]
    %v143 = vld [vmem:[#allocation2 + $0xf8] sm:$0xff]
    %v144 = vld [vmem:[#allocation2 + $0x100] sm:$0xff]
    %v145 = vld [vmem:[#allocation2 + $0x108] sm:$0xff]
    %v146 = vld [vmem:[#allocation2 + $0x110] sm:$0xff]
    %v147 = vld [vmem:[#allocation2 + $0x118] sm:$0xff]
    %v148 = vld [vmem:[#allocation2 + $0x120] sm:$0xff]
    %v149 = vld [vmem:[#allocation2 + $0x128] sm:$0xff]
    %v150 = vld [vmem:[#allocation2 + $0x130] sm:$0xff]
    %v151 = vld [vmem:[#allocation2 + $0x138] sm:$0xff]
    %v152 = vld [vmem:[#allocation2 + $0x140] sm:$0xff]
    %v153 = vld [vmem:[#allocation2 + $0x148] sm:$0xff]
    %v154 = vld [vmem:[#allocation2 + $0x150] sm:$0xff]
    %v155 = vld [vmem:[#allocation2 + $0x158] sm:$0xff]
    %v156 = vld [vmem:[#allocation2 + $0x160] sm:$0xff]
    %v157 = vld [vmem:[#allocation2 + $0x168] sm:$0xff]
    %v158 = vld [vmem:[#allocation2 + $0x170] sm:$0xff]
    %v159 = vld [vmem:[#allocation2 + $0x178] sm:$0xff]
    %v160 = vld [vmem:[#allocation2 + $0x180] sm:$0xff]
    %v161 = vld [vmem:[#allocation2 + $0x188] sm:$0xff]
    %v162 = vld [vmem:[#allocation2 + $0x190] sm:$0xff]
    %v163 = vld [vmem:[#allocation2 + $0x198] sm:$0xff]
    %v164 = vld [vmem:[#allocation2 + $0x1a0] sm:$0xff]
    %v165 = vld [vmem:[#allocation2 + $0x1a8] sm:$0xff]
    %v166 = vld [vmem:[#allocation2 + $0x1b0] sm:$0xff]
    %v167 = vld [vmem:[#allocation2 + $0x1b8] sm:$0xff]
    %v168 = vld [vmem:[#allocation2 + $0x1c0] sm:$0xff]
    %v169 = vld [vmem:[#allocation2 + $0x1c8] sm:$0xff]
    %v170 = vld [vmem:[#allocation2 + $0x1d0] sm:$0xff]
    %v171 = vld [vmem:[#allocation2 + $0x1d8] sm:$0xff]
    %v172 = vld [vmem:[#allocation2 + $0x1e0] sm:$0xff]
    %v173 = vld [vmem:[#allocation2 + $0x1e8] sm:$0xff]
    %v174 = vld [vmem:[#allocation2 + $0x1f0] sm:$0xff]
    %v175 = vld [vmem:[#allocation2 + $0x1f8] sm:$0xff]
    %v176 = vld [vmem:[#allocation2 + $0x200] sm:$0xff]
    %v177 = vld [vmem:[#allocation2 + $0x208] sm:$0xff]
    %v178 = vld [vmem:[#allocation2 + $0x210] sm:$0xff]
    %v179 = vld [vmem:[#allocation2 + $0x218] sm:$0xff]
    %v180 = vld [vmem:[#allocation2 + $0x220] sm:$0xff]
    %v181 = vld [vmem:[#allocation2 + $0x228] sm:$0xff]
    %v182 = vld [vmem:[#allocation2 + $0x230] sm:$0xff]
    %v183 = vld [vmem:[#allocation2 + $0x238] sm:$0xff]
    %v184 = vld [vmem:[#allocation2 + $0x240] sm:$0xff]
    %v185 = vld [vmem:[#allocation2 + $0x248] sm:$0xff]
    %v186 = vld [vmem:[#allocation2 + $0x250] sm:$0xff]
    %v187 = vld [vmem:[#allocation2 + $0x258] sm:$0xff]
    %v188 = vld [vmem:[#allocation2 + $0x260] sm:$0xff]
    %v189 = vld [vmem:[#allocation2 + $0x268] sm:$0xff]
    %v190 = vld [vmem:[#allocation2 + $0x270] sm:$0xff]
    %v191 = vpack.c.bf16 %v112, %v112
    %v192 = vpack.c.bf16 %v113, %v113
    %v193 = vpack.c.bf16 %v114, %v114
    %v194 = vpack.c.bf16 %v115, %v115
    %v195 = vpack.c.bf16 %v116, %v116
    %v196 = vpack.c.bf16 %v117, %v117
    %v197 = vpack.c.bf16 %v118, %v118
    %v198 = vpack.c.bf16 %v119, %v119
    %v199 = vpack.c.bf16 %v120, %v120
    %v200 = vpack.c.bf16 %v121, %v121
    %v201 = vpack.c.bf16 %v122, %v122
    %v202 = vpack.c.bf16 %v123, %v123
    %v203 = vpack.c.bf16 %v124, %v124
    %v204 = vpack.c.bf16 %v125, %v125
    %v205 = vpack.c.bf16 %v126, %v126
    %v206 = vpack.c.bf16 %v127, %v127
    %v207 = vpack.c.bf16 %v128, %v128
    %v208 = vpack.c.bf16 %v129, %v129
    %v209 = vpack.c.bf16 %v130, %v130
    %v210 = vpack.c.bf16 %v131, %v131
    %v211 = vpack.c.bf16 %v132, %v132
    %v212 = vpack.c.bf16 %v133, %v133
    %v213 = vpack.c.bf16 %v134, %v134
    %v214 = vpack.c.bf16 %v135, %v135
    %v215 = vpack.c.bf16 %v136, %v136
    %v216 = vpack.c.bf16 %v137, %v137
    %v217 = vpack.c.bf16 %v138, %v138
    %v218 = vpack.c.bf16 %v139, %v139
    %v219 = vpack.c.bf16 %v140, %v140
    %v220 = vpack.c.bf16 %v141, %v141
    %v221 = vpack.c.bf16 %v142, %v142
    %v222 = vpack.c.bf16 %v143, %v143
    %v223 = vpack.c.bf16 %v144, %v144
    %v224 = vpack.c.bf16 %v145, %v145
    %v225 = vpack.c.bf16 %v146, %v146
    %v226 = vpack.c.bf16 %v147, %v147
    %v227 = vpack.c.bf16 %v148, %v148
    %v228 = vpack.c.bf16 %v149, %v149
    %v229 = vpack.c.bf16 %v150, %v150
    %v230 = vpack.c.bf16 %v151, %v151
    %v231 = vpack.c.bf16 %v152, %v152
    %v232 = vpack.c.bf16 %v153, %v153
    %v233 = vpack.c.bf16 %v154, %v154
    %v234 = vpack.c.bf16 %v155, %v155
    %v235 = vpack.c.bf16 %v156, %v156
    %v236 = vpack.c.bf16 %v157, %v157
    %v237 = vpack.c.bf16 %v158, %v158
    %v238 = vpack.c.bf16 %v159, %v159
    %v239 = vpack.c.bf16 %v160, %v160
    %v240 = vpack.c.bf16 %v161, %v161
    %v241 = vpack.c.bf16 %v162, %v162
    %v242 = vpack.c.bf16 %v163, %v163
    %v243 = vpack.c.bf16 %v164, %v164
    %v244 = vpack.c.bf16 %v165, %v165
    %v245 = vpack.c.bf16 %v166, %v166
    %v246 = vpack.c.bf16 %v167, %v167
    %v247 = vpack.c.bf16 %v168, %v168
    %v248 = vpack.c.bf16 %v169, %v169
    %v249 = vpack.c.bf16 %v170, %v170
    %v250 = vpack.c.bf16 %v171, %v171
    %v251 = vpack.c.bf16 %v172, %v172
    %v252 = vpack.c.bf16 %v173, %v173
    %v253 = vpack.c.bf16 %v174, %v174
    %v254 = vpack.c.bf16 %v175, %v175
    %v255 = vpack.c.bf16 %v176, %v176
    %v256 = vpack.c.bf16 %v177, %v177
    %v257 = vpack.c.bf16 %v178, %v178
    %v258 = vpack.c.bf16 %v179, %v179
    %v259 = vpack.c.bf16 %v180, %v180
    %v260 = vpack.c.bf16 %v181, %v181
    %v261 = vpack.c.bf16 %v182, %v182
    %v262 = vpack.c.bf16 %v183, %v183
    %v263 = vpack.c.bf16 %v184, %v184
    %v264 = vpack.c.bf16 %v185, %v185
    %v265 = vpack.c.bf16 %v186, %v186
    %v266 = vpack.c.bf16 %v187, %v187
    %v267 = vpack.c.bf16 %v188, %v188
    %v268 = vpack.c.bf16 %v189, %v189
    %v269 = vpack.c.bf16 %v190, %v190
    %v270 = vld [vmem:[#allocation5] sm:$0xff]
    %v271 = vld [vmem:[#allocation5 + $0x8] sm:$0xff]
    %v272 = vld [vmem:[#allocation5 + $0x10] sm:$0xff]
    %v273 = vld [vmem:[#allocation5 + $0x18] sm:$0xff]
    %v274 = vld [vmem:[#allocation5 + $0x20] sm:$0xff]
    %v275 = vld [vmem:[#allocation5 + $0x28] sm:$0xff]
    %v276 = vld [vmem:[#allocation5 + $0x30] sm:$0xff]
    %v277 = vld [vmem:[#allocation5 + $0x38] sm:$0xff]
    %v278 = vld [vmem:[#allocation5 + $0x40] sm:$0xff]
    %v279 = vld [vmem:[#allocation5 + $0x48] sm:$0xff]
    %v280 = vld [vmem:[#allocation5 + $0x50] sm:$0xff]
    %v281 = vld [vmem:[#allocation5 + $0x58] sm:$0xff]
    %v282 = vld [vmem:[#allocation5 + $0x60] sm:$0xff]
    %v283 = vld [vmem:[#allocation5 + $0x68] sm:$0xff]
    %v284 = vld [vmem:[#allocation5 + $0x70] sm:$0xff]
    %v285 = vld [vmem:[#allocation5 + $0x78] sm:$0xff]
    %v286 = vld [vmem:[#allocation5 + $0x80] sm:$0xff]
    %v287 = vld [vmem:[#allocation5 + $0x88] sm:$0xff]
    %v288 = vld [vmem:[#allocation5 + $0x90] sm:$0xff]
    %v289 = vld [vmem:[#allocation5 + $0x98] sm:$0xff]
    %v290 = vld [vmem:[#allocation5 + $0xa0] sm:$0xff]
    %v291 = vld [vmem:[#allocation5 + $0xa8] sm:$0xff]
    %v292 = vld [vmem:[#allocation5 + $0xb0] sm:$0xff]
    %v293 = vld [vmem:[#allocation5 + $0xb8] sm:$0xff]
    %v294 = vld [vmem:[#allocation5 + $0xc0] sm:$0xff]
    %v295 = vld [vmem:[#allocation5 + $0xc8] sm:$0xff]
    %v296 = vld [vmem:[#allocation5 + $0xd0] sm:$0xff]
    %v297 = vld [vmem:[#allocation5 + $0xd8] sm:$0xff]
    %v298 = vld [vmem:[#allocation5 + $0xe0] sm:$0xff]
    %v299 = vld [vmem:[#allocation5 + $0xe8] sm:$0xff]
    %v300 = vld [vmem:[#allocation5 + $0xf0] sm:$0xff]
    %v301 = vld [vmem:[#allocation5 + $0xf8] sm:$0xff]
    %v302 = vld [vmem:[#allocation5 + $0x100] sm:$0xff]
    %v303 = vld [vmem:[#allocation5 + $0x108] sm:$0xff]
    %v304 = vld [vmem:[#allocation5 + $0x110] sm:$0xff]
    %v305 = vld [vmem:[#allocation5 + $0x118] sm:$0xff]
    %v306 = vld [vmem:[#allocation5 + $0x120] sm:$0xff]
    %v307 = vld [vmem:[#allocation5 + $0x128] sm:$0xff]
    %v308 = vld [vmem:[#allocation5 + $0x130] sm:$0xff]
    %v309 = vld [vmem:[#allocation5 + $0x138] sm:$0xff]
    %v310 = vld [vmem:[#allocation5 + $0x140] sm:$0xff]
    %v311 = vld [vmem:[#allocation5 + $0x148] sm:$0xff]
    %v312 = vld [vmem:[#allocation5 + $0x150] sm:$0xff]
    %v313 = vld [vmem:[#allocation5 + $0x158] sm:$0xff]
    %v314 = vld [vmem:[#allocation5 + $0x160] sm:$0xff]
    %v315 = vld [vmem:[#allocation5 + $0x168] sm:$0xff]
    %v316 = vld [vmem:[#allocation5 + $0x170] sm:$0xff]
    %v317 = vld [vmem:[#allocation5 + $0x178] sm:$0xff]
    %v318 = vld [vmem:[#allocation5 + $0x180] sm:$0xff]
    %v319 = vld [vmem:[#allocation5 + $0x188] sm:$0xff]
    %v320 = vld [vmem:[#allocation5 + $0x190] sm:$0xff]
    %v321 = vld [vmem:[#allocation5 + $0x198] sm:$0xff]
    %v322 = vld [vmem:[#allocation5 + $0x1a0] sm:$0xff]
    %v323 = vld [vmem:[#allocation5 + $0x1a8] sm:$0xff]
    %v324 = vld [vmem:[#allocation5 + $0x1b0] sm:$0xff]
    %v325 = vld [vmem:[#allocation5 + $0x1b8] sm:$0xff]
    %v326 = vld [vmem:[#allocation5 + $0x1c0] sm:$0xff]
    %v327 = vld [vmem:[#allocation5 + $0x1c8] sm:$0xff]
    %v328 = vld [vmem:[#allocation5 + $0x1d0] sm:$0xff]
    %v329 = vld [vmem:[#allocation5 + $0x1d8] sm:$0xff]
    %v330 = vld [vmem:[#allocation5 + $0x1e0] sm:$0xff]
    %v331 = vld [vmem:[#allocation5 + $0x1e8] sm:$0xff]
    %v332 = vld [vmem:[#allocation5 + $0x1f0] sm:$0xff]
    %v333 = vld [vmem:[#allocation5 + $0x1f8] sm:$0xff]
    %v334 = vld [vmem:[#allocation5 + $0x200] sm:$0xff]
    %v335 = vld [vmem:[#allocation5 + $0x208] sm:$0xff]
    %v336 = vld [vmem:[#allocation5 + $0x210] sm:$0xff]
    %v337 = vld [vmem:[#allocation5 + $0x218] sm:$0xff]
    %v338 = vld [vmem:[#allocation5 + $0x220] sm:$0xff]
    %v339 = vld [vmem:[#allocation5 + $0x228] sm:$0xff]
    %v340 = vld [vmem:[#allocation5 + $0x230] sm:$0xff]
    %v341 = vld [vmem:[#allocation5 + $0x238] sm:$0xff]
    %v342 = vld [vmem:[#allocation5 + $0x240] sm:$0xff]
    %v343 = vld [vmem:[#allocation5 + $0x248] sm:$0xff]
    %v344 = vld [vmem:[#allocation5 + $0x250] sm:$0xff]
    %v345 = vld [vmem:[#allocation5 + $0x258] sm:$0xff]
    %v346 = vld [vmem:[#allocation5 + $0x260] sm:$0xff]
    %v347 = vld [vmem:[#allocation5 + $0x268] sm:$0xff]
    %v348 = vld [vmem:[#allocation5 + $0x270] sm:$0xff]
    %v349 = vld [vmem:[#allocation5 + $0x278] sm:$0xff]
    %v350 = vld [vmem:[#allocation5 + $0x280] sm:$0xff]
    %v351 = vld [vmem:[#allocation5 + $0x288] sm:$0xff]
    %v352 = vld [vmem:[#allocation5 + $0x290] sm:$0xff]
    %v353 = vld [vmem:[#allocation5 + $0x298] sm:$0xff]
    %v354 = vld [vmem:[#allocation5 + $0x2a0] sm:$0xff]
    %v355 = vld [vmem:[#allocation5 + $0x2a8] sm:$0xff]
    %v356 = vld [vmem:[#allocation5 + $0x2b0] sm:$0xff]
    %v357 = vld [vmem:[#allocation5 + $0x2b8] sm:$0xff]
    %v358 = vld [vmem:[#allocation5 + $0x2c0] sm:$0xff]
    %v359 = vld [vmem:[#allocation5 + $0x2c8] sm:$0xff]
    %v360 = vld [vmem:[#allocation5 + $0x2d0] sm:$0xff]
    %v361 = vld [vmem:[#allocation5 + $0x2d8] sm:$0xff]
    %v362 = vld [vmem:[#allocation5 + $0x2e0] sm:$0xff]
    %v363 = vld [vmem:[#allocation5 + $0x2e8] sm:$0xff]
    %v364 = vld [vmem:[#allocation5 + $0x2f0] sm:$0xff]
    %v365 = vld [vmem:[#allocation5 + $0x2f8] sm:$0xff]
    %v366 = vld [vmem:[#allocation5 + $0x300] sm:$0xff]
    %v367 = vld [vmem:[#allocation5 + $0x308] sm:$0xff]
    %v368 = vld [vmem:[#allocation5 + $0x310] sm:$0xff]
    %v369 = vld [vmem:[#allocation5 + $0x318] sm:$0xff]
    %v370 = vld [vmem:[#allocation5 + $0x320] sm:$0xff]
    %v371 = vld [vmem:[#allocation5 + $0x328] sm:$0xff]
    %v372 = vld [vmem:[#allocation5 + $0x330] sm:$0xff]
    %v373 = vld [vmem:[#allocation5 + $0x338] sm:$0xff]
    %v374 = vld [vmem:[#allocation5 + $0x340] sm:$0xff]
    %v375 = vld [vmem:[#allocation5 + $0x348] sm:$0xff]
    %v376 = vld [vmem:[#allocation5 + $0x350] sm:$0xff]
    %v377 = vld [vmem:[#allocation5 + $0x358] sm:$0xff]
    %v378 = vld [vmem:[#allocation5 + $0x360] sm:$0xff]
    %v379 = vld [vmem:[#allocation5 + $0x368] sm:$0xff]
    %v380 = vld [vmem:[#allocation5 + $0x370] sm:$0xff]
    %v381 = vld [vmem:[#allocation5 + $0x378] sm:$0xff]
    %v382 = vld [vmem:[#allocation5 + $0x380] sm:$0xff]
    %v383 = vld [vmem:[#allocation5 + $0x388] sm:$0xff]
    %v384 = vld [vmem:[#allocation5 + $0x390] sm:$0xff]
    %v385 = vld [vmem:[#allocation5 + $0x398] sm:$0xff]
    %v386 = vld [vmem:[#allocation5 + $0x3a0] sm:$0xff]
    %v387 = vld [vmem:[#allocation5 + $0x3a8] sm:$0xff]
    %v388 = vld [vmem:[#allocation5 + $0x3b0] sm:$0xff]
    %v389 = vld [vmem:[#allocation5 + $0x3b8] sm:$0xff]
    %v390 = vld [vmem:[#allocation5 + $0x3c0] sm:$0xff]
    %v391 = vld [vmem:[#allocation5 + $0x3c8] sm:$0xff]
    %v392 = vld [vmem:[#allocation5 + $0x3d0] sm:$0xff]
    %v393 = vld [vmem:[#allocation5 + $0x3d8] sm:$0xff]
    %v394 = vld [vmem:[#allocation5 + $0x3e0] sm:$0xff]
    %v395 = vld [vmem:[#allocation5 + $0x3e8] sm:$0xff]
    %v396 = vld [vmem:[#allocation5 + $0x3f0] sm:$0xff]
    %v397 = vld [vmem:[#allocation5 + $0x3f8] sm:$0xff]
    %v398 = vld [vmem:[#allocation5 + $0x400] sm:$0xff]
    %v399 = vld [vmem:[#allocation5 + $0x408] sm:$0xff]
    %v400 = vld [vmem:[#allocation5 + $0x410] sm:$0xff]
    %v401 = vld [vmem:[#allocation5 + $0x418] sm:$0xff]
    %v402 = vld [vmem:[#allocation5 + $0x420] sm:$0xff]
    %v403 = vld [vmem:[#allocation5 + $0x428] sm:$0xff]
    %v404 = vld [vmem:[#allocation5 + $0x430] sm:$0xff]
    %v405 = vld [vmem:[#allocation5 + $0x438] sm:$0xff]
    %v406 = vld [vmem:[#allocation5 + $0x440] sm:$0xff]
    %v407 = vld [vmem:[#allocation5 + $0x448] sm:$0xff]
    %v408 = vld [vmem:[#allocation5 + $0x450] sm:$0xff]
    %v409 = vld [vmem:[#allocation5 + $0x458] sm:$0xff]
    %v410 = vld [vmem:[#allocation5 + $0x460] sm:$0xff]
    %v411 = vld [vmem:[#allocation5 + $0x468] sm:$0xff]
    %v412 = vld [vmem:[#allocation5 + $0x470] sm:$0xff]
    %v413 = vld [vmem:[#allocation5 + $0x478] sm:$0xff]
    %v414 = vld [vmem:[#allocation5 + $0x480] sm:$0xff]
    %v415 = vld [vmem:[#allocation5 + $0x488] sm:$0xff]
    %v416 = vld [vmem:[#allocation5 + $0x490] sm:$0xff]
    %v417 = vld [vmem:[#allocation5 + $0x498] sm:$0xff]
    %v418 = vld [vmem:[#allocation5 + $0x4a0] sm:$0xff]
    %v419 = vld [vmem:[#allocation5 + $0x4a8] sm:$0xff]
    %v420 = vld [vmem:[#allocation5 + $0x4b0] sm:$0xff]
    %v421 = vld [vmem:[#allocation5 + $0x4b8] sm:$0xff]
    %v422 = vld [vmem:[#allocation5 + $0x4c0] sm:$0xff]
    %v423 = vld [vmem:[#allocation5 + $0x4c8] sm:$0xff]
    %v424 = vld [vmem:[#allocation5 + $0x4d0] sm:$0xff]
    %v425 = vld [vmem:[#allocation5 + $0x4d8] sm:$0xff]
    %v426 = vld [vmem:[#allocation5 + $0x4e0] sm:$0xff]
    %v427 = vld [vmem:[#allocation5 + $0x4e8] sm:$0xff]
    %v428 = vld [vmem:[#allocation5 + $0x4f0] sm:$0xff]
    %v429 = vld [vmem:[#allocation5 + $0x4f8] sm:$0xff]
    %v430 = vld [vmem:[#allocation5 + $0x500] sm:$0xff]
    %v431 = vld [vmem:[#allocation5 + $0x508] sm:$0xff]
    %v432 = vld [vmem:[#allocation5 + $0x510] sm:$0xff]
    %v433 = vld [vmem:[#allocation5 + $0x518] sm:$0xff]
    %v434 = vld [vmem:[#allocation5 + $0x520] sm:$0xff]
    %v435 = vld [vmem:[#allocation5 + $0x528] sm:$0xff]
    %v436 = vld [vmem:[#allocation5 + $0x530] sm:$0xff]
    %v437 = vld [vmem:[#allocation5 + $0x538] sm:$0xff]
    %v438 = vld [vmem:[#allocation5 + $0x540] sm:$0xff]
    %v439 = vld [vmem:[#allocation5 + $0x548] sm:$0xff]
    %v440 = vld [vmem:[#allocation5 + $0x550] sm:$0xff]
    %v441 = vld [vmem:[#allocation5 + $0x558] sm:$0xff]
    %v442 = vld [vmem:[#allocation5 + $0x560] sm:$0xff]
    %v443 = vld [vmem:[#allocation5 + $0x568] sm:$0xff]
    %v444 = vld [vmem:[#allocation5 + $0x570] sm:$0xff]
    %v445 = vld [vmem:[#allocation5 + $0x578] sm:$0xff]
    %v446 = vld [vmem:[#allocation5 + $0x580] sm:$0xff]
    %v447 = vld [vmem:[#allocation5 + $0x588] sm:$0xff]
    %v448 = vld [vmem:[#allocation5 + $0x590] sm:$0xff]
    %v449 = vld [vmem:[#allocation5 + $0x598] sm:$0xff]
    %v450 = vld [vmem:[#allocation5 + $0x5a0] sm:$0xff]
    %v451 = vld [vmem:[#allocation5 + $0x5a8] sm:$0xff]
    %v452 = vld [vmem:[#allocation5 + $0x5b0] sm:$0xff]
    %v453 = vld [vmem:[#allocation5 + $0x5b8] sm:$0xff]
    %v454 = vld [vmem:[#allocation5 + $0x5c0] sm:$0xff]
    %v455 = vld [vmem:[#allocation5 + $0x5c8] sm:$0xff]
    %v456 = vld [vmem:[#allocation5 + $0x5d0] sm:$0xff]
    %v457 = vld [vmem:[#allocation5 + $0x5d8] sm:$0xff]
    %v458 = vld [vmem:[#allocation5 + $0x5e0] sm:$0xff]
    %v459 = vld [vmem:[#allocation5 + $0x5e8] sm:$0xff]
    %v460 = vld [vmem:[#allocation5 + $0x5f0] sm:$0xff]
    %v461 = vld [vmem:[#allocation5 + $0x5f8] sm:$0xff]
    %v462 = vld [vmem:[#allocation5 + $0x600] sm:$0xff]
    %v463 = vld [vmem:[#allocation5 + $0x608] sm:$0xff]
    %v464 = vld [vmem:[#allocation5 + $0x610] sm:$0xff]
    %v465 = vld [vmem:[#allocation5 + $0x618] sm:$0xff]
    %v466 = vld [vmem:[#allocation5 + $0x620] sm:$0xff]
    %v467 = vld [vmem:[#allocation5 + $0x628] sm:$0xff]
    %v468 = vld [vmem:[#allocation5 + $0x630] sm:$0xff]
    %v469 = vld [vmem:[#allocation5 + $0x638] sm:$0xff]
    %v470 = vld [vmem:[#allocation5 + $0x640] sm:$0xff]
    %v471 = vld [vmem:[#allocation5 + $0x648] sm:$0xff]
    %v472 = vld [vmem:[#allocation5 + $0x650] sm:$0xff]
    %v473 = vld [vmem:[#allocation5 + $0x658] sm:$0xff]
    %v474 = vld [vmem:[#allocation5 + $0x660] sm:$0xff]
    %v475 = vld [vmem:[#allocation5 + $0x668] sm:$0xff]
    %v476 = vld [vmem:[#allocation5 + $0x670] sm:$0xff]
    %v477 = vld [vmem:[#allocation5 + $0x678] sm:$0xff]
    %v478 = vld [vmem:[#allocation5 + $0x680] sm:$0xff]
    %v479 = vld [vmem:[#allocation5 + $0x688] sm:$0xff]
    %v480 = vld [vmem:[#allocation5 + $0x690] sm:$0xff]
    %v481 = vld [vmem:[#allocation5 + $0x698] sm:$0xff]
    %v482 = vld [vmem:[#allocation5 + $0x6a0] sm:$0xff]
    %v483 = vld [vmem:[#allocation5 + $0x6a8] sm:$0xff]
    %v484 = vld [vmem:[#allocation5 + $0x6b0] sm:$0xff]
    %v485 = vld [vmem:[#allocation5 + $0x6b8] sm:$0xff]
    %v486 = vld [vmem:[#allocation5 + $0x6c0] sm:$0xff]
    %v487 = vld [vmem:[#allocation5 + $0x6c8] sm:$0xff]
    %v488 = vld [vmem:[#allocation5 + $0x6d0] sm:$0xff]
    %v489 = vld [vmem:[#allocation5 + $0x6d8] sm:$0xff]
    %v490 = vld [vmem:[#allocation5 + $0x6e0] sm:$0xff]
    %v491 = vld [vmem:[#allocation5 + $0x6e8] sm:$0xff]
    %v492 = vld [vmem:[#allocation5 + $0x6f0] sm:$0xff]
    %v493 = vld [vmem:[#allocation5 + $0x6f8] sm:$0xff]
    %v494 = vld [vmem:[#allocation5 + $0x700] sm:$0xff]
    %v495 = vld [vmem:[#allocation5 + $0x708] sm:$0xff]
    %v496 = vld [vmem:[#allocation5 + $0x710] sm:$0xff]
    %v497 = vld [vmem:[#allocation5 + $0x718] sm:$0xff]
    %v498 = vld [vmem:[#allocation5 + $0x720] sm:$0xff]
    %v499 = vld [vmem:[#allocation5 + $0x728] sm:$0xff]
    %v500 = vld [vmem:[#allocation5 + $0x730] sm:$0xff]
    %v501 = vld [vmem:[#allocation5 + $0x738] sm:$0xff]
    %v502 = vld [vmem:[#allocation5 + $0x740] sm:$0xff]
    %v503 = vld [vmem:[#allocation5 + $0x748] sm:$0xff]
    %v504 = vld [vmem:[#allocation5 + $0x750] sm:$0xff]
    %v505 = vld [vmem:[#allocation5 + $0x758] sm:$0xff]
    %v506 = vld [vmem:[#allocation5 + $0x760] sm:$0xff]
    %v507 = vld [vmem:[#allocation5 + $0x768] sm:$0xff]
    %v508 = vld [vmem:[#allocation5 + $0x770] sm:$0xff]
    %v509 = vld [vmem:[#allocation5 + $0x778] sm:$0xff]
    %v510 = vld [vmem:[#allocation5 + $0x780] sm:$0xff]
    %v511 = vld [vmem:[#allocation5 + $0x788] sm:$0xff]
    %v512 = vld [vmem:[#allocation5 + $0x790] sm:$0xff]
    %v513 = vld [vmem:[#allocation5 + $0x798] sm:$0xff]
    %v514 = vld [vmem:[#allocation5 + $0x7a0] sm:$0xff]
    %v515 = vld [vmem:[#allocation5 + $0x7a8] sm:$0xff]
    %v516 = vld [vmem:[#allocation5 + $0x7b0] sm:$0xff]
    %v517 = vld [vmem:[#allocation5 + $0x7b8] sm:$0xff]
    %v518 = vld [vmem:[#allocation5 + $0x7c0] sm:$0xff]
    %v519 = vld [vmem:[#allocation5 + $0x7c8] sm:$0xff]
    %v520 = vld [vmem:[#allocation5 + $0x7d0] sm:$0xff]
    %v521 = vld [vmem:[#allocation5 + $0x7d8] sm:$0xff]
    %v522 = vld [vmem:[#allocation5 + $0x7e0] sm:$0xff]
    %v523 = vld [vmem:[#allocation5 + $0x7e8] sm:$0xff]
    %v524 = vld [vmem:[#allocation5 + $0x7f0] sm:$0xff]
    %v525 = vld [vmem:[#allocation5 + $0x7f8] sm:$0xff]
    %v526 = vld [vmem:[#allocation5 + $0x800] sm:$0xff]
    %v527 = vld [vmem:[#allocation5 + $0x808] sm:$0xff]
    %v528 = vld [vmem:[#allocation5 + $0x810] sm:$0xff]
    %v529 = vld [vmem:[#allocation5 + $0x818] sm:$0xff]
    %v530 = vld [vmem:[#allocation5 + $0x820] sm:$0xff]
    %v531 = vld [vmem:[#allocation5 + $0x828] sm:$0xff]
    %v532 = vld [vmem:[#allocation5 + $0x830] sm:$0xff]
    %v533 = vld [vmem:[#allocation5 + $0x838] sm:$0xff]
    %v534 = vld [vmem:[#allocation5 + $0x840] sm:$0xff]
    %v535 = vld [vmem:[#allocation5 + $0x848] sm:$0xff]
    %v536 = vld [vmem:[#allocation5 + $0x850] sm:$0xff]
    %v537 = vld [vmem:[#allocation5 + $0x858] sm:$0xff]
    %v538 = vld [vmem:[#allocation5 + $0x860] sm:$0xff]
    %v539 = vld [vmem:[#allocation5 + $0x868] sm:$0xff]
    %v540 = vld [vmem:[#allocation5 + $0x870] sm:$0xff]
    %v541 = vld [vmem:[#allocation5 + $0x878] sm:$0xff]
    %v542 = vld [vmem:[#allocation5 + $0x880] sm:$0xff]
    %v543 = vld [vmem:[#allocation5 + $0x888] sm:$0xff]
    %v544 = vld [vmem:[#allocation5 + $0x890] sm:$0xff]
    %v545 = vld [vmem:[#allocation5 + $0x898] sm:$0xff]
    %v546 = vld [vmem:[#allocation5 + $0x8a0] sm:$0xff]
    %v547 = vld [vmem:[#allocation5 + $0x8a8] sm:$0xff]
    %v548 = vld [vmem:[#allocation5 + $0x8b0] sm:$0xff]
    %v549 = vld [vmem:[#allocation5 + $0x8b8] sm:$0xff]
    %v550 = vld [vmem:[#allocation5 + $0x8c0] sm:$0xff]
    %v551 = vld [vmem:[#allocation5 + $0x8c8] sm:$0xff]
    %v552 = vld [vmem:[#allocation5 + $0x8d0] sm:$0xff]
    %v553 = vld [vmem:[#allocation5 + $0x8d8] sm:$0xff]
    %v554 = vld [vmem:[#allocation5 + $0x8e0] sm:$0xff]
    %v555 = vld [vmem:[#allocation5 + $0x8e8] sm:$0xff]
    %v556 = vld [vmem:[#allocation5 + $0x8f0] sm:$0xff]
    %v557 = vld [vmem:[#allocation5 + $0x8f8] sm:$0xff]
    %v558 = vld [vmem:[#allocation5 + $0x900] sm:$0xff]
    %v559 = vld [vmem:[#allocation5 + $0x908] sm:$0xff]
    %v560 = vld [vmem:[#allocation5 + $0x910] sm:$0xff]
    %v561 = vld [vmem:[#allocation5 + $0x918] sm:$0xff]
    %v562 = vld [vmem:[#allocation5 + $0x920] sm:$0xff]
    %v563 = vld [vmem:[#allocation5 + $0x928] sm:$0xff]
    %v564 = vld [vmem:[#allocation5 + $0x930] sm:$0xff]
    %v565 = vld [vmem:[#allocation5 + $0x938] sm:$0xff]
    %v566 = vld [vmem:[#allocation5 + $0x940] sm:$0xff]
    %v567 = vld [vmem:[#allocation5 + $0x948] sm:$0xff]
    %v568 = vld [vmem:[#allocation5 + $0x950] sm:$0xff]
    %v569 = vld [vmem:[#allocation5 + $0x958] sm:$0xff]
    %v570 = vld [vmem:[#allocation5 + $0x960] sm:$0xff]
    %v571 = vld [vmem:[#allocation5 + $0x968] sm:$0xff]
    %v572 = vld [vmem:[#allocation5 + $0x970] sm:$0xff]
    %v573 = vld [vmem:[#allocation5 + $0x978] sm:$0xff]
    %v574 = vld [vmem:[#allocation5 + $0x980] sm:$0xff]
    %v575 = vld [vmem:[#allocation5 + $0x988] sm:$0xff]
    %v576 = vld [vmem:[#allocation5 + $0x990] sm:$0xff]
    %v577 = vld [vmem:[#allocation5 + $0x998] sm:$0xff]
    %v578 = vld [vmem:[#allocation5 + $0x9a0] sm:$0xff]
    %v579 = vld [vmem:[#allocation5 + $0x9a8] sm:$0xff]
    %v580 = vld [vmem:[#allocation5 + $0x9b0] sm:$0xff]
    %v581 = vld [vmem:[#allocation5 + $0x9b8] sm:$0xff]
    %v582 = vld [vmem:[#allocation5 + $0x9c0] sm:$0xff]
    %v583 = vld [vmem:[#allocation5 + $0x9c8] sm:$0xff]
    %v584 = vld [vmem:[#allocation5 + $0x9d0] sm:$0xff]
    %v585 = vld [vmem:[#allocation5 + $0x9d8] sm:$0xff]
    %v586 = vpack.c.bf16 %v349, %v270
    %v587 = vpack.c.bf16 %v350, %v271
    %v588 = vpack.c.bf16 %v351, %v272
    %v589 = vpack.c.bf16 %v352, %v273
    %v590 = vpack.c.bf16 %v353, %v274
    %v591 = vpack.c.bf16 %v354, %v275
    %v592 = vpack.c.bf16 %v355, %v276
    %v593 = vpack.c.bf16 %v356, %v277
    %v594 = vpack.c.bf16 %v357, %v278
    %v595 = vpack.c.bf16 %v358, %v279
    %v596 = vpack.c.bf16 %v359, %v280
    %v597 = vpack.c.bf16 %v360, %v281
    %v598 = vpack.c.bf16 %v361, %v282
    %v599 = vpack.c.bf16 %v362, %v283
    %v600 = vpack.c.bf16 %v363, %v284
    %v601 = vpack.c.bf16 %v364, %v285
    %v602 = vpack.c.bf16 %v365, %v286
    %v603 = vpack.c.bf16 %v366, %v287
    %v604 = vpack.c.bf16 %v367, %v288
    %v605 = vpack.c.bf16 %v368, %v289
    %v606 = vpack.c.bf16 %v369, %v290
    %v607 = vpack.c.bf16 %v370, %v291
    %v608 = vpack.c.bf16 %v371, %v292
    %v609 = vpack.c.bf16 %v372, %v293
    %v610 = vpack.c.bf16 %v373, %v294
    %v611 = vpack.c.bf16 %v374, %v295
    %v612 = vpack.c.bf16 %v375, %v296
    %v613 = vpack.c.bf16 %v376, %v297
    %v614 = vpack.c.bf16 %v377, %v298
    %v615 = vpack.c.bf16 %v378, %v299
    %v616 = vpack.c.bf16 %v379, %v300
    %v617 = vpack.c.bf16 %v380, %v301
    %v618 = vpack.c.bf16 %v381, %v302
    %v619 = vpack.c.bf16 %v382, %v303
    %v620 = vpack.c.bf16 %v383, %v304
    %v621 = vpack.c.bf16 %v384, %v305
    %v622 = vpack.c.bf16 %v385, %v306
    %v623 = vpack.c.bf16 %v386, %v307
    %v624 = vpack.c.bf16 %v387, %v308
    %v625 = vpack.c.bf16 %v388, %v309
    %v626 = vpack.c.bf16 %v389, %v310
    %v627 = vpack.c.bf16 %v390, %v311
    %v628 = vpack.c.bf16 %v391, %v312
    %v629 = vpack.c.bf16 %v392, %v313
    %v630 = vpack.c.bf16 %v393, %v314
    %v631 = vpack.c.bf16 %v394, %v315
    %v632 = vpack.c.bf16 %v395, %v316
    %v633 = vpack.c.bf16 %v396, %v317
    %v634 = vpack.c.bf16 %v397, %v318
    %v635 = vpack.c.bf16 %v398, %v319
    %v636 = vpack.c.bf16 %v399, %v320
    %v637 = vpack.c.bf16 %v400, %v321
    %v638 = vpack.c.bf16 %v401, %v322
    %v639 = vpack.c.bf16 %v402, %v323
    %v640 = vpack.c.bf16 %v403, %v324
    %v641 = vpack.c.bf16 %v404, %v325
    %v642 = vpack.c.bf16 %v405, %v326
    %v643 = vpack.c.bf16 %v406, %v327
    %v644 = vpack.c.bf16 %v407, %v328
    %v645 = vpack.c.bf16 %v408, %v329
    %v646 = vpack.c.bf16 %v409, %v330
    %v647 = vpack.c.bf16 %v410, %v331
    %v648 = vpack.c.bf16 %v411, %v332
    %v649 = vpack.c.bf16 %v412, %v333
    %v650 = vpack.c.bf16 %v413, %v334
    %v651 = vpack.c.bf16 %v414, %v335
    %v652 = vpack.c.bf16 %v415, %v336
    %v653 = vpack.c.bf16 %v416, %v337
    %v654 = vpack.c.bf16 %v417, %v338
    %v655 = vpack.c.bf16 %v418, %v339
    %v656 = vpack.c.bf16 %v419, %v340
    %v657 = vpack.c.bf16 %v420, %v341
    %v658 = vpack.c.bf16 %v421, %v342
    %v659 = vpack.c.bf16 %v422, %v343
    %v660 = vpack.c.bf16 %v423, %v344
    %v661 = vpack.c.bf16 %v424, %v345
    %v662 = vpack.c.bf16 %v425, %v346
    %v663 = vpack.c.bf16 %v426, %v347
    %v664 = vpack.c.bf16 %v427, %v348
    %v665 = vpack.c.bf16 %v507, %v428
    %v666 = vpack.c.bf16 %v508, %v429
    %v667 = vpack.c.bf16 %v509, %v430
    %v668 = vpack.c.bf16 %v510, %v431
    %v669 = vpack.c.bf16 %v511, %v432
    %v670 = vpack.c.bf16 %v512, %v433
    %v671 = vpack.c.bf16 %v513, %v434
    %v672 = vpack.c.bf16 %v514, %v435
    %v673 = vpack.c.bf16 %v515, %v436
    %v674 = vpack.c.bf16 %v516, %v437
    %v675 = vpack.c.bf16 %v517, %v438
    %v676 = vpack.c.bf16 %v518, %v439
    %v677 = vpack.c.bf16 %v519, %v440
    %v678 = vpack.c.bf16 %v520, %v441
    %v679 = vpack.c.bf16 %v521, %v442
    %v680 = vpack.c.bf16 %v522, %v443
    %v681 = vpack.c.bf16 %v523, %v444
    %v682 = vpack.c.bf16 %v524, %v445
    %v683 = vpack.c.bf16 %v525, %v446
    %v684 = vpack.c.bf16 %v526, %v447
    %v685 = vpack.c.bf16 %v527, %v448
    %v686 = vpack.c.bf16 %v528, %v449
    %v687 = vpack.c.bf16 %v529, %v450
    %v688 = vpack.c.bf16 %v530, %v451
    %v689 = vpack.c.bf16 %v531, %v452
    %v690 = vpack.c.bf16 %v532, %v453
    %v691 = vpack.c.bf16 %v533, %v454
    %v692 = vpack.c.bf16 %v534, %v455
    %v693 = vpack.c.bf16 %v535, %v456
    %v694 = vpack.c.bf16 %v536, %v457
    %v695 = vpack.c.bf16 %v537, %v458
    %v696 = vpack.c.bf16 %v538, %v459
    %v697 = vpack.c.bf16 %v539, %v460
    %v698 = vpack.c.bf16 %v540, %v461
    %v699 = vpack.c.bf16 %v541, %v462
    %v700 = vpack.c.bf16 %v542, %v463
    %v701 = vpack.c.bf16 %v543, %v464
    %v702 = vpack.c.bf16 %v544, %v465
    %v703 = vpack.c.bf16 %v545, %v466
    %v704 = vpack.c.bf16 %v546, %v467
    %v705 = vpack.c.bf16 %v547, %v468
    %v706 = vpack.c.bf16 %v548, %v469
    %v707 = vpack.c.bf16 %v549, %v470
    %v708 = vpack.c.bf16 %v550, %v471
    %v709 = vpack.c.bf16 %v551, %v472
    %v710 = vpack.c.bf16 %v552, %v473
    %v711 = vpack.c.bf16 %v553, %v474
    %v712 = vpack.c.bf16 %v554, %v475
    %v713 = vpack.c.bf16 %v555, %v476
    %v714 = vpack.c.bf16 %v556, %v477
    %v715 = vpack.c.bf16 %v557, %v478
    %v716 = vpack.c.bf16 %v558, %v479
    %v717 = vpack.c.bf16 %v559, %v480
    %v718 = vpack.c.bf16 %v560, %v481
    %v719 = vpack.c.bf16 %v561, %v482
    %v720 = vpack.c.bf16 %v562, %v483
    %v721 = vpack.c.bf16 %v563, %v484
    %v722 = vpack.c.bf16 %v564, %v485
    %v723 = vpack.c.bf16 %v565, %v486
    %v724 = vpack.c.bf16 %v566, %v487
    %v725 = vpack.c.bf16 %v567, %v488
    %v726 = vpack.c.bf16 %v568, %v489
    %v727 = vpack.c.bf16 %v569, %v490
    %v728 = vpack.c.bf16 %v570, %v491
    %v729 = vpack.c.bf16 %v571, %v492
    %v730 = vpack.c.bf16 %v572, %v493
    %v731 = vpack.c.bf16 %v573, %v494
    %v732 = vpack.c.bf16 %v574, %v495
    %v733 = vpack.c.bf16 %v575, %v496
    %v734 = vpack.c.bf16 %v576, %v497
    %v735 = vpack.c.bf16 %v577, %v498
    %v736 = vpack.c.bf16 %v578, %v499
    %v737 = vpack.c.bf16 %v579, %v500
    %v738 = vpack.c.bf16 %v580, %v501
    %v739 = vpack.c.bf16 %v581, %v502
    %v740 = vpack.c.bf16 %v582, %v503
    %v741 = vpack.c.bf16 %v583, %v504
    %v742 = vpack.c.bf16 %v584, %v505
    %v743 = vpack.c.bf16 %v585, %v506
    %v744 = vld [vmem:[#allocation7] sm:$0x1]
    %v746 = vperm.slane %v744, 0
    %vm748 = vcmask 130048
    %v750 = vsel %vm748, %v269, 0
    %v753 = vsel %vm748, %v664, 0
    %v756 = vsel %vm748, %v743, 0
    %758 = vmatpush.bf16.xpose.msra.mxu0 0
    %759 = vmatpush.bf16.xpose.msra.mxu0 0
    %760 = vmatpush.bf16.xpose.msra.mxu0 0
    %761 = vmatpush.bf16.xpose.msra.mxu0 0
    %762 = vmatpush.bf16.xpose.msra.mxu0 0
    %763 = vmatpush.bf16.xpose.msra.mxu0 0
    %764 = vmatpush.bf16.xpose.msra.mxu0 %v665
    %765 = vmatpush.bf16.xpose.msra.mxu0 %v586
    %766 = vmatmul.bf16.gmra.mxu0 %v191
    %v767 = vpop.f32.mrf.mxu0
    %v768 = vadd.f32 %v746, %v767
    %v769 = vpop.f32.mrf.mxu0
    %770 = vdwg.mxu0
    %771 = vmatpush.bf16.xpose.msra.mxu0 0
    %772 = vmatpush.bf16.xpose.msra.mxu0 0
    %773 = vmatpush.bf16.xpose.msra.mxu0 0
    %774 = vmatpush.bf16.xpose.msra.mxu0 0
    %775 = vmatpush.bf16.xpose.msra.mxu0 0
    %776 = vmatpush.bf16.xpose.msra.mxu0 0
    %777 = vmatpush.bf16.xpose.msra.mxu0 %v666
    %778 = vmatpush.bf16.xpose.msra.mxu0 %v587
    %779 = vmatmul.bf16.gmra.mxu0 %v192
    %v780 = vpop.f32.mrf.mxu0
    %v781 = vadd.f32 %v768, %v780
    %v782 = vpop.f32.mrf.mxu0
    %783 = vdwg.mxu0
    %784 = vmatpush.bf16.xpose.msra.mxu0 0
    %785 = vmatpush.bf16.xpose.msra.mxu0 0
    %786 = vmatpush.bf16.xpose.msra.mxu0 0
    %787 = vmatpush.bf16.xpose.msra.mxu0 0
    %788 = vmatpush.bf16.xpose.msra.mxu0 0
    %789 = vmatpush.bf16.xpose.msra.mxu0 0
    %790 = vmatpush.bf16.xpose.msra.mxu0 %v667
    %791 = vmatpush.bf16.xpose.msra.mxu0 %v588
    %792 = vmatmul.bf16.gmra.mxu0 %v193
    %v793 = vpop.f32.mrf.mxu0
    %v794 = vadd.f32 %v781, %v793
    %v795 = vpop.f32.mrf.mxu0
    %796 = vdwg.mxu0
    %797 = vmatpush.bf16.xpose.msra.mxu0 0
    %798 = vmatpush.bf16.xpose.msra.mxu0 0
    %799 = vmatpush.bf16.xpose.msra.mxu0 0
    %800 = vmatpush.bf16.xpose.msra.mxu0 0
    %801 = vmatpush.bf16.xpose.msra.mxu0 0
    %802 = vmatpush.bf16.xpose.msra.mxu0 0
    %803 = vmatpush.bf16.xpose.msra.mxu0 %v668
    %804 = vmatpush.bf16.xpose.msra.mxu0 %v589
    %805 = vmatmul.bf16.gmra.mxu0 %v194
    %v806 = vpop.f32.mrf.mxu0
    %v807 = vadd.f32 %v794, %v806
    %v808 = vpop.f32.mrf.mxu0
    %809 = vdwg.mxu0
    %810 = vmatpush.bf16.xpose.msra.mxu0 0
    %811 = vmatpush.bf16.xpose.msra.mxu0 0
    %812 = vmatpush.bf16.xpose.msra.mxu0 0
    %813 = vmatpush.bf16.xpose.msra.mxu0 0
    %814 = vmatpush.bf16.xpose.msra.mxu0 0
    %815 = vmatpush.bf16.xpose.msra.mxu0 0
    %816 = vmatpush.bf16.xpose.msra.mxu0 %v669
    %817 = vmatpush.bf16.xpose.msra.mxu0 %v590
    %818 = vmatmul.bf16.gmra.mxu0 %v195
    %v819 = vpop.f32.mrf.mxu0
    %v820 = vadd.f32 %v807, %v819
    %v821 = vpop.f32.mrf.mxu0
    %822 = vdwg.mxu0
    %823 = vmatpush.bf16.xpose.msra.mxu0 0
    %824 = vmatpush.bf16.xpose.msra.mxu0 0
    %825 = vmatpush.bf16.xpose.msra.mxu0 0
    %826 = vmatpush.bf16.xpose.msra.mxu0 0
    %827 = vmatpush.bf16.xpose.msra.mxu0 0
    %828 = vmatpush.bf16.xpose.msra.mxu0 0
    %829 = vmatpush.bf16.xpose.msra.mxu0 %v670
    %830 = vmatpush.bf16.xpose.msra.mxu0 %v591
    %831 = vmatmul.bf16.gmra.mxu0 %v196
    %v832 = vpop.f32.mrf.mxu0
    %v833 = vadd.f32 %v820, %v832
    %v834 = vpop.f32.mrf.mxu0
    %835 = vdwg.mxu0
    %836 = vmatpush.bf16.xpose.msra.mxu0 0
    %837 = vmatpush.bf16.xpose.msra.mxu0 0
    %838 = vmatpush.bf16.xpose.msra.mxu0 0
    %839 = vmatpush.bf16.xpose.msra.mxu0 0
    %840 = vmatpush.bf16.xpose.msra.mxu0 0
    %841 = vmatpush.bf16.xpose.msra.mxu0 0
    %842 = vmatpush.bf16.xpose.msra.mxu0 %v671
    %843 = vmatpush.bf16.xpose.msra.mxu0 %v592
    %844 = vmatmul.bf16.gmra.mxu0 %v197
    %v845 = vpop.f32.mrf.mxu0
    %v846 = vadd.f32 %v833, %v845
    %v847 = vpop.f32.mrf.mxu0
    %848 = vdwg.mxu0
    %849 = vmatpush.bf16.xpose.msra.mxu0 0
    %850 = vmatpush.bf16.xpose.msra.mxu0 0
    %851 = vmatpush.bf16.xpose.msra.mxu0 0
    %852 = vmatpush.bf16.xpose.msra.mxu0 0
    %853 = vmatpush.bf16.xpose.msra.mxu0 0
    %854 = vmatpush.bf16.xpose.msra.mxu0 0
    %855 = vmatpush.bf16.xpose.msra.mxu0 %v672
    %856 = vmatpush.bf16.xpose.msra.mxu0 %v593
    %857 = vmatmul.bf16.gmra.mxu0 %v198
    %v858 = vpop.f32.mrf.mxu0
    %v859 = vadd.f32 %v846, %v858
    %v860 = vpop.f32.mrf.mxu0
    %861 = vdwg.mxu0
    %862 = vmatpush.bf16.xpose.msra.mxu0 0
    %863 = vmatpush.bf16.xpose.msra.mxu0 0
    %864 = vmatpush.bf16.xpose.msra.mxu0 0
    %865 = vmatpush.bf16.xpose.msra.mxu0 0
    %866 = vmatpush.bf16.xpose.msra.mxu0 0
    %867 = vmatpush.bf16.xpose.msra.mxu0 0
    %868 = vmatpush.bf16.xpose.msra.mxu0 %v673
    %869 = vmatpush.bf16.xpose.msra.mxu0 %v594
    %870 = vmatmul.bf16.gmra.mxu0 %v199
    %v871 = vpop.f32.mrf.mxu0
    %v872 = vadd.f32 %v859, %v871
    %v873 = vpop.f32.mrf.mxu0
    %874 = vdwg.mxu0
    %875 = vmatpush.bf16.xpose.msra.mxu0 0
    %876 = vmatpush.bf16.xpose.msra.mxu0 0
    %877 = vmatpush.bf16.xpose.msra.mxu0 0
    %878 = vmatpush.bf16.xpose.msra.mxu0 0
    %879 = vmatpush.bf16.xpose.msra.mxu0 0
    %880 = vmatpush.bf16.xpose.msra.mxu0 0
    %881 = vmatpush.bf16.xpose.msra.mxu0 %v674
    %882 = vmatpush.bf16.xpose.msra.mxu0 %v595
    %883 = vmatmul.bf16.gmra.mxu0 %v200
    %v884 = vpop.f32.mrf.mxu0
    %v885 = vadd.f32 %v872, %v884
    %v886 = vpop.f32.mrf.mxu0
    %887 = vdwg.mxu0
    %888 = vmatpush.bf16.xpose.msra.mxu0 0
    %889 = vmatpush.bf16.xpose.msra.mxu0 0
    %890 = vmatpush.bf16.xpose.msra.mxu0 0
    %891 = vmatpush.bf16.xpose.msra.mxu0 0
    %892 = vmatpush.bf16.xpose.msra.mxu0 0
    %893 = vmatpush.bf16.xpose.msra.mxu0 0
    %894 = vmatpush.bf16.xpose.msra.mxu0 %v675
    %895 = vmatpush.bf16.xpose.msra.mxu0 %v596
    %896 = vmatmul.bf16.gmra.mxu0 %v201
    %v897 = vpop.f32.mrf.mxu0
    %v898 = vadd.f32 %v885, %v897
    %v899 = vpop.f32.mrf.mxu0
    %900 = vdwg.mxu0
    %901 = vmatpush.bf16.xpose.msra.mxu0 0
    %902 = vmatpush.bf16.xpose.msra.mxu0 0
    %903 = vmatpush.bf16.xpose.msra.mxu0 0
    %904 = vmatpush.bf16.xpose.msra.mxu0 0
    %905 = vmatpush.bf16.xpose.msra.mxu0 0
    %906 = vmatpush.bf16.xpose.msra.mxu0 0
    %907 = vmatpush.bf16.xpose.msra.mxu0 %v676
    %908 = vmatpush.bf16.xpose.msra.mxu0 %v597
    %909 = vmatmul.bf16.gmra.mxu0 %v202
    %v910 = vpop.f32.mrf.mxu0
    %v911 = vadd.f32 %v898, %v910
    %v912 = vpop.f32.mrf.mxu0
    %913 = vdwg.mxu0
    %914 = vmatpush.bf16.xpose.msra.mxu0 0
    %915 = vmatpush.bf16.xpose.msra.mxu0 0
    %916 = vmatpush.bf16.xpose.msra.mxu0 0
    %917 = vmatpush.bf16.xpose.msra.mxu0 0
    %918 = vmatpush.bf16.xpose.msra.mxu0 0
    %919 = vmatpush.bf16.xpose.msra.mxu0 0
    %920 = vmatpush.bf16.xpose.msra.mxu0 %v677
    %921 = vmatpush.bf16.xpose.msra.mxu0 %v598
    %922 = vmatmul.bf16.gmra.mxu0 %v203
    %v923 = vpop.f32.mrf.mxu0
    %v924 = vadd.f32 %v911, %v923
    %v925 = vpop.f32.mrf.mxu0
    %926 = vdwg.mxu0
    %927 = vmatpush.bf16.xpose.msra.mxu0 0
    %928 = vmatpush.bf16.xpose.msra.mxu0 0
    %929 = vmatpush.bf16.xpose.msra.mxu0 0
    %930 = vmatpush.bf16.xpose.msra.mxu0 0
    %931 = vmatpush.bf16.xpose.msra.mxu0 0
    %932 = vmatpush.bf16.xpose.msra.mxu0 0
    %933 = vmatpush.bf16.xpose.msra.mxu0 %v678
    %934 = vmatpush.bf16.xpose.msra.mxu0 %v599
    %935 = vmatmul.bf16.gmra.mxu0 %v204
    %v936 = vpop.f32.mrf.mxu0
    %v937 = vadd.f32 %v924, %v936
    %v938 = vpop.f32.mrf.mxu0
    %939 = vdwg.mxu0
    %940 = vmatpush.bf16.xpose.msra.mxu0 0
    %941 = vmatpush.bf16.xpose.msra.mxu0 0
    %942 = vmatpush.bf16.xpose.msra.mxu0 0
    %943 = vmatpush.bf16.xpose.msra.mxu0 0
    %944 = vmatpush.bf16.xpose.msra.mxu0 0
    %945 = vmatpush.bf16.xpose.msra.mxu0 0
    %946 = vmatpush.bf16.xpose.msra.mxu0 %v679
    %947 = vmatpush.bf16.xpose.msra.mxu0 %v600
    %948 = vmatmul.bf16.gmra.mxu0 %v205
    %v949 = vpop.f32.mrf.mxu0
    %v950 = vadd.f32 %v937, %v949
    %v951 = vpop.f32.mrf.mxu0
    %952 = vdwg.mxu0
    %953 = vmatpush.bf16.xpose.msra.mxu0 0
    %954 = vmatpush.bf16.xpose.msra.mxu0 0
    %955 = vmatpush.bf16.xpose.msra.mxu0 0
    %956 = vmatpush.bf16.xpose.msra.mxu0 0
    %957 = vmatpush.bf16.xpose.msra.mxu0 0
    %958 = vmatpush.bf16.xpose.msra.mxu0 0
    %959 = vmatpush.bf16.xpose.msra.mxu0 %v680
    %960 = vmatpush.bf16.xpose.msra.mxu0 %v601
    %961 = vmatmul.bf16.gmra.mxu0 %v206
    %v962 = vpop.f32.mrf.mxu0
    %v963 = vadd.f32 %v950, %v962
    %v964 = vpop.f32.mrf.mxu0
    %965 = vdwg.mxu0
    %966 = vmatpush.bf16.xpose.msra.mxu0 0
    %967 = vmatpush.bf16.xpose.msra.mxu0 0
    %968 = vmatpush.bf16.xpose.msra.mxu0 0
    %969 = vmatpush.bf16.xpose.msra.mxu0 0
    %970 = vmatpush.bf16.xpose.msra.mxu0 0
    %971 = vmatpush.bf16.xpose.msra.mxu0 0
    %972 = vmatpush.bf16.xpose.msra.mxu0 %v681
    %973 = vmatpush.bf16.xpose.msra.mxu0 %v602
    %974 = vmatmul.bf16.gmra.mxu0 %v207
    %v975 = vpop.f32.mrf.mxu0
    %v976 = vadd.f32 %v963, %v975
    %v977 = vpop.f32.mrf.mxu0
    %978 = vdwg.mxu0
    %979 = vmatpush.bf16.xpose.msra.mxu0 0
    %980 = vmatpush.bf16.xpose.msra.mxu0 0
    %981 = vmatpush.bf16.xpose.msra.mxu0 0
    %982 = vmatpush.bf16.xpose.msra.mxu0 0
    %983 = vmatpush.bf16.xpose.msra.mxu0 0
    %984 = vmatpush.bf16.xpose.msra.mxu0 0
    %985 = vmatpush.bf16.xpose.msra.mxu0 %v682
    %986 = vmatpush.bf16.xpose.msra.mxu0 %v603
    %987 = vmatmul.bf16.gmra.mxu0 %v208
    %v988 = vpop.f32.mrf.mxu0
    %v989 = vadd.f32 %v976, %v988
    %v990 = vpop.f32.mrf.mxu0
    %991 = vdwg.mxu0
    %992 = vmatpush.bf16.xpose.msra.mxu0 0
    %993 = vmatpush.bf16.xpose.msra.mxu0 0
    %994 = vmatpush.bf16.xpose.msra.mxu0 0
    %995 = vmatpush.bf16.xpose.msra.mxu0 0
    %996 = vmatpush.bf16.xpose.msra.mxu0 0
    %997 = vmatpush.bf16.xpose.msra.mxu0 0
    %998 = vmatpush.bf16.xpose.msra.mxu0 %v683
    %999 = vmatpush.bf16.xpose.msra.mxu0 %v604
    %1000 = vmatmul.bf16.gmra.mxu0 %v209
    %v1001 = vpop.f32.mrf.mxu0
    %v1002 = vadd.f32 %v989, %v1001
    %v1003 = vpop.f32.mrf.mxu0
    %1004 = vdwg.mxu0
    %1005 = vmatpush.bf16.xpose.msra.mxu0 0
    %1006 = vmatpush.bf16.xpose.msra.mxu0 0
    %1007 = vmatpush.bf16.xpose.msra.mxu0 0
    %1008 = vmatpush.bf16.xpose.msra.mxu0 0
    %1009 = vmatpush.bf16.xpose.msra.mxu0 0
    %1010 = vmatpush.bf16.xpose.msra.mxu0 0
    %1011 = vmatpush.bf16.xpose.msra.mxu0 %v684
    %1012 = vmatpush.bf16.xpose.msra.mxu0 %v605
    %1013 = vmatmul.bf16.gmra.mxu0 %v210
    %v1014 = vpop.f32.mrf.mxu0
    %v1015 = vadd.f32 %v1002, %v1014
    %v1016 = vpop.f32.mrf.mxu0
    %1017 = vdwg.mxu0
    %1018 = vmatpush.bf16.xpose.msra.mxu0 0
    %1019 = vmatpush.bf16.xpose.msra.mxu0 0
    %1020 = vmatpush.bf16.xpose.msra.mxu0 0
    %1021 = vmatpush.bf16.xpose.msra.mxu0 0
    %1022 = vmatpush.bf16.xpose.msra.mxu0 0
    %1023 = vmatpush.bf16.xpose.msra.mxu0 0
    %1024 = vmatpush.bf16.xpose.msra.mxu0 %v685
    %1025 = vmatpush.bf16.xpose.msra.mxu0 %v606
    %1026 = vmatmul.bf16.gmra.mxu0 %v211
    %v1027 = vpop.f32.mrf.mxu0
    %v1028 = vadd.f32 %v1015, %v1027
    %v1029 = vpop.f32.mrf.mxu0
    %1030 = vdwg.mxu0
    %1031 = vmatpush.bf16.xpose.msra.mxu0 0
    %1032 = vmatpush.bf16.xpose.msra.mxu0 0
    %1033 = vmatpush.bf16.xpose.msra.mxu0 0
    %1034 = vmatpush.bf16.xpose.msra.mxu0 0
    %1035 = vmatpush.bf16.xpose.msra.mxu0 0
    %1036 = vmatpush.bf16.xpose.msra.mxu0 0
    %1037 = vmatpush.bf16.xpose.msra.mxu0 %v686
    %1038 = vmatpush.bf16.xpose.msra.mxu0 %v607
    %1039 = vmatmul.bf16.gmra.mxu0 %v212
    %v1040 = vpop.f32.mrf.mxu0
    %v1041 = vadd.f32 %v1028, %v1040
    %v1042 = vpop.f32.mrf.mxu0
    %1043 = vdwg.mxu0
    %1044 = vmatpush.bf16.xpose.msra.mxu0 0
    %1045 = vmatpush.bf16.xpose.msra.mxu0 0
    %1046 = vmatpush.bf16.xpose.msra.mxu0 0
    %1047 = vmatpush.bf16.xpose.msra.mxu0 0
    %1048 = vmatpush.bf16.xpose.msra.mxu0 0
    %1049 = vmatpush.bf16.xpose.msra.mxu0 0
    %1050 = vmatpush.bf16.xpose.msra.mxu0 %v687
    %1051 = vmatpush.bf16.xpose.msra.mxu0 %v608
    %1052 = vmatmul.bf16.gmra.mxu0 %v213
    %v1053 = vpop.f32.mrf.mxu0
    %v1054 = vadd.f32 %v1041, %v1053
    %v1055 = vpop.f32.mrf.mxu0
    %1056 = vdwg.mxu0
    %1057 = vmatpush.bf16.xpose.msra.mxu0 0
    %1058 = vmatpush.bf16.xpose.msra.mxu0 0
    %1059 = vmatpush.bf16.xpose.msra.mxu0 0
    %1060 = vmatpush.bf16.xpose.msra.mxu0 0
    %1061 = vmatpush.bf16.xpose.msra.mxu0 0
    %1062 = vmatpush.bf16.xpose.msra.mxu0 0
    %1063 = vmatpush.bf16.xpose.msra.mxu0 %v688
    %1064 = vmatpush.bf16.xpose.msra.mxu0 %v609
    %1065 = vmatmul.bf16.gmra.mxu0 %v214
    %v1066 = vpop.f32.mrf.mxu0
    %v1067 = vadd.f32 %v1054, %v1066
    %v1068 = vpop.f32.mrf.mxu0
    %1069 = vdwg.mxu0
    %1070 = vmatpush.bf16.xpose.msra.mxu0 0
    %1071 = vmatpush.bf16.xpose.msra.mxu0 0
    %1072 = vmatpush.bf16.xpose.msra.mxu0 0
    %1073 = vmatpush.bf16.xpose.msra.mxu0 0
    %1074 = vmatpush.bf16.xpose.msra.mxu0 0
    %1075 = vmatpush.bf16.xpose.msra.mxu0 0
    %1076 = vmatpush.bf16.xpose.msra.mxu0 %v689
    %1077 = vmatpush.bf16.xpose.msra.mxu0 %v610
    %1078 = vmatmul.bf16.gmra.mxu0 %v215
    %v1079 = vpop.f32.mrf.mxu0
    %v1080 = vadd.f32 %v1067, %v1079
    %v1081 = vpop.f32.mrf.mxu0
    %1082 = vdwg.mxu0
    %1083 = vmatpush.bf16.xpose.msra.mxu0 0
    %1084 = vmatpush.bf16.xpose.msra.mxu0 0
    %1085 = vmatpush.bf16.xpose.msra.mxu0 0
    %1086 = vmatpush.bf16.xpose.msra.mxu0 0
    %1087 = vmatpush.bf16.xpose.msra.mxu0 0
    %1088 = vmatpush.bf16.xpose.msra.mxu0 0
    %1089 = vmatpush.bf16.xpose.msra.mxu0 %v690
    %1090 = vmatpush.bf16.xpose.msra.mxu0 %v611
    %1091 = vmatmul.bf16.gmra.mxu0 %v216
    %v1092 = vpop.f32.mrf.mxu0
    %v1093 = vadd.f32 %v1080, %v1092
    %v1094 = vpop.f32.mrf.mxu0
    %1095 = vdwg.mxu0
    %1096 = vmatpush.bf16.xpose.msra.mxu0 0
    %1097 = vmatpush.bf16.xpose.msra.mxu0 0
    %1098 = vmatpush.bf16.xpose.msra.mxu0 0
    %1099 = vmatpush.bf16.xpose.msra.mxu0 0
    %1100 = vmatpush.bf16.xpose.msra.mxu0 0
    %1101 = vmatpush.bf16.xpose.msra.mxu0 0
    %1102 = vmatpush.bf16.xpose.msra.mxu0 %v691
    %1103 = vmatpush.bf16.xpose.msra.mxu0 %v612
    %1104 = vmatmul.bf16.gmra.mxu0 %v217
    %v1105 = vpop.f32.mrf.mxu0
    %v1106 = vadd.f32 %v1093, %v1105
    %v1107 = vpop.f32.mrf.mxu0
    %1108 = vdwg.mxu0
    %1109 = vmatpush.bf16.xpose.msra.mxu0 0
    %1110 = vmatpush.bf16.xpose.msra.mxu0 0
    %1111 = vmatpush.bf16.xpose.msra.mxu0 0
    %1112 = vmatpush.bf16.xpose.msra.mxu0 0
    %1113 = vmatpush.bf16.xpose.msra.mxu0 0
    %1114 = vmatpush.bf16.xpose.msra.mxu0 0
    %1115 = vmatpush.bf16.xpose.msra.mxu0 %v692
    %1116 = vmatpush.bf16.xpose.msra.mxu0 %v613
    %1117 = vmatmul.bf16.gmra.mxu0 %v218
    %v1118 = vpop.f32.mrf.mxu0
    %v1119 = vadd.f32 %v1106, %v1118
    %v1120 = vpop.f32.mrf.mxu0
    %1121 = vdwg.mxu0
    %1122 = vmatpush.bf16.xpose.msra.mxu0 0
    %1123 = vmatpush.bf16.xpose.msra.mxu0 0
    %1124 = vmatpush.bf16.xpose.msra.mxu0 0
    %1125 = vmatpush.bf16.xpose.msra.mxu0 0
    %1126 = vmatpush.bf16.xpose.msra.mxu0 0
    %1127 = vmatpush.bf16.xpose.msra.mxu0 0
    %1128 = vmatpush.bf16.xpose.msra.mxu0 %v693
    %1129 = vmatpush.bf16.xpose.msra.mxu0 %v614
    %1130 = vmatmul.bf16.gmra.mxu0 %v219
    %v1131 = vpop.f32.mrf.mxu0
    %v1132 = vadd.f32 %v1119, %v1131
    %v1133 = vpop.f32.mrf.mxu0
    %1134 = vdwg.mxu0
    %1135 = vmatpush.bf16.xpose.msra.mxu0 0
    %1136 = vmatpush.bf16.xpose.msra.mxu0 0
    %1137 = vmatpush.bf16.xpose.msra.mxu0 0
    %1138 = vmatpush.bf16.xpose.msra.mxu0 0
    %1139 = vmatpush.bf16.xpose.msra.mxu0 0
    %1140 = vmatpush.bf16.xpose.msra.mxu0 0
    %1141 = vmatpush.bf16.xpose.msra.mxu0 %v694
    %1142 = vmatpush.bf16.xpose.msra.mxu0 %v615
    %1143 = vmatmul.bf16.gmra.mxu0 %v220
    %v1144 = vpop.f32.mrf.mxu0
    %v1145 = vadd.f32 %v1132, %v1144
    %v1146 = vpop.f32.mrf.mxu0
    %1147 = vdwg.mxu0
    %1148 = vmatpush.bf16.xpose.msra.mxu0 0
    %1149 = vmatpush.bf16.xpose.msra.mxu0 0
    %1150 = vmatpush.bf16.xpose.msra.mxu0 0
    %1151 = vmatpush.bf16.xpose.msra.mxu0 0
    %1152 = vmatpush.bf16.xpose.msra.mxu0 0
    %1153 = vmatpush.bf16.xpose.msra.mxu0 0
    %1154 = vmatpush.bf16.xpose.msra.mxu0 %v695
    %1155 = vmatpush.bf16.xpose.msra.mxu0 %v616
    %1156 = vmatmul.bf16.gmra.mxu0 %v221
    %v1157 = vpop.f32.mrf.mxu0
    %v1158 = vadd.f32 %v1145, %v1157
    %v1159 = vpop.f32.mrf.mxu0
    %1160 = vdwg.mxu0
    %1161 = vmatpush.bf16.xpose.msra.mxu0 0
    %1162 = vmatpush.bf16.xpose.msra.mxu0 0
    %1163 = vmatpush.bf16.xpose.msra.mxu0 0
    %1164 = vmatpush.bf16.xpose.msra.mxu0 0
    %1165 = vmatpush.bf16.xpose.msra.mxu0 0
    %1166 = vmatpush.bf16.xpose.msra.mxu0 0
    %1167 = vmatpush.bf16.xpose.msra.mxu0 %v696
    %1168 = vmatpush.bf16.xpose.msra.mxu0 %v617
    %1169 = vmatmul.bf16.gmra.mxu0 %v222
    %v1170 = vpop.f32.mrf.mxu0
    %v1171 = vadd.f32 %v1158, %v1170
    %v1172 = vpop.f32.mrf.mxu0
    %1173 = vdwg.mxu0
    %1174 = vmatpush.bf16.xpose.msra.mxu0 0
    %1175 = vmatpush.bf16.xpose.msra.mxu0 0
    %1176 = vmatpush.bf16.xpose.msra.mxu0 0
    %1177 = vmatpush.bf16.xpose.msra.mxu0 0
    %1178 = vmatpush.bf16.xpose.msra.mxu0 0
    %1179 = vmatpush.bf16.xpose.msra.mxu0 0
    %1180 = vmatpush.bf16.xpose.msra.mxu0 %v697
    %1181 = vmatpush.bf16.xpose.msra.mxu0 %v618
    %1182 = vmatmul.bf16.gmra.mxu0 %v223
    %v1183 = vpop.f32.mrf.mxu0
    %v1184 = vadd.f32 %v1171, %v1183
    %v1185 = vpop.f32.mrf.mxu0
    %1186 = vdwg.mxu0
    %1187 = vmatpush.bf16.xpose.msra.mxu0 0
    %1188 = vmatpush.bf16.xpose.msra.mxu0 0
    %1189 = vmatpush.bf16.xpose.msra.mxu0 0
    %1190 = vmatpush.bf16.xpose.msra.mxu0 0
    %1191 = vmatpush.bf16.xpose.msra.mxu0 0
    %1192 = vmatpush.bf16.xpose.msra.mxu0 0
    %1193 = vmatpush.bf16.xpose.msra.mxu0 %v698
    %1194 = vmatpush.bf16.xpose.msra.mxu0 %v619
    %1195 = vmatmul.bf16.gmra.mxu0 %v224
    %v1196 = vpop.f32.mrf.mxu0
    %v1197 = vadd.f32 %v1184, %v1196
    %v1198 = vpop.f32.mrf.mxu0
    %1199 = vdwg.mxu0
    %1200 = vmatpush.bf16.xpose.msra.mxu0 0
    %1201 = vmatpush.bf16.xpose.msra.mxu0 0
    %1202 = vmatpush.bf16.xpose.msra.mxu0 0
    %1203 = vmatpush.bf16.xpose.msra.mxu0 0
    %1204 = vmatpush.bf16.xpose.msra.mxu0 0
    %1205 = vmatpush.bf16.xpose.msra.mxu0 0
    %1206 = vmatpush.bf16.xpose.msra.mxu0 %v699
    %1207 = vmatpush.bf16.xpose.msra.mxu0 %v620
    %1208 = vmatmul.bf16.gmra.mxu0 %v225
    %v1209 = vpop.f32.mrf.mxu0
    %v1210 = vadd.f32 %v1197, %v1209
    %v1211 = vpop.f32.mrf.mxu0
    %1212 = vdwg.mxu0
    %1213 = vmatpush.bf16.xpose.msra.mxu0 0
    %1214 = vmatpush.bf16.xpose.msra.mxu0 0
    %1215 = vmatpush.bf16.xpose.msra.mxu0 0
    %1216 = vmatpush.bf16.xpose.msra.mxu0 0
    %1217 = vmatpush.bf16.xpose.msra.mxu0 0
    %1218 = vmatpush.bf16.xpose.msra.mxu0 0
    %1219 = vmatpush.bf16.xpose.msra.mxu0 %v700
    %1220 = vmatpush.bf16.xpose.msra.mxu0 %v621
    %1221 = vmatmul.bf16.gmra.mxu0 %v226
    %v1222 = vpop.f32.mrf.mxu0
    %v1223 = vadd.f32 %v1210, %v1222
    %v1224 = vpop.f32.mrf.mxu0
    %1225 = vdwg.mxu0
    %1226 = vmatpush.bf16.xpose.msra.mxu0 0
    %1227 = vmatpush.bf16.xpose.msra.mxu0 0
    %1228 = vmatpush.bf16.xpose.msra.mxu0 0
    %1229 = vmatpush.bf16.xpose.msra.mxu0 0
    %1230 = vmatpush.bf16.xpose.msra.mxu0 0
    %1231 = vmatpush.bf16.xpose.msra.mxu0 0
    %1232 = vmatpush.bf16.xpose.msra.mxu0 %v701
    %1233 = vmatpush.bf16.xpose.msra.mxu0 %v622
    %1234 = vmatmul.bf16.gmra.mxu0 %v227
    %v1235 = vpop.f32.mrf.mxu0
    %v1236 = vadd.f32 %v1223, %v1235
    %v1237 = vpop.f32.mrf.mxu0
    %1238 = vdwg.mxu0
    %1239 = vmatpush.bf16.xpose.msra.mxu0 0
    %1240 = vmatpush.bf16.xpose.msra.mxu0 0
    %1241 = vmatpush.bf16.xpose.msra.mxu0 0
    %1242 = vmatpush.bf16.xpose.msra.mxu0 0
    %1243 = vmatpush.bf16.xpose.msra.mxu0 0
    %1244 = vmatpush.bf16.xpose.msra.mxu0 0
    %1245 = vmatpush.bf16.xpose.msra.mxu0 %v702
    %1246 = vmatpush.bf16.xpose.msra.mxu0 %v623
    %1247 = vmatmul.bf16.gmra.mxu0 %v228
    %v1248 = vpop.f32.mrf.mxu0
    %v1249 = vadd.f32 %v1236, %v1248
    %v1250 = vpop.f32.mrf.mxu0
    %1251 = vdwg.mxu0
    %1252 = vmatpush.bf16.xpose.msra.mxu0 0
    %1253 = vmatpush.bf16.xpose.msra.mxu0 0
    %1254 = vmatpush.bf16.xpose.msra.mxu0 0
    %1255 = vmatpush.bf16.xpose.msra.mxu0 0
    %1256 = vmatpush.bf16.xpose.msra.mxu0 0
    %1257 = vmatpush.bf16.xpose.msra.mxu0 0
    %1258 = vmatpush.bf16.xpose.msra.mxu0 %v703
    %1259 = vmatpush.bf16.xpose.msra.mxu0 %v624
    %1260 = vmatmul.bf16.gmra.mxu0 %v229
    %v1261 = vpop.f32.mrf.mxu0
    %v1262 = vadd.f32 %v1249, %v1261
    %v1263 = vpop.f32.mrf.mxu0
    %1264 = vdwg.mxu0
    %1265 = vmatpush.bf16.xpose.msra.mxu0 0
    %1266 = vmatpush.bf16.xpose.msra.mxu0 0
    %1267 = vmatpush.bf16.xpose.msra.mxu0 0
    %1268 = vmatpush.bf16.xpose.msra.mxu0 0
    %1269 = vmatpush.bf16.xpose.msra.mxu0 0
    %1270 = vmatpush.bf16.xpose.msra.mxu0 0
    %1271 = vmatpush.bf16.xpose.msra.mxu0 %v704
    %1272 = vmatpush.bf16.xpose.msra.mxu0 %v625
    %1273 = vmatmul.bf16.gmra.mxu0 %v230
    %v1274 = vpop.f32.mrf.mxu0
    %v1275 = vadd.f32 %v1262, %v1274
    %v1276 = vpop.f32.mrf.mxu0
    %1277 = vdwg.mxu0
    %1278 = vmatpush.bf16.xpose.msra.mxu0 0
    %1279 = vmatpush.bf16.xpose.msra.mxu0 0
    %1280 = vmatpush.bf16.xpose.msra.mxu0 0
    %1281 = vmatpush.bf16.xpose.msra.mxu0 0
    %1282 = vmatpush.bf16.xpose.msra.mxu0 0
    %1283 = vmatpush.bf16.xpose.msra.mxu0 0
    %1284 = vmatpush.bf16.xpose.msra.mxu0 %v705
    %1285 = vmatpush.bf16.xpose.msra.mxu0 %v626
    %1286 = vmatmul.bf16.gmra.mxu0 %v231
    %v1287 = vpop.f32.mrf.mxu0
    %v1288 = vadd.f32 %v1275, %v1287
    %v1289 = vpop.f32.mrf.mxu0
    %1290 = vdwg.mxu0
    %1291 = vmatpush.bf16.xpose.msra.mxu0 0
    %1292 = vmatpush.bf16.xpose.msra.mxu0 0
    %1293 = vmatpush.bf16.xpose.msra.mxu0 0
    %1294 = vmatpush.bf16.xpose.msra.mxu0 0
    %1295 = vmatpush.bf16.xpose.msra.mxu0 0
    %1296 = vmatpush.bf16.xpose.msra.mxu0 0
    %1297 = vmatpush.bf16.xpose.msra.mxu0 %v706
    %1298 = vmatpush.bf16.xpose.msra.mxu0 %v627
    %1299 = vmatmul.bf16.gmra.mxu0 %v232
    %v1300 = vpop.f32.mrf.mxu0
    %v1301 = vadd.f32 %v1288, %v1300
    %v1302 = vpop.f32.mrf.mxu0
    %1303 = vdwg.mxu0
    %1304 = vmatpush.bf16.xpose.msra.mxu0 0
    %1305 = vmatpush.bf16.xpose.msra.mxu0 0
    %1306 = vmatpush.bf16.xpose.msra.mxu0 0
    %1307 = vmatpush.bf16.xpose.msra.mxu0 0
    %1308 = vmatpush.bf16.xpose.msra.mxu0 0
    %1309 = vmatpush.bf16.xpose.msra.mxu0 0
    %1310 = vmatpush.bf16.xpose.msra.mxu0 %v707
    %1311 = vmatpush.bf16.xpose.msra.mxu0 %v628
    %1312 = vmatmul.bf16.gmra.mxu0 %v233
    %v1313 = vpop.f32.mrf.mxu0
    %v1314 = vadd.f32 %v1301, %v1313
    %v1315 = vpop.f32.mrf.mxu0
    %1316 = vdwg.mxu0
    %1317 = vmatpush.bf16.xpose.msra.mxu0 0
    %1318 = vmatpush.bf16.xpose.msra.mxu0 0
    %1319 = vmatpush.bf16.xpose.msra.mxu0 0
    %1320 = vmatpush.bf16.xpose.msra.mxu0 0
    %1321 = vmatpush.bf16.xpose.msra.mxu0 0
    %1322 = vmatpush.bf16.xpose.msra.mxu0 0
    %1323 = vmatpush.bf16.xpose.msra.mxu0 %v708
    %1324 = vmatpush.bf16.xpose.msra.mxu0 %v629
    %1325 = vmatmul.bf16.gmra.mxu0 %v234
    %v1326 = vpop.f32.mrf.mxu0
    %v1327 = vadd.f32 %v1314, %v1326
    %v1328 = vpop.f32.mrf.mxu0
    %1329 = vdwg.mxu0
    %1330 = vmatpush.bf16.xpose.msra.mxu0 0
    %1331 = vmatpush.bf16.xpose.msra.mxu0 0
    %1332 = vmatpush.bf16.xpose.msra.mxu0 0
    %1333 = vmatpush.bf16.xpose.msra.mxu0 0
    %1334 = vmatpush.bf16.xpose.msra.mxu0 0
    %1335 = vmatpush.bf16.xpose.msra.mxu0 0
    %1336 = vmatpush.bf16.xpose.msra.mxu0 %v709
    %1337 = vmatpush.bf16.xpose.msra.mxu0 %v630
    %1338 = vmatmul.bf16.gmra.mxu0 %v235
    %v1339 = vpop.f32.mrf.mxu0
    %v1340 = vadd.f32 %v1327, %v1339
    %v1341 = vpop.f32.mrf.mxu0
    %1342 = vdwg.mxu0
    %1343 = vmatpush.bf16.xpose.msra.mxu0 0
    %1344 = vmatpush.bf16.xpose.msra.mxu0 0
    %1345 = vmatpush.bf16.xpose.msra.mxu0 0
    %1346 = vmatpush.bf16.xpose.msra.mxu0 0
    %1347 = vmatpush.bf16.xpose.msra.mxu0 0
    %1348 = vmatpush.bf16.xpose.msra.mxu0 0
    %1349 = vmatpush.bf16.xpose.msra.mxu0 %v710
    %1350 = vmatpush.bf16.xpose.msra.mxu0 %v631
    %1351 = vmatmul.bf16.gmra.mxu0 %v236
    %v1352 = vpop.f32.mrf.mxu0
    %v1353 = vadd.f32 %v1340, %v1352
    %v1354 = vpop.f32.mrf.mxu0
    %1355 = vdwg.mxu0
    %1356 = vmatpush.bf16.xpose.msra.mxu0 0
    %1357 = vmatpush.bf16.xpose.msra.mxu0 0
    %1358 = vmatpush.bf16.xpose.msra.mxu0 0
    %1359 = vmatpush.bf16.xpose.msra.mxu0 0
    %1360 = vmatpush.bf16.xpose.msra.mxu0 0
    %1361 = vmatpush.bf16.xpose.msra.mxu0 0
    %1362 = vmatpush.bf16.xpose.msra.mxu0 %v711
    %1363 = vmatpush.bf16.xpose.msra.mxu0 %v632
    %1364 = vmatmul.bf16.gmra.mxu0 %v237
    %v1365 = vpop.f32.mrf.mxu0
    %v1366 = vadd.f32 %v1353, %v1365
    %v1367 = vpop.f32.mrf.mxu0
    %1368 = vdwg.mxu0
    %1369 = vmatpush.bf16.xpose.msra.mxu0 0
    %1370 = vmatpush.bf16.xpose.msra.mxu0 0
    %1371 = vmatpush.bf16.xpose.msra.mxu0 0
    %1372 = vmatpush.bf16.xpose.msra.mxu0 0
    %1373 = vmatpush.bf16.xpose.msra.mxu0 0
    %1374 = vmatpush.bf16.xpose.msra.mxu0 0
    %1375 = vmatpush.bf16.xpose.msra.mxu0 %v712
    %1376 = vmatpush.bf16.xpose.msra.mxu0 %v633
    %1377 = vmatmul.bf16.gmra.mxu0 %v238
    %v1378 = vpop.f32.mrf.mxu0
    %v1379 = vadd.f32 %v1366, %v1378
    %v1380 = vpop.f32.mrf.mxu0
    %1381 = vdwg.mxu0
    %1382 = vmatpush.bf16.xpose.msra.mxu0 0
    %1383 = vmatpush.bf16.xpose.msra.mxu0 0
    %1384 = vmatpush.bf16.xpose.msra.mxu0 0
    %1385 = vmatpush.bf16.xpose.msra.mxu0 0
    %1386 = vmatpush.bf16.xpose.msra.mxu0 0
    %1387 = vmatpush.bf16.xpose.msra.mxu0 0
    %1388 = vmatpush.bf16.xpose.msra.mxu0 %v713
    %1389 = vmatpush.bf16.xpose.msra.mxu0 %v634
    %1390 = vmatmul.bf16.gmra.mxu0 %v239
    %v1391 = vpop.f32.mrf.mxu0
    %v1392 = vadd.f32 %v1379, %v1391
    %v1393 = vpop.f32.mrf.mxu0
    %1394 = vdwg.mxu0
    %1395 = vmatpush.bf16.xpose.msra.mxu0 0
    %1396 = vmatpush.bf16.xpose.msra.mxu0 0
    %1397 = vmatpush.bf16.xpose.msra.mxu0 0
    %1398 = vmatpush.bf16.xpose.msra.mxu0 0
    %1399 = vmatpush.bf16.xpose.msra.mxu0 0
    %1400 = vmatpush.bf16.xpose.msra.mxu0 0
    %1401 = vmatpush.bf16.xpose.msra.mxu0 %v714
    %1402 = vmatpush.bf16.xpose.msra.mxu0 %v635
    %1403 = vmatmul.bf16.gmra.mxu0 %v240
    %v1404 = vpop.f32.mrf.mxu0
    %v1405 = vadd.f32 %v1392, %v1404
    %v1406 = vpop.f32.mrf.mxu0
    %1407 = vdwg.mxu0
    %1408 = vmatpush.bf16.xpose.msra.mxu0 0
    %1409 = vmatpush.bf16.xpose.msra.mxu0 0
    %1410 = vmatpush.bf16.xpose.msra.mxu0 0
    %1411 = vmatpush.bf16.xpose.msra.mxu0 0
    %1412 = vmatpush.bf16.xpose.msra.mxu0 0
    %1413 = vmatpush.bf16.xpose.msra.mxu0 0
    %1414 = vmatpush.bf16.xpose.msra.mxu0 %v715
    %1415 = vmatpush.bf16.xpose.msra.mxu0 %v636
    %1416 = vmatmul.bf16.gmra.mxu0 %v241
    %v1417 = vpop.f32.mrf.mxu0
    %v1418 = vadd.f32 %v1405, %v1417
    %v1419 = vpop.f32.mrf.mxu0
    %1420 = vdwg.mxu0
    %1421 = vmatpush.bf16.xpose.msra.mxu0 0
    %1422 = vmatpush.bf16.xpose.msra.mxu0 0
    %1423 = vmatpush.bf16.xpose.msra.mxu0 0
    %1424 = vmatpush.bf16.xpose.msra.mxu0 0
    %1425 = vmatpush.bf16.xpose.msra.mxu0 0
    %1426 = vmatpush.bf16.xpose.msra.mxu0 0
    %1427 = vmatpush.bf16.xpose.msra.mxu0 %v716
    %1428 = vmatpush.bf16.xpose.msra.mxu0 %v637
    %1429 = vmatmul.bf16.gmra.mxu0 %v242
    %v1430 = vpop.f32.mrf.mxu0
    %v1431 = vadd.f32 %v1418, %v1430
    %v1432 = vpop.f32.mrf.mxu0
    %1433 = vdwg.mxu0
    %1434 = vmatpush.bf16.xpose.msra.mxu0 0
    %1435 = vmatpush.bf16.xpose.msra.mxu0 0
    %1436 = vmatpush.bf16.xpose.msra.mxu0 0
    %1437 = vmatpush.bf16.xpose.msra.mxu0 0
    %1438 = vmatpush.bf16.xpose.msra.mxu0 0
    %1439 = vmatpush.bf16.xpose.msra.mxu0 0
    %1440 = vmatpush.bf16.xpose.msra.mxu0 %v717
    %1441 = vmatpush.bf16.xpose.msra.mxu0 %v638
    %1442 = vmatmul.bf16.gmra.mxu0 %v243
    %v1443 = vpop.f32.mrf.mxu0
    %v1444 = vadd.f32 %v1431, %v1443
    %v1445 = vpop.f32.mrf.mxu0
    %1446 = vdwg.mxu0
    %1447 = vmatpush.bf16.xpose.msra.mxu0 0
    %1448 = vmatpush.bf16.xpose.msra.mxu0 0
    %1449 = vmatpush.bf16.xpose.msra.mxu0 0
    %1450 = vmatpush.bf16.xpose.msra.mxu0 0
    %1451 = vmatpush.bf16.xpose.msra.mxu0 0
    %1452 = vmatpush.bf16.xpose.msra.mxu0 0
    %1453 = vmatpush.bf16.xpose.msra.mxu0 %v718
    %1454 = vmatpush.bf16.xpose.msra.mxu0 %v639
    %1455 = vmatmul.bf16.gmra.mxu0 %v244
    %v1456 = vpop.f32.mrf.mxu0
    %v1457 = vadd.f32 %v1444, %v1456
    %v1458 = vpop.f32.mrf.mxu0
    %1459 = vdwg.mxu0
    %1460 = vmatpush.bf16.xpose.msra.mxu0 0
    %1461 = vmatpush.bf16.xpose.msra.mxu0 0
    %1462 = vmatpush.bf16.xpose.msra.mxu0 0
    %1463 = vmatpush.bf16.xpose.msra.mxu0 0
    %1464 = vmatpush.bf16.xpose.msra.mxu0 0
    %1465 = vmatpush.bf16.xpose.msra.mxu0 0
    %1466 = vmatpush.bf16.xpose.msra.mxu0 %v719
    %1467 = vmatpush.bf16.xpose.msra.mxu0 %v640
    %1468 = vmatmul.bf16.gmra.mxu0 %v245
    %v1469 = vpop.f32.mrf.mxu0
    %v1470 = vadd.f32 %v1457, %v1469
    %v1471 = vpop.f32.mrf.mxu0
    %1472 = vdwg.mxu0
    %1473 = vmatpush.bf16.xpose.msra.mxu0 0
    %1474 = vmatpush.bf16.xpose.msra.mxu0 0
    %1475 = vmatpush.bf16.xpose.msra.mxu0 0
    %1476 = vmatpush.bf16.xpose.msra.mxu0 0
    %1477 = vmatpush.bf16.xpose.msra.mxu0 0
    %1478 = vmatpush.bf16.xpose.msra.mxu0 0
    %1479 = vmatpush.bf16.xpose.msra.mxu0 %v720
    %1480 = vmatpush.bf16.xpose.msra.mxu0 %v641
    %1481 = vmatmul.bf16.gmra.mxu0 %v246
    %v1482 = vpop.f32.mrf.mxu0
    %v1483 = vadd.f32 %v1470, %v1482
    %v1484 = vpop.f32.mrf.mxu0
    %1485 = vdwg.mxu0
    %1486 = vmatpush.bf16.xpose.msra.mxu0 0
    %1487 = vmatpush.bf16.xpose.msra.mxu0 0
    %1488 = vmatpush.bf16.xpose.msra.mxu0 0
    %1489 = vmatpush.bf16.xpose.msra.mxu0 0
    %1490 = vmatpush.bf16.xpose.msra.mxu0 0
    %1491 = vmatpush.bf16.xpose.msra.mxu0 0
    %1492 = vmatpush.bf16.xpose.msra.mxu0 %v721
    %1493 = vmatpush.bf16.xpose.msra.mxu0 %v642
    %1494 = vmatmul.bf16.gmra.mxu0 %v247
    %v1495 = vpop.f32.mrf.mxu0
    %v1496 = vadd.f32 %v1483, %v1495
    %v1497 = vpop.f32.mrf.mxu0
    %1498 = vdwg.mxu0
    %1499 = vmatpush.bf16.xpose.msra.mxu0 0
    %1500 = vmatpush.bf16.xpose.msra.mxu0 0
    %1501 = vmatpush.bf16.xpose.msra.mxu0 0
    %1502 = vmatpush.bf16.xpose.msra.mxu0 0
    %1503 = vmatpush.bf16.xpose.msra.mxu0 0
    %1504 = vmatpush.bf16.xpose.msra.mxu0 0
    %1505 = vmatpush.bf16.xpose.msra.mxu0 %v722
    %1506 = vmatpush.bf16.xpose.msra.mxu0 %v643
    %1507 = vmatmul.bf16.gmra.mxu0 %v248
    %v1508 = vpop.f32.mrf.mxu0
    %v1509 = vadd.f32 %v1496, %v1508
    %v1510 = vpop.f32.mrf.mxu0
    %1511 = vdwg.mxu0
    %1512 = vmatpush.bf16.xpose.msra.mxu0 0
    %1513 = vmatpush.bf16.xpose.msra.mxu0 0
    %1514 = vmatpush.bf16.xpose.msra.mxu0 0
    %1515 = vmatpush.bf16.xpose.msra.mxu0 0
    %1516 = vmatpush.bf16.xpose.msra.mxu0 0
    %1517 = vmatpush.bf16.xpose.msra.mxu0 0
    %1518 = vmatpush.bf16.xpose.msra.mxu0 %v723
    %1519 = vmatpush.bf16.xpose.msra.mxu0 %v644
    %1520 = vmatmul.bf16.gmra.mxu0 %v249
    %v1521 = vpop.f32.mrf.mxu0
    %v1522 = vadd.f32 %v1509, %v1521
    %v1523 = vpop.f32.mrf.mxu0
    %1524 = vdwg.mxu0
    %1525 = vmatpush.bf16.xpose.msra.mxu0 0
    %1526 = vmatpush.bf16.xpose.msra.mxu0 0
    %1527 = vmatpush.bf16.xpose.msra.mxu0 0
    %1528 = vmatpush.bf16.xpose.msra.mxu0 0
    %1529 = vmatpush.bf16.xpose.msra.mxu0 0
    %1530 = vmatpush.bf16.xpose.msra.mxu0 0
    %1531 = vmatpush.bf16.xpose.msra.mxu0 %v724
    %1532 = vmatpush.bf16.xpose.msra.mxu0 %v645
    %1533 = vmatmul.bf16.gmra.mxu0 %v250
    %v1534 = vpop.f32.mrf.mxu0
    %v1535 = vadd.f32 %v1522, %v1534
    %v1536 = vpop.f32.mrf.mxu0
    %1537 = vdwg.mxu0
    %1538 = vmatpush.bf16.xpose.msra.mxu0 0
    %1539 = vmatpush.bf16.xpose.msra.mxu0 0
    %1540 = vmatpush.bf16.xpose.msra.mxu0 0
    %1541 = vmatpush.bf16.xpose.msra.mxu0 0
    %1542 = vmatpush.bf16.xpose.msra.mxu0 0
    %1543 = vmatpush.bf16.xpose.msra.mxu0 0
    %1544 = vmatpush.bf16.xpose.msra.mxu0 %v725
    %1545 = vmatpush.bf16.xpose.msra.mxu0 %v646
    %1546 = vmatmul.bf16.gmra.mxu0 %v251
    %v1547 = vpop.f32.mrf.mxu0
    %v1548 = vadd.f32 %v1535, %v1547
    %v1549 = vpop.f32.mrf.mxu0
    %1550 = vdwg.mxu0
    %1551 = vmatpush.bf16.xpose.msra.mxu0 0
    %1552 = vmatpush.bf16.xpose.msra.mxu0 0
    %1553 = vmatpush.bf16.xpose.msra.mxu0 0
    %1554 = vmatpush.bf16.xpose.msra.mxu0 0
    %1555 = vmatpush.bf16.xpose.msra.mxu0 0
    %1556 = vmatpush.bf16.xpose.msra.mxu0 0
    %1557 = vmatpush.bf16.xpose.msra.mxu0 %v726
    %1558 = vmatpush.bf16.xpose.msra.mxu0 %v647
    %1559 = vmatmul.bf16.gmra.mxu0 %v252
    %v1560 = vpop.f32.mrf.mxu0
    %v1561 = vadd.f32 %v1548, %v1560
    %v1562 = vpop.f32.mrf.mxu0
    %1563 = vdwg.mxu0
    %1564 = vmatpush.bf16.xpose.msra.mxu0 0
    %1565 = vmatpush.bf16.xpose.msra.mxu0 0
    %1566 = vmatpush.bf16.xpose.msra.mxu0 0
    %1567 = vmatpush.bf16.xpose.msra.mxu0 0
    %1568 = vmatpush.bf16.xpose.msra.mxu0 0
    %1569 = vmatpush.bf16.xpose.msra.mxu0 0
    %1570 = vmatpush.bf16.xpose.msra.mxu0 %v727
    %1571 = vmatpush.bf16.xpose.msra.mxu0 %v648
    %1572 = vmatmul.bf16.gmra.mxu0 %v253
    %v1573 = vpop.f32.mrf.mxu0
    %v1574 = vadd.f32 %v1561, %v1573
    %v1575 = vpop.f32.mrf.mxu0
    %1576 = vdwg.mxu0
    %1577 = vmatpush.bf16.xpose.msra.mxu0 0
    %1578 = vmatpush.bf16.xpose.msra.mxu0 0
    %1579 = vmatpush.bf16.xpose.msra.mxu0 0
    %1580 = vmatpush.bf16.xpose.msra.mxu0 0
    %1581 = vmatpush.bf16.xpose.msra.mxu0 0
    %1582 = vmatpush.bf16.xpose.msra.mxu0 0
    %1583 = vmatpush.bf16.xpose.msra.mxu0 %v728
    %1584 = vmatpush.bf16.xpose.msra.mxu0 %v649
    %1585 = vmatmul.bf16.gmra.mxu0 %v254
    %v1586 = vpop.f32.mrf.mxu0
    %v1587 = vadd.f32 %v1574, %v1586
    %v1588 = vpop.f32.mrf.mxu0
    %1589 = vdwg.mxu0
    %1590 = vmatpush.bf16.xpose.msra.mxu0 0
    %1591 = vmatpush.bf16.xpose.msra.mxu0 0
    %1592 = vmatpush.bf16.xpose.msra.mxu0 0
    %1593 = vmatpush.bf16.xpose.msra.mxu0 0
    %1594 = vmatpush.bf16.xpose.msra.mxu0 0
    %1595 = vmatpush.bf16.xpose.msra.mxu0 0
    %1596 = vmatpush.bf16.xpose.msra.mxu0 %v729
    %1597 = vmatpush.bf16.xpose.msra.mxu0 %v650
    %1598 = vmatmul.bf16.gmra.mxu0 %v255
    %v1599 = vpop.f32.mrf.mxu0
    %v1600 = vadd.f32 %v1587, %v1599
    %v1601 = vpop.f32.mrf.mxu0
    %1602 = vdwg.mxu0
    %1603 = vmatpush.bf16.xpose.msra.mxu0 0
    %1604 = vmatpush.bf16.xpose.msra.mxu0 0
    %1605 = vmatpush.bf16.xpose.msra.mxu0 0
    %1606 = vmatpush.bf16.xpose.msra.mxu0 0
    %1607 = vmatpush.bf16.xpose.msra.mxu0 0
    %1608 = vmatpush.bf16.xpose.msra.mxu0 0
    %1609 = vmatpush.bf16.xpose.msra.mxu0 %v730
    %1610 = vmatpush.bf16.xpose.msra.mxu0 %v651
    %1611 = vmatmul.bf16.gmra.mxu0 %v256
    %v1612 = vpop.f32.mrf.mxu0
    %v1613 = vadd.f32 %v1600, %v1612
    %v1614 = vpop.f32.mrf.mxu0
    %1615 = vdwg.mxu0
    %1616 = vmatpush.bf16.xpose.msra.mxu0 0
    %1617 = vmatpush.bf16.xpose.msra.mxu0 0
    %1618 = vmatpush.bf16.xpose.msra.mxu0 0
    %1619 = vmatpush.bf16.xpose.msra.mxu0 0
    %1620 = vmatpush.bf16.xpose.msra.mxu0 0
    %1621 = vmatpush.bf16.xpose.msra.mxu0 0
    %1622 = vmatpush.bf16.xpose.msra.mxu0 %v731
    %1623 = vmatpush.bf16.xpose.msra.mxu0 %v652
    %1624 = vmatmul.bf16.gmra.mxu0 %v257
    %v1625 = vpop.f32.mrf.mxu0
    %v1626 = vadd.f32 %v1613, %v1625
    %v1627 = vpop.f32.mrf.mxu0
    %1628 = vdwg.mxu0
    %1629 = vmatpush.bf16.xpose.msra.mxu0 0
    %1630 = vmatpush.bf16.xpose.msra.mxu0 0
    %1631 = vmatpush.bf16.xpose.msra.mxu0 0
    %1632 = vmatpush.bf16.xpose.msra.mxu0 0
    %1633 = vmatpush.bf16.xpose.msra.mxu0 0
    %1634 = vmatpush.bf16.xpose.msra.mxu0 0
    %1635 = vmatpush.bf16.xpose.msra.mxu0 %v732
    %1636 = vmatpush.bf16.xpose.msra.mxu0 %v653
    %1637 = vmatmul.bf16.gmra.mxu0 %v258
    %v1638 = vpop.f32.mrf.mxu0
    %v1639 = vadd.f32 %v1626, %v1638
    %v1640 = vpop.f32.mrf.mxu0
    %1641 = vdwg.mxu0
    %1642 = vmatpush.bf16.xpose.msra.mxu0 0
    %1643 = vmatpush.bf16.xpose.msra.mxu0 0
    %1644 = vmatpush.bf16.xpose.msra.mxu0 0
    %1645 = vmatpush.bf16.xpose.msra.mxu0 0
    %1646 = vmatpush.bf16.xpose.msra.mxu0 0
    %1647 = vmatpush.bf16.xpose.msra.mxu0 0
    %1648 = vmatpush.bf16.xpose.msra.mxu0 %v733
    %1649 = vmatpush.bf16.xpose.msra.mxu0 %v654
    %1650 = vmatmul.bf16.gmra.mxu0 %v259
    %v1651 = vpop.f32.mrf.mxu0
    %v1652 = vadd.f32 %v1639, %v1651
    %v1653 = vpop.f32.mrf.mxu0
    %1654 = vdwg.mxu0
    %1655 = vmatpush.bf16.xpose.msra.mxu0 0
    %1656 = vmatpush.bf16.xpose.msra.mxu0 0
    %1657 = vmatpush.bf16.xpose.msra.mxu0 0
    %1658 = vmatpush.bf16.xpose.msra.mxu0 0
    %1659 = vmatpush.bf16.xpose.msra.mxu0 0
    %1660 = vmatpush.bf16.xpose.msra.mxu0 0
    %1661 = vmatpush.bf16.xpose.msra.mxu0 %v734
    %1662 = vmatpush.bf16.xpose.msra.mxu0 %v655
    %1663 = vmatmul.bf16.gmra.mxu0 %v260
    %v1664 = vpop.f32.mrf.mxu0
    %v1665 = vadd.f32 %v1652, %v1664
    %v1666 = vpop.f32.mrf.mxu0
    %1667 = vdwg.mxu0
    %1668 = vmatpush.bf16.xpose.msra.mxu0 0
    %1669 = vmatpush.bf16.xpose.msra.mxu0 0
    %1670 = vmatpush.bf16.xpose.msra.mxu0 0
    %1671 = vmatpush.bf16.xpose.msra.mxu0 0
    %1672 = vmatpush.bf16.xpose.msra.mxu0 0
    %1673 = vmatpush.bf16.xpose.msra.mxu0 0
    %1674 = vmatpush.bf16.xpose.msra.mxu0 %v735
    %1675 = vmatpush.bf16.xpose.msra.mxu0 %v656
    %1676 = vmatmul.bf16.gmra.mxu0 %v261
    %v1677 = vpop.f32.mrf.mxu0
    %v1678 = vadd.f32 %v1665, %v1677
    %v1679 = vpop.f32.mrf.mxu0
    %1680 = vdwg.mxu0
    %1681 = vmatpush.bf16.xpose.msra.mxu0 0
    %1682 = vmatpush.bf16.xpose.msra.mxu0 0
    %1683 = vmatpush.bf16.xpose.msra.mxu0 0
    %1684 = vmatpush.bf16.xpose.msra.mxu0 0
    %1685 = vmatpush.bf16.xpose.msra.mxu0 0
    %1686 = vmatpush.bf16.xpose.msra.mxu0 0
    %1687 = vmatpush.bf16.xpose.msra.mxu0 %v736
    %1688 = vmatpush.bf16.xpose.msra.mxu0 %v657
    %1689 = vmatmul.bf16.gmra.mxu0 %v262
    %v1690 = vpop.f32.mrf.mxu0
    %v1691 = vadd.f32 %v1678, %v1690
    %v1692 = vpop.f32.mrf.mxu0
    %1693 = vdwg.mxu0
    %1694 = vmatpush.bf16.xpose.msra.mxu0 0
    %1695 = vmatpush.bf16.xpose.msra.mxu0 0
    %1696 = vmatpush.bf16.xpose.msra.mxu0 0
    %1697 = vmatpush.bf16.xpose.msra.mxu0 0
    %1698 = vmatpush.bf16.xpose.msra.mxu0 0
    %1699 = vmatpush.bf16.xpose.msra.mxu0 0
    %1700 = vmatpush.bf16.xpose.msra.mxu0 %v737
    %1701 = vmatpush.bf16.xpose.msra.mxu0 %v658
    %1702 = vmatmul.bf16.gmra.mxu0 %v263
    %v1703 = vpop.f32.mrf.mxu0
    %v1704 = vadd.f32 %v1691, %v1703
    %v1705 = vpop.f32.mrf.mxu0
    %1706 = vdwg.mxu0
    %1707 = vmatpush.bf16.xpose.msra.mxu0 0
    %1708 = vmatpush.bf16.xpose.msra.mxu0 0
    %1709 = vmatpush.bf16.xpose.msra.mxu0 0
    %1710 = vmatpush.bf16.xpose.msra.mxu0 0
    %1711 = vmatpush.bf16.xpose.msra.mxu0 0
    %1712 = vmatpush.bf16.xpose.msra.mxu0 0
    %1713 = vmatpush.bf16.xpose.msra.mxu0 %v738
    %1714 = vmatpush.bf16.xpose.msra.mxu0 %v659
    %1715 = vmatmul.bf16.gmra.mxu0 %v264
    %v1716 = vpop.f32.mrf.mxu0
    %v1717 = vadd.f32 %v1704, %v1716
    %v1718 = vpop.f32.mrf.mxu0
    %1719 = vdwg.mxu0
    %1720 = vmatpush.bf16.xpose.msra.mxu0 0
    %1721 = vmatpush.bf16.xpose.msra.mxu0 0
    %1722 = vmatpush.bf16.xpose.msra.mxu0 0
    %1723 = vmatpush.bf16.xpose.msra.mxu0 0
    %1724 = vmatpush.bf16.xpose.msra.mxu0 0
    %1725 = vmatpush.bf16.xpose.msra.mxu0 0
    %1726 = vmatpush.bf16.xpose.msra.mxu0 %v739
    %1727 = vmatpush.bf16.xpose.msra.mxu0 %v660
    %1728 = vmatmul.bf16.gmra.mxu0 %v265
    %v1729 = vpop.f32.mrf.mxu0
    %v1730 = vadd.f32 %v1717, %v1729
    %v1731 = vpop.f32.mrf.mxu0
    %1732 = vdwg.mxu0
    %1733 = vmatpush.bf16.xpose.msra.mxu0 0
    %1734 = vmatpush.bf16.xpose.msra.mxu0 0
    %1735 = vmatpush.bf16.xpose.msra.mxu0 0
    %1736 = vmatpush.bf16.xpose.msra.mxu0 0
    %1737 = vmatpush.bf16.xpose.msra.mxu0 0
    %1738 = vmatpush.bf16.xpose.msra.mxu0 0
    %1739 = vmatpush.bf16.xpose.msra.mxu0 %v740
    %1740 = vmatpush.bf16.xpose.msra.mxu0 %v661
    %1741 = vmatmul.bf16.gmra.mxu0 %v266
    %v1742 = vpop.f32.mrf.mxu0
    %v1743 = vadd.f32 %v1730, %v1742
    %v1744 = vpop.f32.mrf.mxu0
    %1745 = vdwg.mxu0
    %1746 = vmatpush.bf16.xpose.msra.mxu0 0
    %1747 = vmatpush.bf16.xpose.msra.mxu0 0
    %1748 = vmatpush.bf16.xpose.msra.mxu0 0
    %1749 = vmatpush.bf16.xpose.msra.mxu0 0
    %1750 = vmatpush.bf16.xpose.msra.mxu0 0
    %1751 = vmatpush.bf16.xpose.msra.mxu0 0
    %1752 = vmatpush.bf16.xpose.msra.mxu0 %v741
    %1753 = vmatpush.bf16.xpose.msra.mxu0 %v662
    %1754 = vmatmul.bf16.gmra.mxu0 %v267
    %v1755 = vpop.f32.mrf.mxu0
    %v1756 = vadd.f32 %v1743, %v1755
    %v1757 = vpop.f32.mrf.mxu0
    %1758 = vdwg.mxu0
    %1759 = vmatpush.bf16.xpose.msra.mxu0 0
    %1760 = vmatpush.bf16.xpose.msra.mxu0 0
    %1761 = vmatpush.bf16.xpose.msra.mxu0 0
    %1762 = vmatpush.bf16.xpose.msra.mxu0 0
    %1763 = vmatpush.bf16.xpose.msra.mxu0 0
    %1764 = vmatpush.bf16.xpose.msra.mxu0 0
    %1765 = vmatpush.bf16.xpose.msra.mxu0 %v742
    %1766 = vmatpush.bf16.xpose.msra.mxu0 %v663
    %1767 = vmatmul.bf16.gmra.mxu0 %v268
    %v1768 = vpop.f32.mrf.mxu0
    %v1769 = vadd.f32 %v1756, %v1768
    %v1770 = vpop.f32.mrf.mxu0
    %1771 = vdwg.mxu0
    %1772 = vmatpush.bf16.xpose.msra.mxu0 0
    %1773 = vmatpush.bf16.xpose.msra.mxu0 0
    %1774 = vmatpush.bf16.xpose.msra.mxu0 0
    %1775 = vmatpush.bf16.xpose.msra.mxu0 0
    %1776 = vmatpush.bf16.xpose.msra.mxu0 0
    %1777 = vmatpush.bf16.xpose.msra.mxu0 0
    %1778 = vmatpush.bf16.xpose.msra.mxu0 %v756
    %1779 = vmatpush.bf16.xpose.msra.mxu0 %v753
    %1780 = vmatmul.bf16.gmra.mxu0 %v750
    %v1781 = vpop.f32.mrf.mxu0
    %v1782 = vadd.f32 %v1769, %v1781
    %v1783 = vpop.f32.mrf.mxu0
    %1784 = vdwg.mxu0
    %v1785 = vtanh.pop %v1782
    %v1786 = vld [vmem:[%s3] sm:$0xff]
    %v1787 = vld [vmem:[%s3 + $0x8] sm:$0xff]
    %v1788 = vld [vmem:[%s3 + $0x10] sm:$0xff]
    %v1789 = vld [vmem:[%s3 + $0x18] sm:$0xff]
    %v1790 = vld [vmem:[#allocation8] sm:$0x1]
    %v1792 = vperm.slane %v1790, 0
    %vm1794 = vcmask 261120
    %v1796 = vsel %vm1794, %v1785, 0
    %1798 = vmatpush.msra.mxu0 0.0
    %1799 = vmatpush.msra.mxu0 0.0
    %1800 = vmatpush.msra.mxu0 0.0
    %1801 = vmatpush.msra.mxu0 0.0
    %1802 = vmatpush.msra.mxu0 0.0
    %1803 = vmatpush.msra.mxu0 0.0
    %1804 = vmatpush.msra.mxu0 0.0
    %1805 = vmatpush.msra.mxu0 0.0
    %1806 = vmatpush.msra.mxu0 0.0
    %1807 = vmatpush.msra.mxu0 0.0
    %1808 = vmatpush.msra.mxu0 0.0
    %1809 = vmatpush.msra.mxu0 0.0
    %1810 = vmatpush.msra.mxu0 %v1789
    %1811 = vmatpush.msra.mxu0 %v1788
    %1812 = vmatpush.msra.mxu0 %v1787
    %1813 = vmatpush.msra.mxu0 %v1786
    %1814 = vmatmul.f32.gmra.mxu0 %v1796
    %v1815 = vpop.f32.mrf.mxu0
    %v1816 = vadd.f32 %v1792, %v1815
    %1817 = vdwg.mxu0
    %vm1818 = vcmp.gt.f32.partialorder %v1816, 0.0
    %v1819 = vmul.f32 %v1816, 0.01
    %v1820 = vsel %vm1818, %v1816, %v1819
    %v1821 = vld [vmem:[#allocation10] sm:$0xf]
    %v1822 = vld [vmem:[#allocation11] sm:$0x1]
    %v1824 = vperm.slane %v1822, 0
    %vm1826 = vcmask 31744
    %v1828 = vsel %vm1826, %v1820, 0
    %vm1830 = vcmask 1043456
    %v1832 = vsel %vm1830, %v1821, 0
    %1834 = vmatpush.msra.mxu0 0.0
    %1835 = vmatpush.msra.mxu0 0.0
    %1836 = vmatpush.msra.mxu0 0.0
    %1837 = vmatpush.msra.mxu0 0.0
    %1838 = vmatpush.msra.mxu0 0.0
    %1839 = vmatpush.msra.mxu0 0.0
    %1840 = vmatpush.msra.mxu0 0.0
    %1841 = vmatpush.msra.mxu0 0.0
    %1842 = vmatpush.msra.mxu0 0.0
    %1843 = vmatpush.msra.mxu0 0.0
    %1844 = vmatpush.msra.mxu0 0.0
    %1845 = vmatpush.msra.mxu0 0.0
    %1846 = vmatpush.msra.mxu0 0.0
    %1847 = vmatpush.msra.mxu0 0.0
    %1848 = vmatpush.msra.mxu0 0.0
    %1849 = vmatpush.msra.mxu0 %v1832
    %1850 = vmatmul.f32.gmra.mxu0 %v1828
    %v1851 = vpop.f32.mrf.mxu0
    %v1852 = vadd.f32 %v1824, %v1851
    %1853 = vdwg.mxu0
    %vm1854 = vcmask 375808
    %v1855 = vsel %vm1854, %v1852, -inf
    %1856 = vmax.xlane.f32.xlu0 %v1855
    %v1857 = vpop.xlane.xlu0 %1856
    %v1858 = vsub.f32 %v1852, %v1857
    %v1859 = vmul.f32 %v1858, 1.442695
    %v1860 = vpow.pop %v1859
    %v1861 = vsel %vm1854, %v1860, 0.0
    %1862 = vadd.xlane.f32.xlu0 %v1861
    %v1863 = vpop.xlane.xlu0 %1862
    %v1864 = vrcp.pop %v1863
    %v1865 = vmul.f32 %v1863, %v1864
    %v1866 = vsub.f32 1.0, %v1865
    %v1867 = vmul.f32 %v1864, %v1866
    %v1868 = vadd.f32 %v1864, %v1867
    %vm1869 = vweird.f32 %v1863
    %vm1870 = vweird.f32 %v1864
    %vm1871 = vmor %vm1869, %vm1870
    %v1872 = vsel %vm1871, %v1864, %v1868
    %v1873 = vand.u32 2147483647, %v1863
    %vm1874 = vcmp.eq.f32.partialorder %v1873, 8.507059e+37
    %v1875 = vand.u32 %v1863, 2147483648
    %v1876 = vor.u32 1.1754944e-38, %v1875
    %v1877 = vsel %vm1874, %v1876, %v1872
    %v1878 = vmul.f32 %v1860, %v1877
    %1879 = vst.msk [vmem:[#allocation13] sm:$0xff] %vm1854, %v1878
    // Predicated region
    $region54: #{tpu_custom_call.1} parent=1 // pred_check
      _
    $region55: #{tpu_custom_call.1} parent=1 // pred_check_branch
      %1881 = sbr.rel (0) target = $region57
    $region56: #{tpu_custom_call.1} parent=1 // pred_region
      %1883 = vsyncadd [#allocation4], 0
      %s1885 = sshll.u32 [#allocation13], 4
      %s1886 = int_to_ptr.vmem [resolvable:$true] %s1885
      %s1887 = sshll.u32 %s7, 4
      %s1888 = int_to_ptr.hbm [resolvable:$true] %s1887
      %1890 = dma.vmem_to_hbm [thread:$0]  %s1886, 128, %s1888, [#allocation4]
    $region57: #{tpu_custom_call.1} parent=1 // pred_fallthru
      _
    // Predicated region
    $region58: #{tpu_custom_call.1} parent=1 // pred_check
      _
    $region59: #{tpu_custom_call.1} parent=1 // pred_check_branch
      %1892 = sbr.rel (0) target = $region61
    $region60: #{tpu_custom_call.1} parent=1 // pred_region
      %1894 = dma.done [#allocation4], 128
    $region61: #{tpu_custom_call.1} parent=1 // pred_fallthru
      _
    %1895 = vsyncpa [#allocation3], 1
    %1896 = vsyncpa [#allocation6], 1
    %1897 = vsyncpa [#allocation9], 1
    %1898 = vsyncpa [#allocation12], 1
    %1899 = vsyncpa [#allocation4], 1

</llo_original>
